<compile_context>
chip_gen: v6e
topology: v6e:2x2x1
jax: 0.10.0
libtpu: 0.0.40
codegen_flags: <defaults>
</compile_context>

<pallas_src>
import functools

import numpy as np
import jax
import jax.numpy as jnp
from jax.experimental import pallas as pl
from jax.experimental.pallas import tpu as pltpu


# ----------------------------------------------------------------------------
# Model / problem constants (small synthetic scale)
# ----------------------------------------------------------------------------
IMG_SIZE = 32
IN_CH = 3
C1, C2 = 16, 32
H1 = W1 = IMG_SIZE // 2          # 16 (after 3x3 stride-2 conv, pad 1)
H2 = W2 = IMG_SIZE // 4          # 8
NUM_ANCHORS = 3
NUM_CLASSES = 4
N_COMP = 5 + NUM_CLASSES         # 9 components per anchor
HEAD_CH = NUM_ANCHORS * N_COMP   # 27
ANCHORS = ((4.0, 6.0), (8.0, 10.0), (13.0, 16.0))   # (w, h) in net-input pixels
CONF_THRES = 0.8
N_TAPS = 9                       # 3x3 conv taps


# ----------------------------------------------------------------------------
# Host-side constant builders (traced-in constants, built once with numpy)
# ----------------------------------------------------------------------------
def _build_conv2_gather(h1_hw, h2_hw):
    """GT[t, q, p] = 1 if layer-1 position q feeds tap t of layer-2 output p
    (3x3 conv, stride 2, pad 1); zero rows implement the zero padding."""
    h1h, h1w = h1_hw
    h2h, h2w = h2_hw
    gt = np.zeros((N_TAPS, h1h * h1w, h2h * h2w), np.float32)
    for di in range(3):
        for dj in range(3):
            t = di * 3 + dj
            for i2 in range(h2h):
                for j2 in range(h2w):
                    r = 2 * i2 - 1 + di
                    s = 2 * j2 - 1 + dj
                    if 0 <= r < h1h and 0 <= s < h1w:
                        gt[t, r * h1w + s, i2 * h2w + j2] = 1.0
    return gt


def _build_grid(h2, w2):
    gy, gx = np.meshgrid(np.arange(h2), np.arange(w2), indexing="ij")
    return np.stack([gx.reshape(-1), gy.reshape(-1)], axis=0).astype(np.float32)


GT_NP = _build_conv2_gather((H1, W1), (H2, W2))      # (9, 256, 64)
GXY_NP = _build_grid(H2, W2)                         # (2, 64)  rows = grid_x, grid_y


# ----------------------------------------------------------------------------
# Fused Pallas kernel: conv1 + conv2 + head + YOLO decode + largest-box select
# ----------------------------------------------------------------------------
def _fused_detector_kernel(cols1_ref, w1_ref, b1_ref, gt_ref, w2t_ref, b2_ref,
                           w3t_ref, b3_ref, gxy_ref, out_ref,
                           *, stride, conf_thres, anchors, n_taps):
    f32 = jnp.float32
    leaky = lambda v: jnp.where(v > 0, v, 0.1 * v)      # Darknet LeakyReLU(0.1)
    sig = jax.nn.sigmoid

    # ---- layer 1: 3x3 / stride-2 conv (im2col done in the jitted wrapper) ----
    cols1 = cols1_ref[0]                                # (27, 256)
    h1 = jnp.dot(w1_ref[...], cols1, preferred_element_type=f32)   # (16, 256)
    h1 = leaky(h1 + b1_ref[...])                        # bias column broadcasts

    # ---- layer 2: 3x3 / stride-2 conv as 9 selection-matmul taps ----
    acc = jnp.zeros((w2t_ref.shape[1], gt_ref.shape[2]), f32)      # (32, 64)
    for t in range(n_taps):                              # statically unrolled
        gathered = jnp.dot(h1, gt_ref[t], preferred_element_type=f32)        # (16, 64)
        acc = acc + jnp.dot(w2t_ref[t], gathered, preferred_element_type=f32)  # (32, 64)
    h2 = leaky(acc + b2_ref[...])

    # ---- 1x1 YOLO head (no activation) ----
    pred = jnp.dot(w3t_ref[...], h2, preferred_element_type=f32) + b3_ref[...]  # (27, 64)

    # ---- YOLO decode + confidence filter + largest-person-box selection ----
    gx = gxy_ref[0:1, :]                                 # (1, 64)
    gy = gxy_ref[1:2, :]
    n_pos = pred.shape[-1]
    n_comp = pred.shape[0] // len(anchors)

    q_rows, scores, valids = [], [], []
    for a, (aw, ah) in enumerate(anchors):
        blk = pred[a * n_comp:(a + 1) * n_comp, :]       # (9, 64)
        cx = (sig(blk[0:1, :]) + gx) * stride
        cy = (sig(blk[1:2, :]) + gy) * stride
        # clamp the exponent so huge raw outputs never yield inf box area
        bw = jnp.exp(jnp.minimum(blk[2:3, :], 15.0)) * aw
        bh = jnp.exp(jnp.minimum(blk[3:4, :], 15.0)) * ah
        obj = sig(blk[4:5, :])
        cls = sig(blk[5:, :])                            # (nc, 64)
        cls_conf = jnp.max(cls, axis=0, keepdims=True)   # (1, 64)
        is_person = cls[0:1, :] >= cls_conf              # argmax class == 0
        x1 = cx - 0.5 * bw
        y1 = cy - 0.5 * bh
        x2 = cx + 0.5 * bw
        y2 = cy + 0.5 * bh
        valid = jnp.logical_and(obj >= conf_thres, is_person)
        area = bw * bh
        scores.append(jnp.where(valid, area, -1.0))
        valids.append(valid.astype(f32))
        q_rows.append(jnp.concatenate([x1, y1, x2, y2, obj, cls_conf], axis=0))  # (6,64)

    score = jnp.concatenate(scores, axis=0)              # (A, 64)
    valid_all = jnp.concatenate(valids, axis=0)          # (A, 64)
    best = jnp.max(score)
    a_idx = jax.lax.broadcasted_iota(jnp.int32, score.shape, 0)
    p_idx = jax.lax.broadcasted_iota(jnp.int32, score.shape, 1)
    idx = a_idx * n_pos + p_idx
    cand = jnp.where(score >= best, idx, len(anchors) * n_pos)
    first = jnp.min(cand)                                # first index achieving max
    sel = (idx == first).astype(f32)                     # one-hot selector (A, 64)
    any_valid = jnp.max(valid_all)

    # single batched lane-reduce over the (6, 64) weighted slab
    weighted = q_rows[0] * sel[0:1, :]
    for a in range(1, len(anchors)):
        weighted = weighted + q_rows[a] * sel[a:a + 1, :]
    picked = jnp.sum(weighted, axis=1, keepdims=True)    # (6, 1)

    cls_pred_row = jnp.zeros((1, 1), f32)                # selected class is 0 (person)
    valid_row = jnp.ones((1, 1), f32) * any_valid
    col = jnp.concatenate([picked, cls_pred_row, valid_row], axis=0)   # (8, 1)
    out_ref[0] = jnp.broadcast_to(col, (8, out_ref.shape[-1]))         # lane-dense store


# ----------------------------------------------------------------------------
# Glue: layer-1 im2col (pure slicing under jit), parameter init, box post-proc
# ----------------------------------------------------------------------------
def im2col(x_nhwc, k, stride):
    bs, H, W, C = x_nhwc.shape
    pad = k // 2
    Ho = (H + 2 * pad - k) // stride + 1
    Wo = (W + 2 * pad - k) // stride + 1
    xp = jnp.pad(x_nhwc, ((0, 0), (pad, pad), (pad, pad), (0, 0)))
    cols = []
    for di in range(k):
        for dj in range(k):
            cols.append(xp[:, di:di + Ho * stride:stride,
                           dj:dj + Wo * stride:stride, :])
    return jnp.concatenate(cols, axis=-1), Ho, Wo        # (bs, Ho, Wo, k*k*C)


def init_params(key, in_ch=IN_CH, c1=C1, c2=C2,
                num_anchors=NUM_ANCHORS, num_classes=NUM_CLASSES):
    k1, k2, k3 = jax.random.split(key, 3)
    head_ch = num_anchors * (5 + num_classes)
    params = {
        "w1": jax.random.normal(k1, (9 * in_ch, c1), jnp.float32) * 0.1,
        "b1": jnp.zeros((c1,), jnp.float32),
        "w2": jax.random.normal(k2, (9 * c1, c2), jnp.float32) * 0.1,
        "b2": jnp.zeros((c2,), jnp.float32),
        "w3": jax.random.normal(k3, (c2, head_ch), jnp.float32) * 0.1,
    }
    b3 = jnp.zeros((head_ch,), jnp.float32)
    # Nudge objectness / person-class biases so some detections clear conf_thres.
    a_idx = jnp.arange(num_anchors) * (5 + num_classes)
    b3 = b3.at[a_idx + 4].set(3.0)   # objectness
    b3 = b3.at[a_idx + 5].set(2.0)   # class 0 ("person")
    params["b3"] = b3
    return params


def rescale_and_enlarge(sel_rows, input_shapes, img_size, factor):
    """sel_rows: (bs, 8) numpy array; mirrors rescale_boxes + enlarge_boxes."""
    boxes_list = []
    for b, (orig_h, orig_w) in enumerate(input_shapes):
        if float(sel_rows[b, 7]) < 0.5:
            boxes_list.append(None)
            continue
        x1, y1, x2, y2 = (float(sel_rows[b, i]) for i in range(4))
        pad_x = max(orig_h - orig_w, 0) * (img_size / max(orig_h, orig_w))
        pad_y = max(orig_w - orig_h, 0) * (img_size / max(orig_h, orig_w))
        unpad_h = img_size - pad_y
        unpad_w = img_size - pad_x
        x1 = ((x1 - pad_x // 2) / unpad_w) * orig_w
        y1 = ((y1 - pad_y // 2) / unpad_h) * orig_h
        x2 = ((x2 - pad_x // 2) / unpad_w) * orig_w
        y2 = ((y2 - pad_y // 2) / unpad_h) * orig_h
        # enlarge_boxes
        w, h = x2 - x1, y2 - y1
        cx, cy = (x1 + x2) / 2.0, (y1 + y2) / 2.0
        half_w, half_h = w * factor / 2.0, h * factor / 2.0
        xx0 = int(max(0, cx - half_w))
        yy0 = int(max(0, cy - half_h))
        xx1 = int(min(orig_w, cx + half_w))
        yy1 = int(min(orig_h, cy + half_h))
        boxes_list.append((xx0, yy0, xx1, yy1))
    return boxes_list


# ----------------------------------------------------------------------------
# Full forward (detector) -- one fused pallas_call, jitted wrapper
# ----------------------------------------------------------------------------
def _detector_raw(params, input_imgs_nchw):
    """Returns (bs, 8) rows: [x1,y1,x2,y2,conf,cls_conf,cls_pred,valid] in net-input coords."""
    x = jnp.transpose(input_imgs_nchw, (0, 2, 3, 1)).astype(jnp.float32)   # NCHW -> NHWC
    bs = x.shape[0]

    # layer-1 im2col on the raw input (XLA glue, fused under jit)
    cols1, h1h, h1w = im2col(x, 3, 2)                                      # (bs,16,16,27)
    cols1t = jnp.transpose(cols1.reshape(bs, h1h * h1w, -1), (0, 2, 1))    # (bs,27,256)
    k1 = cols1t.shape[1]

    # weights reshaped to the "channels-on-sublanes" kernel layout
    w1t = params["w1"].T                                                   # (16, 27)
    b1c = params["b1"].reshape(-1, 1)                                      # (16, 1)
    w2t = jnp.transpose(params["w2"].reshape(N_TAPS, C1, C2), (0, 2, 1))   # (9, 32, 16)
    b2c = params["b2"].reshape(-1, 1)                                      # (32, 1)
    w3t = params["w3"].T                                                   # (27, 32)
    b3c = params["b3"].reshape(-1, 1)                                      # (27, 1)

    gt = jnp.asarray(GT_NP)                                                # (9, 256, 64)
    gxy = jnp.asarray(GXY_NP)                                              # (2, 64)

    stride = IMG_SIZE / H2
    kernel = functools.partial(_fused_detector_kernel,
                               stride=float(stride),
                               conf_thres=float(CONF_THRES),
                               anchors=ANCHORS,
                               n_taps=N_TAPS)

    sel = pl.pallas_call(
        kernel,
        out_shape=jax.ShapeDtypeStruct((bs, 8, 128), jnp.float32),
        grid=(bs,),
        in_specs=[
            pl.BlockSpec((1, k1, H1 * W1), lambda b: (b, 0, 0)),       # cols1t (per image)
            pl.BlockSpec((C1, k1), lambda b: (0, 0)),                  # w1t
            pl.BlockSpec((C1, 1), lambda b: (0, 0)),                   # b1
            pl.BlockSpec((N_TAPS, H1 * W1, H2 * W2), lambda b: (0, 0, 0)),  # GT
            pl.BlockSpec((N_TAPS, C2, C1), lambda b: (0, 0, 0)),       # w2t
            pl.BlockSpec((C2, 1), lambda b: (0, 0)),                   # b2
            pl.BlockSpec((HEAD_CH, C2), lambda b: (0, 0)),             # w3t
            pl.BlockSpec((HEAD_CH, 1), lambda b: (0, 0)),              # b3
            pl.BlockSpec((2, H2 * W2), lambda b: (0, 0)),              # grid_x / grid_y
        ],
        out_specs=pl.BlockSpec((1, 8, 128), lambda b: (b, 0, 0)),
        compiler_params=pltpu.CompilerParams(
            dimension_semantics=("parallel",)),   # v7x: 2 TCs each take an image
    )(cols1t, w1t, b1c, gt, w2t, b2c, w3t, b3c, gxy)

    return sel[:, :, 0]                                                # (bs, 8)


detector_raw = jax.jit(_detector_raw)


def detector_forward(params, input_imgs_nchw, input_shapes, factor=1.05):
    sel = detector_raw(params, input_imgs_nchw)
    sel = jax.block_until_ready(sel)
    return sel, rescale_and_enlarge(np.asarray(jax.device_get(sel)),
                                    input_shapes, IMG_SIZE, factor)


# ----------------------------------------------------------------------------
if __name__ == "__main__":
    key = jax.random.PRNGKey(0)
    pkey, xkey = jax.random.split(key)
    params = init_params(pkey)

    bs = 2
    # (bs, 3, H, W) in [0, 1], PyTorch NCHW convention
    input_imgs = jax.random.uniform(xkey, (bs, IN_CH, IMG_SIZE, IMG_SIZE),
                                    dtype=jnp.float32)
    input_shapes = [(48, 64), (64, 48)]           # (height, width) per image

    sel, boxes_list = detector_forward(params, input_imgs, input_shapes, factor=1.05)
    jax.block_until_ready(sel)
    assert sel.shape == (bs, 8)
    assert bool(jnp.all(jnp.isfinite(sel)))
    # boxes_list is a list of (x1, y1, x2, y2) tuples or None, like the PyTorch module.
    print("KERNEL_OK")
</pallas_src>

<mosaic_0001>
module attributes {stable_mosaic.version = 11 : i64} {
  func.func @_fused_detector_kernel(%arg0: i32, %arg1: memref<1x27x256xf32, #tpu.memory_space<vmem>>, %arg2: memref<16x27xf32, #tpu.memory_space<vmem>>, %arg3: memref<16x1xf32, #tpu.memory_space<vmem>>, %arg4: memref<9x256x64xf32, #tpu.memory_space<vmem>>, %arg5: memref<9x32x16xf32, #tpu.memory_space<vmem>>, %arg6: memref<32x1xf32, #tpu.memory_space<vmem>>, %arg7: memref<27x32xf32, #tpu.memory_space<vmem>>, %arg8: memref<27x1xf32, #tpu.memory_space<vmem>>, %arg9: memref<2x64xf32, #tpu.memory_space<vmem>>, %arg10: memref<1x8x128xf32, #tpu.memory_space<vmem>>) attributes {dimension_semantics = [#tpu.dimension_semantics<parallel>], iteration_bounds = array<i64: 2>, scalar_prefetch = 0 : i64, scratch_operands = 0 : i64, tpu.core_type = #tpu.core_type<tc>, window_params = [{transform_indices = @transform_0, window_bounds = array<i64: 1, 27, 256>}, {pipeline_mode = #tpu.pipeline_mode<synchronous>, transform_indices = @transform_1, window_bounds = array<i64: 16, 27>}, {pipeline_mode = #tpu.pipeline_mode<synchronous>, transform_indices = @transform_2, window_bounds = array<i64: 16, 1>}, {pipeline_mode = #tpu.pipeline_mode<synchronous>, transform_indices = @transform_3, window_bounds = array<i64: 9, 256, 64>}, {pipeline_mode = #tpu.pipeline_mode<synchronous>, transform_indices = @transform_4, window_bounds = array<i64: 9, 32, 16>}, {pipeline_mode = #tpu.pipeline_mode<synchronous>, transform_indices = @transform_5, window_bounds = array<i64: 32, 1>}, {pipeline_mode = #tpu.pipeline_mode<synchronous>, transform_indices = @transform_6, window_bounds = array<i64: 27, 32>}, {pipeline_mode = #tpu.pipeline_mode<synchronous>, transform_indices = @transform_7, window_bounds = array<i64: 27, 1>}, {pipeline_mode = #tpu.pipeline_mode<synchronous>, transform_indices = @transform_8, window_bounds = array<i64: 2, 64>}, {transform_indices = @transform_9, window_bounds = array<i64: 1, 8, 128>}]} {
    %c0 = arith.constant 0 : index
    %c0_0 = arith.constant 0 : index
    %c0_1 = arith.constant 0 : index
    %0 = vector.load %arg1[%c0, %c0_0, %c0_1] : memref<1x27x256xf32, #tpu.memory_space<vmem>>, vector<1x27x256xf32>
    %1 = vector.shape_cast %0 : vector<1x27x256xf32> to vector<27x256xf32>
    %c0_2 = arith.constant 0 : index
    %c0_3 = arith.constant 0 : index
    %2 = vector.load %arg2[%c0_2, %c0_3] : memref<16x27xf32, #tpu.memory_space<vmem>>, vector<16x27xf32>
    %cst = arith.constant dense<0.000000e+00> : vector<16x256xf32>
    %3 = tpu.matmul %2, %1, %cst {dimension_numbers = #tpu.dot_dimension_numbers<[1], [0], [0], [1], [0, 0, 1, 1], [], []>} : vector<16x27xf32>, vector<27x256xf32>, vector<16x256xf32> -> vector<16x256xf32>
    %c0_4 = arith.constant 0 : index
    %c0_5 = arith.constant 0 : index
    %4 = vector.load %arg3[%c0_4, %c0_5] : memref<16x1xf32, #tpu.memory_space<vmem>>, vector<16x1xf32>
    %5 = vector.broadcast %4 : vector<16x1xf32> to vector<16x256xf32>
    %6 = arith.addf %3, %5 : vector<16x256xf32>
    %cst_6 = arith.constant 0.000000e+00 : f32
    %7 = vector.broadcast %cst_6 : f32 to vector<16x256xf32>
    %8 = arith.cmpf ogt, %6, %7 : vector<16x256xf32>
    %cst_7 = arith.constant 1.000000e-01 : f32
    %9 = vector.broadcast %cst_7 : f32 to vector<16x256xf32>
    %10 = arith.mulf %9, %6 : vector<16x256xf32>
    %11 = arith.select %8, %6, %10 : vector<16x256xi1>, vector<16x256xf32>
    %cst_8 = arith.constant 0.000000e+00 : f32
    %12 = vector.broadcast %cst_8 : f32 to vector<32x64xf32>
    %c0_9 = arith.constant 0 : index
    %c0_10 = arith.constant 0 : index
    %c0_11 = arith.constant 0 : index
    %13 = vector.load %arg4[%c0_9, %c0_10, %c0_11] : memref<9x256x64xf32, #tpu.memory_space<vmem>>, vector<1x256x64xf32>
    %14 = vector.shape_cast %13 : vector<1x256x64xf32> to vector<256x64xf32>
    %cst_12 = arith.constant dense<0.000000e+00> : vector<16x64xf32>
    %15 = tpu.matmul %11, %14, %cst_12 {dimension_numbers = #tpu.dot_dimension_numbers<[1], [0], [0], [1], [0, 0, 1, 1], [], []>} : vector<16x256xf32>, vector<256x64xf32>, vector<16x64xf32> -> vector<16x64xf32>
    %c0_13 = arith.constant 0 : index
    %c0_14 = arith.constant 0 : index
    %c0_15 = arith.constant 0 : index
    %16 = vector.load %arg5[%c0_13, %c0_14, %c0_15] : memref<9x32x16xf32, #tpu.memory_space<vmem>>, vector<1x32x16xf32>
    %17 = vector.shape_cast %16 : vector<1x32x16xf32> to vector<32x16xf32>
    %cst_16 = arith.constant dense<0.000000e+00> : vector<32x64xf32>
    %18 = tpu.matmul %17, %15, %cst_16 {dimension_numbers = #tpu.dot_dimension_numbers<[1], [0], [0], [1], [0, 0, 1, 1], [], []>} : vector<32x16xf32>, vector<16x64xf32>, vector<32x64xf32> -> vector<32x64xf32>
    %19 = arith.addf %12, %18 : vector<32x64xf32>
    %c1 = arith.constant 1 : index
    %c0_17 = arith.constant 0 : index
    %c0_18 = arith.constant 0 : index
    %20 = vector.load %arg4[%c1, %c0_17, %c0_18] : memref<9x256x64xf32, #tpu.memory_space<vmem>>, vector<1x256x64xf32>
    %21 = vector.shape_cast %20 : vector<1x256x64xf32> to vector<256x64xf32>
    %cst_19 = arith.constant dense<0.000000e+00> : vector<16x64xf32>
    %22 = tpu.matmul %11, %21, %cst_19 {dimension_numbers = #tpu.dot_dimension_numbers<[1], [0], [0], [1], [0, 0, 1, 1], [], []>} : vector<16x256xf32>, vector<256x64xf32>, vector<16x64xf32> -> vector<16x64xf32>
    %c1_20 = arith.constant 1 : index
    %c0_21 = arith.constant 0 : index
    %c0_22 = arith.constant 0 : index
    %23 = vector.load %arg5[%c1_20, %c0_21, %c0_22] : memref<9x32x16xf32, #tpu.memory_space<vmem>>, vector<1x32x16xf32>
    %24 = vector.shape_cast %23 : vector<1x32x16xf32> to vector<32x16xf32>
    %cst_23 = arith.constant dense<0.000000e+00> : vector<32x64xf32>
    %25 = tpu.matmul %24, %22, %cst_23 {dimension_numbers = #tpu.dot_dimension_numbers<[1], [0], [0], [1], [0, 0, 1, 1], [], []>} : vector<32x16xf32>, vector<16x64xf32>, vector<32x64xf32> -> vector<32x64xf32>
    %26 = arith.addf %19, %25 : vector<32x64xf32>
    %c2 = arith.constant 2 : index
    %c0_24 = arith.constant 0 : index
    %c0_25 = arith.constant 0 : index
    %27 = vector.load %arg4[%c2, %c0_24, %c0_25] : memref<9x256x64xf32, #tpu.memory_space<vmem>>, vector<1x256x64xf32>
    %28 = vector.shape_cast %27 : vector<1x256x64xf32> to vector<256x64xf32>
    %cst_26 = arith.constant dense<0.000000e+00> : vector<16x64xf32>
    %29 = tpu.matmul %11, %28, %cst_26 {dimension_numbers = #tpu.dot_dimension_numbers<[1], [0], [0], [1], [0, 0, 1, 1], [], []>} : vector<16x256xf32>, vector<256x64xf32>, vector<16x64xf32> -> vector<16x64xf32>
    %c2_27 = arith.constant 2 : index
    %c0_28 = arith.constant 0 : index
    %c0_29 = arith.constant 0 : index
    %30 = vector.load %arg5[%c2_27, %c0_28, %c0_29] : memref<9x32x16xf32, #tpu.memory_space<vmem>>, vector<1x32x16xf32>
    %31 = vector.shape_cast %30 : vector<1x32x16xf32> to vector<32x16xf32>
    %cst_30 = arith.constant dense<0.000000e+00> : vector<32x64xf32>
    %32 = tpu.matmul %31, %29, %cst_30 {dimension_numbers = #tpu.dot_dimension_numbers<[1], [0], [0], [1], [0, 0, 1, 1], [], []>} : vector<32x16xf32>, vector<16x64xf32>, vector<32x64xf32> -> vector<32x64xf32>
    %33 = arith.addf %26, %32 : vector<32x64xf32>
    %c3 = arith.constant 3 : index
    %c0_31 = arith.constant 0 : index
    %c0_32 = arith.constant 0 : index
    %34 = vector.load %arg4[%c3, %c0_31, %c0_32] : memref<9x256x64xf32, #tpu.memory_space<vmem>>, vector<1x256x64xf32>
    %35 = vector.shape_cast %34 : vector<1x256x64xf32> to vector<256x64xf32>
    %cst_33 = arith.constant dense<0.000000e+00> : vector<16x64xf32>
    %36 = tpu.matmul %11, %35, %cst_33 {dimension_numbers = #tpu.dot_dimension_numbers<[1], [0], [0], [1], [0, 0, 1, 1], [], []>} : vector<16x256xf32>, vector<256x64xf32>, vector<16x64xf32> -> vector<16x64xf32>
    %c3_34 = arith.constant 3 : index
    %c0_35 = arith.constant 0 : index
    %c0_36 = arith.constant 0 : index
    %37 = vector.load %arg5[%c3_34, %c0_35, %c0_36] : memref<9x32x16xf32, #tpu.memory_space<vmem>>, vector<1x32x16xf32>
    %38 = vector.shape_cast %37 : vector<1x32x16xf32> to vector<32x16xf32>
    %cst_37 = arith.constant dense<0.000000e+00> : vector<32x64xf32>
    %39 = tpu.matmul %38, %36, %cst_37 {dimension_numbers = #tpu.dot_dimension_numbers<[1], [0], [0], [1], [0, 0, 1, 1], [], []>} : vector<32x16xf32>, vector<16x64xf32>, vector<32x64xf32> -> vector<32x64xf32>
    %40 = arith.addf %33, %39 : vector<32x64xf32>
    %c4 = arith.constant 4 : index
    %c0_38 = arith.constant 0 : index
    %c0_39 = arith.constant 0 : index
    %41 = vector.load %arg4[%c4, %c0_38, %c0_39] : memref<9x256x64xf32, #tpu.memory_space<vmem>>, vector<1x256x64xf32>
    %42 = vector.shape_cast %41 : vector<1x256x64xf32> to vector<256x64xf32>
    %cst_40 = arith.constant dense<0.000000e+00> : vector<16x64xf32>
    %43 = tpu.matmul %11, %42, %cst_40 {dimension_numbers = #tpu.dot_dimension_numbers<[1], [0], [0], [1], [0, 0, 1, 1], [], []>} : vector<16x256xf32>, vector<256x64xf32>, vector<16x64xf32> -> vector<16x64xf32>
    %c4_41 = arith.constant 4 : index
    %c0_42 = arith.constant 0 : index
    %c0_43 = arith.constant 0 : index
    %44 = vector.load %arg5[%c4_41, %c0_42, %c0_43] : memref<9x32x16xf32, #tpu.memory_space<vmem>>, vector<1x32x16xf32>
    %45 = vector.shape_cast %44 : vector<1x32x16xf32> to vector<32x16xf32>
    %cst_44 = arith.constant dense<0.000000e+00> : vector<32x64xf32>
    %46 = tpu.matmul %45, %43, %cst_44 {dimension_numbers = #tpu.dot_dimension_numbers<[1], [0], [0], [1], [0, 0, 1, 1], [], []>} : vector<32x16xf32>, vector<16x64xf32>, vector<32x64xf32> -> vector<32x64xf32>
    %47 = arith.addf %40, %46 : vector<32x64xf32>
    %c5 = arith.constant 5 : index
    %c0_45 = arith.constant 0 : index
    %c0_46 = arith.constant 0 : index
    %48 = vector.load %arg4[%c5, %c0_45, %c0_46] : memref<9x256x64xf32, #tpu.memory_space<vmem>>, vector<1x256x64xf32>
    %49 = vector.shape_cast %48 : vector<1x256x64xf32> to vector<256x64xf32>
    %cst_47 = arith.constant dense<0.000000e+00> : vector<16x64xf32>
    %50 = tpu.matmul %11, %49, %cst_47 {dimension_numbers = #tpu.dot_dimension_numbers<[1], [0], [0], [1], [0, 0, 1, 1], [], []>} : vector<16x256xf32>, vector<256x64xf32>, vector<16x64xf32> -> vector<16x64xf32>
    %c5_48 = arith.constant 5 : index
    %c0_49 = arith.constant 0 : index
    %c0_50 = arith.constant 0 : index
    %51 = vector.load %arg5[%c5_48, %c0_49, %c0_50] : memref<9x32x16xf32, #tpu.memory_space<vmem>>, vector<1x32x16xf32>
    %52 = vector.shape_cast %51 : vector<1x32x16xf32> to vector<32x16xf32>
    %cst_51 = arith.constant dense<0.000000e+00> : vector<32x64xf32>
    %53 = tpu.matmul %52, %50, %cst_51 {dimension_numbers = #tpu.dot_dimension_numbers<[1], [0], [0], [1], [0, 0, 1, 1], [], []>} : vector<32x16xf32>, vector<16x64xf32>, vector<32x64xf32> -> vector<32x64xf32>
    %54 = arith.addf %47, %53 : vector<32x64xf32>
    %c6 = arith.constant 6 : index
    %c0_52 = arith.constant 0 : index
    %c0_53 = arith.constant 0 : index
    %55 = vector.load %arg4[%c6, %c0_52, %c0_53] : memref<9x256x64xf32, #tpu.memory_space<vmem>>, vector<1x256x64xf32>
    %56 = vector.shape_cast %55 : vector<1x256x64xf32> to vector<256x64xf32>
    %cst_54 = arith.constant dense<0.000000e+00> : vector<16x64xf32>
    %57 = tpu.matmul %11, %56, %cst_54 {dimension_numbers = #tpu.dot_dimension_numbers<[1], [0], [0], [1], [0, 0, 1, 1], [], []>} : vector<16x256xf32>, vector<256x64xf32>, vector<16x64xf32> -> vector<16x64xf32>
    %c6_55 = arith.constant 6 : index
    %c0_56 = arith.constant 0 : index
    %c0_57 = arith.constant 0 : index
    %58 = vector.load %arg5[%c6_55, %c0_56, %c0_57] : memref<9x32x16xf32, #tpu.memory_space<vmem>>, vector<1x32x16xf32>
    %59 = vector.shape_cast %58 : vector<1x32x16xf32> to vector<32x16xf32>
    %cst_58 = arith.constant dense<0.000000e+00> : vector<32x64xf32>
    %60 = tpu.matmul %59, %57, %cst_58 {dimension_numbers = #tpu.dot_dimension_numbers<[1], [0], [0], [1], [0, 0, 1, 1], [], []>} : vector<32x16xf32>, vector<16x64xf32>, vector<32x64xf32> -> vector<32x64xf32>
    %61 = arith.addf %54, %60 : vector<32x64xf32>
    %c7 = arith.constant 7 : index
    %c0_59 = arith.constant 0 : index
    %c0_60 = arith.constant 0 : index
    %62 = vector.load %arg4[%c7, %c0_59, %c0_60] : memref<9x256x64xf32, #tpu.memory_space<vmem>>, vector<1x256x64xf32>
    %63 = vector.shape_cast %62 : vector<1x256x64xf32> to vector<256x64xf32>
    %cst_61 = arith.constant dense<0.000000e+00> : vector<16x64xf32>
    %64 = tpu.matmul %11, %63, %cst_61 {dimension_numbers = #tpu.dot_dimension_numbers<[1], [0], [0], [1], [0, 0, 1, 1], [], []>} : vector<16x256xf32>, vector<256x64xf32>, vector<16x64xf32> -> vector<16x64xf32>
    %c7_62 = arith.constant 7 : index
    %c0_63 = arith.constant 0 : index
    %c0_64 = arith.constant 0 : index
    %65 = vector.load %arg5[%c7_62, %c0_63, %c0_64] : memref<9x32x16xf32, #tpu.memory_space<vmem>>, vector<1x32x16xf32>
    %66 = vector.shape_cast %65 : vector<1x32x16xf32> to vector<32x16xf32>
    %cst_65 = arith.constant dense<0.000000e+00> : vector<32x64xf32>
    %67 = tpu.matmul %66, %64, %cst_65 {dimension_numbers = #tpu.dot_dimension_numbers<[1], [0], [0], [1], [0, 0, 1, 1], [], []>} : vector<32x16xf32>, vector<16x64xf32>, vector<32x64xf32> -> vector<32x64xf32>
    %68 = arith.addf %61, %67 : vector<32x64xf32>
    %c8 = arith.constant 8 : index
    %c0_66 = arith.constant 0 : index
    %c0_67 = arith.constant 0 : index
    %69 = vector.load %arg4[%c8, %c0_66, %c0_67] : memref<9x256x64xf32, #tpu.memory_space<vmem>>, vector<1x256x64xf32>
    %70 = vector.shape_cast %69 : vector<1x256x64xf32> to vector<256x64xf32>
    %cst_68 = arith.constant dense<0.000000e+00> : vector<16x64xf32>
    %71 = tpu.matmul %11, %70, %cst_68 {dimension_numbers = #tpu.dot_dimension_numbers<[1], [0], [0], [1], [0, 0, 1, 1], [], []>} : vector<16x256xf32>, vector<256x64xf32>, vector<16x64xf32> -> vector<16x64xf32>
    %c8_69 = arith.constant 8 : index
    %c0_70 = arith.constant 0 : index
    %c0_71 = arith.constant 0 : index
    %72 = vector.load %arg5[%c8_69, %c0_70, %c0_71] : memref<9x32x16xf32, #tpu.memory_space<vmem>>, vector<1x32x16xf32>
    %73 = vector.shape_cast %72 : vector<1x32x16xf32> to vector<32x16xf32>
    %cst_72 = arith.constant dense<0.000000e+00> : vector<32x64xf32>
    %74 = tpu.matmul %73, %71, %cst_72 {dimension_numbers = #tpu.dot_dimension_numbers<[1], [0], [0], [1], [0, 0, 1, 1], [], []>} : vector<32x16xf32>, vector<16x64xf32>, vector<32x64xf32> -> vector<32x64xf32>
    %75 = arith.addf %68, %74 : vector<32x64xf32>
    %c0_73 = arith.constant 0 : index
    %c0_74 = arith.constant 0 : index
    %76 = vector.load %arg6[%c0_73, %c0_74] : memref<32x1xf32, #tpu.memory_space<vmem>>, vector<32x1xf32>
    %77 = vector.broadcast %76 : vector<32x1xf32> to vector<32x64xf32>
    %78 = arith.addf %75, %77 : vector<32x64xf32>
    %cst_75 = arith.constant 0.000000e+00 : f32
    %79 = vector.broadcast %cst_75 : f32 to vector<32x64xf32>
    %80 = arith.cmpf ogt, %78, %79 : vector<32x64xf32>
    %cst_76 = arith.constant 1.000000e-01 : f32
    %81 = vector.broadcast %cst_76 : f32 to vector<32x64xf32>
    %82 = arith.mulf %81, %78 : vector<32x64xf32>
    %83 = arith.select %80, %78, %82 : vector<32x64xi1>, vector<32x64xf32>
    %c0_77 = arith.constant 0 : index
    %c0_78 = arith.constant 0 : index
    %84 = vector.load %arg7[%c0_77, %c0_78] : memref<27x32xf32, #tpu.memory_space<vmem>>, vector<27x32xf32>
    %cst_79 = arith.constant dense<0.000000e+00> : vector<27x64xf32>
    %85 = tpu.matmul %84, %83, %cst_79 {dimension_numbers = #tpu.dot_dimension_numbers<[1], [0], [0], [1], [0, 0, 1, 1], [], []>} : vector<27x32xf32>, vector<32x64xf32>, vector<27x64xf32> -> vector<27x64xf32>
    %c0_80 = arith.constant 0 : index
    %c0_81 = arith.constant 0 : index
    %86 = vector.load %arg8[%c0_80, %c0_81] : memref<27x1xf32, #tpu.memory_space<vmem>>, vector<27x1xf32>
    %87 = vector.broadcast %86 : vector<27x1xf32> to vector<27x64xf32>
    %88 = arith.addf %85, %87 : vector<27x64xf32>
    %c0_82 = arith.constant 0 : index
    %c0_83 = arith.constant 0 : index
    %89 = vector.load %arg9[%c0_82, %c0_83] : memref<2x64xf32, #tpu.memory_space<vmem>>, vector<1x64xf32>
    %c1_84 = arith.constant 1 : index
    %c0_85 = arith.constant 0 : index
    %90 = vector.load %arg9[%c1_84, %c0_85] : memref<2x64xf32, #tpu.memory_space<vmem>>, vector<1x64xf32>
    %91 = vector.extract_strided_slice %88 {offsets = [0, 0], sizes = [9, 64], strides = [1, 1]} : vector<27x64xf32> to vector<9x64xf32>
    %92 = vector.extract_strided_slice %91 {offsets = [0, 0], sizes = [1, 64], strides = [1, 1]} : vector<9x64xf32> to vector<1x64xf32>
    %93 = arith.negf %92 : vector<1x64xf32>
    %94 = math.exp %93 : vector<1x64xf32>
    %cst_86 = arith.constant 1.000000e+00 : f32
    %95 = vector.broadcast %cst_86 : f32 to vector<1x64xf32>
    %96 = arith.addf %95, %94 : vector<1x64xf32>
    %97 = arith.divf %95, %96 : vector<1x64xf32>
    %98 = arith.addf %97, %89 : vector<1x64xf32>
    %cst_87 = arith.constant 4.000000e+00 : f32
    %99 = vector.broadcast %cst_87 : f32 to vector<1x64xf32>
    %100 = arith.mulf %98, %99 : vector<1x64xf32>
    %101 = vector.extract_strided_slice %91 {offsets = [1, 0], sizes = [1, 64], strides = [1, 1]} : vector<9x64xf32> to vector<1x64xf32>
    %102 = arith.negf %101 : vector<1x64xf32>
    %103 = math.exp %102 : vector<1x64xf32>
    %cst_88 = arith.constant 1.000000e+00 : f32
    %104 = vector.broadcast %cst_88 : f32 to vector<1x64xf32>
    %105 = arith.addf %104, %103 : vector<1x64xf32>
    %106 = arith.divf %104, %105 : vector<1x64xf32>
    %107 = arith.addf %106, %90 : vector<1x64xf32>
    %cst_89 = arith.constant 4.000000e+00 : f32
    %108 = vector.broadcast %cst_89 : f32 to vector<1x64xf32>
    %109 = arith.mulf %107, %108 : vector<1x64xf32>
    %110 = vector.extract_strided_slice %91 {offsets = [2, 0], sizes = [1, 64], strides = [1, 1]} : vector<9x64xf32> to vector<1x64xf32>
    %cst_90 = arith.constant 1.500000e+01 : f32
    %111 = vector.broadcast %cst_90 : f32 to vector<1x64xf32>
    %112 = arith.minimumf %110, %111 : vector<1x64xf32>
    %113 = math.exp %112 : vector<1x64xf32>
    %cst_91 = arith.constant 4.000000e+00 : f32
    %114 = vector.broadcast %cst_91 : f32 to vector<1x64xf32>
    %115 = arith.mulf %113, %114 : vector<1x64xf32>
    %116 = vector.extract_strided_slice %91 {offsets = [3, 0], sizes = [1, 64], strides = [1, 1]} : vector<9x64xf32> to vector<1x64xf32>
    %cst_92 = arith.constant 1.500000e+01 : f32
    %117 = vector.broadcast %cst_92 : f32 to vector<1x64xf32>
    %118 = arith.minimumf %116, %117 : vector<1x64xf32>
    %119 = math.exp %118 : vector<1x64xf32>
    %cst_93 = arith.constant 6.000000e+00 : f32
    %120 = vector.broadcast %cst_93 : f32 to vector<1x64xf32>
    %121 = arith.mulf %119, %120 : vector<1x64xf32>
    %122 = vector.extract_strided_slice %91 {offsets = [4, 0], sizes = [1, 64], strides = [1, 1]} : vector<9x64xf32> to vector<1x64xf32>
    %123 = arith.negf %122 : vector<1x64xf32>
    %124 = math.exp %123 : vector<1x64xf32>
    %cst_94 = arith.constant 1.000000e+00 : f32
    %125 = vector.broadcast %cst_94 : f32 to vector<1x64xf32>
    %126 = arith.addf %125, %124 : vector<1x64xf32>
    %127 = arith.divf %125, %126 : vector<1x64xf32>
    %128 = vector.extract_strided_slice %91 {offsets = [5, 0], sizes = [4, 64], strides = [1, 1]} : vector<9x64xf32> to vector<4x64xf32>
    %129 = arith.negf %128 : vector<4x64xf32>
    %130 = math.exp %129 : vector<4x64xf32>
    %cst_95 = arith.constant 1.000000e+00 : f32
    %131 = vector.broadcast %cst_95 : f32 to vector<4x64xf32>
    %132 = arith.addf %131, %130 : vector<4x64xf32>
    %133 = arith.divf %131, %132 : vector<4x64xf32>
    %cst_96 = arith.constant dense<0xFF800000> : vector<64xf32>
    %134 = vector.multi_reduction <maximumf>, %133, %cst_96 [0] : vector<4x64xf32> to vector<64xf32>
    %135 = vector.shape_cast %134 : vector<64xf32> to vector<1x64xf32>
    %136 = vector.extract_strided_slice %133 {offsets = [0, 0], sizes = [1, 64], strides = [1, 1]} : vector<4x64xf32> to vector<1x64xf32>
    %137 = arith.cmpf oge, %136, %135 : vector<1x64xf32>
    %cst_97 = arith.constant 5.000000e-01 : f32
    %138 = vector.broadcast %cst_97 : f32 to vector<1x64xf32>
    %139 = arith.mulf %138, %115 : vector<1x64xf32>
    %140 = arith.subf %100, %139 : vector<1x64xf32>
    %cst_98 = arith.constant 5.000000e-01 : f32
    %141 = vector.broadcast %cst_98 : f32 to vector<1x64xf32>
    %142 = arith.mulf %141, %121 : vector<1x64xf32>
    %143 = arith.subf %109, %142 : vector<1x64xf32>
    %cst_99 = arith.constant 5.000000e-01 : f32
    %144 = vector.broadcast %cst_99 : f32 to vector<1x64xf32>
    %145 = arith.mulf %144, %115 : vector<1x64xf32>
    %146 = arith.addf %100, %145 : vector<1x64xf32>
    %cst_100 = arith.constant 5.000000e-01 : f32
    %147 = vector.broadcast %cst_100 : f32 to vector<1x64xf32>
    %148 = arith.mulf %147, %121 : vector<1x64xf32>
    %149 = arith.addf %109, %148 : vector<1x64xf32>
    %cst_101 = arith.constant 8.000000e-01 : f32
    %150 = vector.broadcast %cst_101 : f32 to vector<1x64xf32>
    %151 = arith.cmpf oge, %127, %150 : vector<1x64xf32>
    %152 = arith.andi %151, %137 : vector<1x64xi1>
    %153 = arith.mulf %115, %121 : vector<1x64xf32>
    %cst_102 = arith.constant -1.000000e+00 : f32
    %154 = vector.broadcast %cst_102 : f32 to vector<1x64xf32>
    %155 = arith.select %152, %153, %154 : vector<1x64xi1>, vector<1x64xf32>
    %156 = arith.extui %152 : vector<1x64xi1> to vector<1x64xi32>
    %157 = arith.sitofp %156 : vector<1x64xi32> to vector<1x64xf32>
    %158 = tpu.concatenate %140, %143, %146, %149, %127, %135 in 0 : vector<1x64xf32>, vector<1x64xf32>, vector<1x64xf32>, vector<1x64xf32>, vector<1x64xf32>, vector<1x64xf32> -> vector<6x64xf32>
    %159 = vector.extract_strided_slice %88 {offsets = [9, 0], sizes = [9, 64], strides = [1, 1]} : vector<27x64xf32> to vector<9x64xf32>
    %160 = vector.extract_strided_slice %159 {offsets = [0, 0], sizes = [1, 64], strides = [1, 1]} : vector<9x64xf32> to vector<1x64xf32>
    %161 = arith.negf %160 : vector<1x64xf32>
    %162 = math.exp %161 : vector<1x64xf32>
    %cst_103 = arith.constant 1.000000e+00 : f32
    %163 = vector.broadcast %cst_103 : f32 to vector<1x64xf32>
    %164 = arith.addf %163, %162 : vector<1x64xf32>
    %165 = arith.divf %163, %164 : vector<1x64xf32>
    %166 = arith.addf %165, %89 : vector<1x64xf32>
    %cst_104 = arith.constant 4.000000e+00 : f32
    %167 = vector.broadcast %cst_104 : f32 to vector<1x64xf32>
    %168 = arith.mulf %166, %167 : vector<1x64xf32>
    %169 = vector.extract_strided_slice %159 {offsets = [1, 0], sizes = [1, 64], strides = [1, 1]} : vector<9x64xf32> to vector<1x64xf32>
    %170 = arith.negf %169 : vector<1x64xf32>
    %171 = math.exp %170 : vector<1x64xf32>
    %cst_105 = arith.constant 1.000000e+00 : f32
    %172 = vector.broadcast %cst_105 : f32 to vector<1x64xf32>
    %173 = arith.addf %172, %171 : vector<1x64xf32>
    %174 = arith.divf %172, %173 : vector<1x64xf32>
    %175 = arith.addf %174, %90 : vector<1x64xf32>
    %cst_106 = arith.constant 4.000000e+00 : f32
    %176 = vector.broadcast %cst_106 : f32 to vector<1x64xf32>
    %177 = arith.mulf %175, %176 : vector<1x64xf32>
    %178 = vector.extract_strided_slice %159 {offsets = [2, 0], sizes = [1, 64], strides = [1, 1]} : vector<9x64xf32> to vector<1x64xf32>
    %cst_107 = arith.constant 1.500000e+01 : f32
    %179 = vector.broadcast %cst_107 : f32 to vector<1x64xf32>
    %180 = arith.minimumf %178, %179 : vector<1x64xf32>
    %181 = math.exp %180 : vector<1x64xf32>
    %cst_108 = arith.constant 8.000000e+00 : f32
    %182 = vector.broadcast %cst_108 : f32 to vector<1x64xf32>
    %183 = arith.mulf %181, %182 : vector<1x64xf32>
    %184 = vector.extract_strided_slice %159 {offsets = [3, 0], sizes = [1, 64], strides = [1, 1]} : vector<9x64xf32> to vector<1x64xf32>
    %cst_109 = arith.constant 1.500000e+01 : f32
    %185 = vector.broadcast %cst_109 : f32 to vector<1x64xf32>
    %186 = arith.minimumf %184, %185 : vector<1x64xf32>
    %187 = math.exp %186 : vector<1x64xf32>
    %cst_110 = arith.constant 1.000000e+01 : f32
    %188 = vector.broadcast %cst_110 : f32 to vector<1x64xf32>
    %189 = arith.mulf %187, %188 : vector<1x64xf32>
    %190 = vector.extract_strided_slice %159 {offsets = [4, 0], sizes = [1, 64], strides = [1, 1]} : vector<9x64xf32> to vector<1x64xf32>
    %191 = arith.negf %190 : vector<1x64xf32>
    %192 = math.exp %191 : vector<1x64xf32>
    %cst_111 = arith.constant 1.000000e+00 : f32
    %193 = vector.broadcast %cst_111 : f32 to vector<1x64xf32>
    %194 = arith.addf %193, %192 : vector<1x64xf32>
    %195 = arith.divf %193, %194 : vector<1x64xf32>
    %196 = vector.extract_strided_slice %159 {offsets = [5, 0], sizes = [4, 64], strides = [1, 1]} : vector<9x64xf32> to vector<4x64xf32>
    %197 = arith.negf %196 : vector<4x64xf32>
    %198 = math.exp %197 : vector<4x64xf32>
    %cst_112 = arith.constant 1.000000e+00 : f32
    %199 = vector.broadcast %cst_112 : f32 to vector<4x64xf32>
    %200 = arith.addf %199, %198 : vector<4x64xf32>
    %201 = arith.divf %199, %200 : vector<4x64xf32>
    %cst_113 = arith.constant dense<0xFF800000> : vector<64xf32>
    %202 = vector.multi_reduction <maximumf>, %201, %cst_113 [0] : vector<4x64xf32> to vector<64xf32>
    %203 = vector.shape_cast %202 : vector<64xf32> to vector<1x64xf32>
    %204 = vector.extract_strided_slice %201 {offsets = [0, 0], sizes = [1, 64], strides = [1, 1]} : vector<4x64xf32> to vector<1x64xf32>
    %205 = arith.cmpf oge, %204, %203 : vector<1x64xf32>
    %cst_114 = arith.constant 5.000000e-01 : f32
    %206 = vector.broadcast %cst_114 : f32 to vector<1x64xf32>
    %207 = arith.mulf %206, %183 : vector<1x64xf32>
    %208 = arith.subf %168, %207 : vector<1x64xf32>
    %cst_115 = arith.constant 5.000000e-01 : f32
    %209 = vector.broadcast %cst_115 : f32 to vector<1x64xf32>
    %210 = arith.mulf %209, %189 : vector<1x64xf32>
    %211 = arith.subf %177, %210 : vector<1x64xf32>
    %cst_116 = arith.constant 5.000000e-01 : f32
    %212 = vector.broadcast %cst_116 : f32 to vector<1x64xf32>
    %213 = arith.mulf %212, %183 : vector<1x64xf32>
    %214 = arith.addf %168, %213 : vector<1x64xf32>
    %cst_117 = arith.constant 5.000000e-01 : f32
    %215 = vector.broadcast %cst_117 : f32 to vector<1x64xf32>
    %216 = arith.mulf %215, %189 : vector<1x64xf32>
    %217 = arith.addf %177, %216 : vector<1x64xf32>
    %cst_118 = arith.constant 8.000000e-01 : f32
    %218 = vector.broadcast %cst_118 : f32 to vector<1x64xf32>
    %219 = arith.cmpf oge, %195, %218 : vector<1x64xf32>
    %220 = arith.andi %219, %205 : vector<1x64xi1>
    %221 = arith.mulf %183, %189 : vector<1x64xf32>
    %cst_119 = arith.constant -1.000000e+00 : f32
    %222 = vector.broadcast %cst_119 : f32 to vector<1x64xf32>
    %223 = arith.select %220, %221, %222 : vector<1x64xi1>, vector<1x64xf32>
    %224 = arith.extui %220 : vector<1x64xi1> to vector<1x64xi32>
    %225 = arith.sitofp %224 : vector<1x64xi32> to vector<1x64xf32>
    %226 = tpu.concatenate %208, %211, %214, %217, %195, %203 in 0 : vector<1x64xf32>, vector<1x64xf32>, vector<1x64xf32>, vector<1x64xf32>, vector<1x64xf32>, vector<1x64xf32> -> vector<6x64xf32>
    %227 = vector.extract_strided_slice %88 {offsets = [18, 0], sizes = [9, 64], strides = [1, 1]} : vector<27x64xf32> to vector<9x64xf32>
    %228 = vector.extract_strided_slice %227 {offsets = [0, 0], sizes = [1, 64], strides = [1, 1]} : vector<9x64xf32> to vector<1x64xf32>
    %229 = arith.negf %228 : vector<1x64xf32>
    %230 = math.exp %229 : vector<1x64xf32>
    %cst_120 = arith.constant 1.000000e+00 : f32
    %231 = vector.broadcast %cst_120 : f32 to vector<1x64xf32>
    %232 = arith.addf %231, %230 : vector<1x64xf32>
    %233 = arith.divf %231, %232 : vector<1x64xf32>
    %234 = arith.addf %233, %89 : vector<1x64xf32>
    %cst_121 = arith.constant 4.000000e+00 : f32
    %235 = vector.broadcast %cst_121 : f32 to vector<1x64xf32>
    %236 = arith.mulf %234, %235 : vector<1x64xf32>
    %237 = vector.extract_strided_slice %227 {offsets = [1, 0], sizes = [1, 64], strides = [1, 1]} : vector<9x64xf32> to vector<1x64xf32>
    %238 = arith.negf %237 : vector<1x64xf32>
    %239 = math.exp %238 : vector<1x64xf32>
    %cst_122 = arith.constant 1.000000e+00 : f32
    %240 = vector.broadcast %cst_122 : f32 to vector<1x64xf32>
    %241 = arith.addf %240, %239 : vector<1x64xf32>
    %242 = arith.divf %240, %241 : vector<1x64xf32>
    %243 = arith.addf %242, %90 : vector<1x64xf32>
    %cst_123 = arith.constant 4.000000e+00 : f32
    %244 = vector.broadcast %cst_123 : f32 to vector<1x64xf32>
    %245 = arith.mulf %243, %244 : vector<1x64xf32>
    %246 = vector.extract_strided_slice %227 {offsets = [2, 0], sizes = [1, 64], strides = [1, 1]} : vector<9x64xf32> to vector<1x64xf32>
    %cst_124 = arith.constant 1.500000e+01 : f32
    %247 = vector.broadcast %cst_124 : f32 to vector<1x64xf32>
    %248 = arith.minimumf %246, %247 : vector<1x64xf32>
    %249 = math.exp %248 : vector<1x64xf32>
    %cst_125 = arith.constant 1.300000e+01 : f32
    %250 = vector.broadcast %cst_125 : f32 to vector<1x64xf32>
    %251 = arith.mulf %249, %250 : vector<1x64xf32>
    %252 = vector.extract_strided_slice %227 {offsets = [3, 0], sizes = [1, 64], strides = [1, 1]} : vector<9x64xf32> to vector<1x64xf32>
    %cst_126 = arith.constant 1.500000e+01 : f32
    %253 = vector.broadcast %cst_126 : f32 to vector<1x64xf32>
    %254 = arith.minimumf %252, %253 : vector<1x64xf32>
    %255 = math.exp %254 : vector<1x64xf32>
    %cst_127 = arith.constant 1.600000e+01 : f32
    %256 = vector.broadcast %cst_127 : f32 to vector<1x64xf32>
    %257 = arith.mulf %255, %256 : vector<1x64xf32>
    %258 = vector.extract_strided_slice %227 {offsets = [4, 0], sizes = [1, 64], strides = [1, 1]} : vector<9x64xf32> to vector<1x64xf32>
    %259 = arith.negf %258 : vector<1x64xf32>
    %260 = math.exp %259 : vector<1x64xf32>
    %cst_128 = arith.constant 1.000000e+00 : f32
    %261 = vector.broadcast %cst_128 : f32 to vector<1x64xf32>
    %262 = arith.addf %261, %260 : vector<1x64xf32>
    %263 = arith.divf %261, %262 : vector<1x64xf32>
    %264 = vector.extract_strided_slice %227 {offsets = [5, 0], sizes = [4, 64], strides = [1, 1]} : vector<9x64xf32> to vector<4x64xf32>
    %265 = arith.negf %264 : vector<4x64xf32>
    %266 = math.exp %265 : vector<4x64xf32>
    %cst_129 = arith.constant 1.000000e+00 : f32
    %267 = vector.broadcast %cst_129 : f32 to vector<4x64xf32>
    %268 = arith.addf %267, %266 : vector<4x64xf32>
    %269 = arith.divf %267, %268 : vector<4x64xf32>
    %cst_130 = arith.constant dense<0xFF800000> : vector<64xf32>
    %270 = vector.multi_reduction <maximumf>, %269, %cst_130 [0] : vector<4x64xf32> to vector<64xf32>
    %271 = vector.shape_cast %270 : vector<64xf32> to vector<1x64xf32>
    %272 = vector.extract_strided_slice %269 {offsets = [0, 0], sizes = [1, 64], strides = [1, 1]} : vector<4x64xf32> to vector<1x64xf32>
    %273 = arith.cmpf oge, %272, %271 : vector<1x64xf32>
    %cst_131 = arith.constant 5.000000e-01 : f32
    %274 = vector.broadcast %cst_131 : f32 to vector<1x64xf32>
    %275 = arith.mulf %274, %251 : vector<1x64xf32>
    %276 = arith.subf %236, %275 : vector<1x64xf32>
    %cst_132 = arith.constant 5.000000e-01 : f32
    %277 = vector.broadcast %cst_132 : f32 to vector<1x64xf32>
    %278 = arith.mulf %277, %257 : vector<1x64xf32>
    %279 = arith.subf %245, %278 : vector<1x64xf32>
    %cst_133 = arith.constant 5.000000e-01 : f32
    %280 = vector.broadcast %cst_133 : f32 to vector<1x64xf32>
    %281 = arith.mulf %280, %251 : vector<1x64xf32>
    %282 = arith.addf %236, %281 : vector<1x64xf32>
    %cst_134 = arith.constant 5.000000e-01 : f32
    %283 = vector.broadcast %cst_134 : f32 to vector<1x64xf32>
    %284 = arith.mulf %283, %257 : vector<1x64xf32>
    %285 = arith.addf %245, %284 : vector<1x64xf32>
    %cst_135 = arith.constant 8.000000e-01 : f32
    %286 = vector.broadcast %cst_135 : f32 to vector<1x64xf32>
    %287 = arith.cmpf oge, %263, %286 : vector<1x64xf32>
    %288 = arith.andi %287, %273 : vector<1x64xi1>
    %289 = arith.mulf %251, %257 : vector<1x64xf32>
    %cst_136 = arith.constant -1.000000e+00 : f32
    %290 = vector.broadcast %cst_136 : f32 to vector<1x64xf32>
    %291 = arith.select %288, %289, %290 : vector<1x64xi1>, vector<1x64xf32>
    %292 = arith.extui %288 : vector<1x64xi1> to vector<1x64xi32>
    %293 = arith.sitofp %292 : vector<1x64xi32> to vector<1x64xf32>
    %294 = tpu.concatenate %276, %279, %282, %285, %263, %271 in 0 : vector<1x64xf32>, vector<1x64xf32>, vector<1x64xf32>, vector<1x64xf32>, vector<1x64xf32>, vector<1x64xf32> -> vector<6x64xf32>
    %295 = tpu.concatenate %155, %223, %291 in 0 : vector<1x64xf32>, vector<1x64xf32>, vector<1x64xf32> -> vector<3x64xf32>
    %296 = tpu.concatenate %157, %225, %293 in 0 : vector<1x64xf32>, vector<1x64xf32>, vector<1x64xf32> -> vector<3x64xf32>
    %297 = vector.shape_cast %295 : vector<3x64xf32> to vector<1x3x64xf32>
    %cst_137 = arith.constant dense<0xFF800000> : vector<1xf32>
    %298 = vector.multi_reduction <maximumf>, %297, %cst_137 [1, 2] : vector<1x3x64xf32> to vector<1xf32>
    %299 = vector.shape_cast %298 : vector<1xf32> to vector<1x1x1xf32>
    %300 = vector.extract %299[0, 0, 0] : f32 from vector<1x1x1xf32>
    %301 = tpu.iota {dimensions = array<i32: 0>} : vector<3x64xi32>
    %302 = tpu.iota {dimensions = array<i32: 1>} : vector<3x64xi32>
    %c64_i32 = arith.constant 64 : i32
    %303 = vector.broadcast %c64_i32 : i32 to vector<3x64xi32>
    %304 = arith.muli %301, %303 : vector<3x64xi32>
    %305 = arith.addi %304, %302 : vector<3x64xi32>
    %306 = vector.broadcast %300 : f32 to vector<3x64xf32>
    %307 = arith.cmpf oge, %295, %306 : vector<3x64xf32>
    %c192_i32 = arith.constant 192 : i32
    %308 = vector.broadcast %c192_i32 : i32 to vector<3x64xi32>
    %309 = arith.select %307, %305, %308 : vector<3x64xi1>, vector<3x64xi32>
    %310 = vector.shape_cast %309 : vector<3x64xi32> to vector<1x3x64xi32>
    %cst_138 = arith.constant dense<2147483647> : vector<1xi32>
    %311 = vector.multi_reduction <minsi>, %310, %cst_138 [1, 2] : vector<1x3x64xi32> to vector<1xi32>
    %312 = vector.shape_cast %311 : vector<1xi32> to vector<1x1x1xi32>
    %313 = vector.extract %312[0, 0, 0] : i32 from vector<1x1x1xi32>
    %314 = vector.broadcast %313 : i32 to vector<3x64xi32>
    %315 = arith.cmpi eq, %305, %314 : vector<3x64xi32>
    %316 = arith.extui %315 : vector<3x64xi1> to vector<3x64xi32>
    %317 = arith.sitofp %316 : vector<3x64xi32> to vector<3x64xf32>
    %318 = vector.shape_cast %296 : vector<3x64xf32> to vector<1x3x64xf32>
    %cst_139 = arith.constant dense<0xFF800000> : vector<1xf32>
    %319 = vector.multi_reduction <maximumf>, %318, %cst_139 [1, 2] : vector<1x3x64xf32> to vector<1xf32>
    %320 = vector.shape_cast %319 : vector<1xf32> to vector<1x1x1xf32>
    %321 = vector.extract %320[0, 0, 0] : f32 from vector<1x1x1xf32>
    %322 = vector.extract_strided_slice %317 {offsets = [0, 0], sizes = [1, 64], strides = [1, 1]} : vector<3x64xf32> to vector<1x64xf32>
    %323 = vector.broadcast %322 : vector<1x64xf32> to vector<6x64xf32>
    %324 = arith.mulf %158, %323 : vector<6x64xf32>
    %325 = vector.extract_strided_slice %317 {offsets = [1, 0], sizes = [1, 64], strides = [1, 1]} : vector<3x64xf32> to vector<1x64xf32>
    %326 = vector.broadcast %325 : vector<1x64xf32> to vector<6x64xf32>
    %327 = arith.mulf %226, %326 : vector<6x64xf32>
    %328 = arith.addf %324, %327 : vector<6x64xf32>
    %329 = vector.extract_strided_slice %317 {offsets = [2, 0], sizes = [1, 64], strides = [1, 1]} : vector<3x64xf32> to vector<1x64xf32>
    %330 = vector.broadcast %329 : vector<1x64xf32> to vector<6x64xf32>
    %331 = arith.mulf %294, %330 : vector<6x64xf32>
    %332 = arith.addf %328, %331 : vector<6x64xf32>
    %cst_140 = arith.constant dense<0.000000e+00> : vector<6xf32>
    %333 = vector.multi_reduction <add>, %332, %cst_140 [1] : vector<6x64xf32> to vector<6xf32>
    %334 = vector.shape_cast %333 : vector<6xf32> to vector<6x1xf32>
    %cst_141 = arith.constant 0.000000e+00 : f32
    %335 = vector.broadcast %cst_141 : f32 to vector<1x1xf32>
    %cst_142 = arith.constant 1.000000e+00 : f32
    %336 = vector.broadcast %cst_142 : f32 to vector<1x1xf32>
    %337 = vector.broadcast %321 : f32 to vector<1x1xf32>
    %338 = arith.mulf %336, %337 : vector<1x1xf32>
    %339 = tpu.concatenate %334, %335, %338 in 0 : vector<6x1xf32>, vector<1x1xf32>, vector<1x1xf32> -> vector<8x1xf32>
    %340 = vector.shape_cast %339 : vector<8x1xf32> to vector<8x1xf32>
    %341 = vector.broadcast %340 : vector<8x1xf32> to vector<8x128xf32>
    %c0_143 = arith.constant 0 : index
    %c0_144 = arith.constant 0 : index
    %c0_145 = arith.constant 0 : index
    %342 = vector.load %arg10[%c0_143, %c0_144, %c0_145] : memref<1x8x128xf32, #tpu.memory_space<vmem>>, vector<1x8x128xf32>
    %343 = vector.shape_cast %342 : vector<1x8x128xf32> to vector<8x128xf32>
    %344 = vector.shape_cast %341 : vector<8x128xf32> to vector<1x8x128xf32>
    tpu.vector_store %arg10[%c0_143, %c0_144, %c0_145], %344 {strides = array<i32>} : memref<1x8x128xf32, #tpu.memory_space<vmem>>, vector<1x8x128xf32>,
    return
  }
  func.func @transform_0(%arg0: i32) -> (i32, i32, i32) {
    %c0_i32 = arith.constant 0 : i32
    %c0_i32_0 = arith.constant 0 : i32
    %c0_i32_1 = arith.constant 0 : i32
    return %arg0, %c0_i32, %c0_i32_0 : i32, i32, i32
  }
  func.func @transform_1(%arg0: i32) -> (i32, i32) {
    %c0_i32 = arith.constant 0 : i32
    %c0_i32_0 = arith.constant 0 : i32
    %c0_i32_1 = arith.constant 0 : i32
    return %c0_i32, %c0_i32_0 : i32, i32
  }
  func.func @transform_2(%arg0: i32) -> (i32, i32) {
    %c0_i32 = arith.constant 0 : i32
    %c0_i32_0 = arith.constant 0 : i32
    %c0_i32_1 = arith.constant 0 : i32
    return %c0_i32, %c0_i32_0 : i32, i32
  }
  func.func @transform_3(%arg0: i32) -> (i32, i32, i32) {
    %c0_i32 = arith.constant 0 : i32
    %c0_i32_0 = arith.constant 0 : i32
    %c0_i32_1 = arith.constant 0 : i32
    %c0_i32_2 = arith.constant 0 : i32
    return %c0_i32, %c0_i32_0, %c0_i32_1 : i32, i32, i32
  }
  func.func @transform_4(%arg0: i32) -> (i32, i32, i32) {
    %c0_i32 = arith.constant 0 : i32
    %c0_i32_0 = arith.constant 0 : i32
    %c0_i32_1 = arith.constant 0 : i32
    %c0_i32_2 = arith.constant 0 : i32
    return %c0_i32, %c0_i32_0, %c0_i32_1 : i32, i32, i32
  }
  func.func @transform_5(%arg0: i32) -> (i32, i32) {
    %c0_i32 = arith.constant 0 : i32
    %c0_i32_0 = arith.constant 0 : i32
    %c0_i32_1 = arith.constant 0 : i32
    return %c0_i32, %c0_i32_0 : i32, i32
  }
  func.func @transform_6(%arg0: i32) -> (i32, i32) {
    %c0_i32 = arith.constant 0 : i32
    %c0_i32_0 = arith.constant 0 : i32
    %c0_i32_1 = arith.constant 0 : i32
    return %c0_i32, %c0_i32_0 : i32, i32
  }
  func.func @transform_7(%arg0: i32) -> (i32, i32) {
    %c0_i32 = arith.constant 0 : i32
    %c0_i32_0 = arith.constant 0 : i32
    %c0_i32_1 = arith.constant 0 : i32
    return %c0_i32, %c0_i32_0 : i32, i32
  }
  func.func @transform_8(%arg0: i32) -> (i32, i32) {
    %c0_i32 = arith.constant 0 : i32
    %c0_i32_0 = arith.constant 0 : i32
    %c0_i32_1 = arith.constant 0 : i32
    return %c0_i32, %c0_i32_0 : i32, i32
  }
  func.func @transform_9(%arg0: i32) -> (i32, i32, i32) {
    %c0_i32 = arith.constant 0 : i32
    %c0_i32_0 = arith.constant 0 : i32
    %c0_i32_1 = arith.constant 0 : i32
    return %arg0, %c0_i32, %c0_i32_0 : i32, i32, i32
  }
}

</mosaic_0001>

<llo_original>
// kernel: _detector_raw.1
$region0: #{_detector_raw.1}
  #allocation0 [shape = 'u32[]', space=smem, size = 0x4, offset = 0x4, fixed_abs, tag = 'smem constant byte address 0x4 - core index']
  #allocation1 [shape = 'u32[144,128]{1,0:T(1,128)}', space=vmem, size = 0x12000, scoped, tag = 'internal scratch']
  %s0 = inlined_call_operand.vmem [shape: f32[2,27,256], index: 0, kind: input, shape index: {}]
  %s1 = inlined_call_operand.vmem [shape: f32[16,27], index: 1, kind: input, shape index: {}]
  %s2 = inlined_call_operand.vmem [shape: f32[16,1], index: 2, kind: input, shape index: {}]
  %s3 = inlined_call_operand.vmem [shape: f32[9,256,64], index: 3, kind: input, shape index: {}]
  %s4 = inlined_call_operand.vmem [shape: f32[9,32,16], index: 4, kind: input, shape index: {}]
  %s5 = inlined_call_operand.vmem [shape: f32[32,1], index: 5, kind: input, shape index: {}]
  %s6 = inlined_call_operand.vmem [shape: f32[27,32], index: 6, kind: input, shape index: {}]
  %s7 = inlined_call_operand.vmem [shape: f32[27,1], index: 7, kind: input, shape index: {}]
  %s8 = inlined_call_operand.vmem [shape: f32[2,64], index: 8, kind: input, shape index: {}]
  %s9 = inlined_call_operand.vmem [shape: f32[2,8,128], index: 9, kind: output, shape index: {}]
  %s10 = sld [smem:[#allocation0]]
  $region69: #{_detector_raw.1} parent=0
    _
  %s12 = ssub.s32 1, %s10
  %s13 = scalar_select 0, %s12, %s10
  loop: start=0, step=1, limit=4
  $region2: #{_detector_raw.1} parent=0 // loop_pre_header
    _
  $region3: #{_detector_raw.1} parent=0 // loop_header
    %s15 = sphi 0, %s19
    %p16 = scmp.ge.s32.totalorder %s15, 4
    %s25 = sphi 0, %s27
    %s28 = sphi 0, %s25
    %s29 = sphi 0, %s28
    %s45 = sphi 0, %s29
    %s49 = sphi 0, %s49
    %s51 = sphi 0, %s49
    %s52 = sphi 0, %s51
    %s66 = sphi 0, %s52
    %s70 = sphi 0, %s70
    %s72 = sphi 0, %s70
    %s73 = sphi 0, %s72
    %s87 = sphi 0, %s73
    %s91 = sphi 0, %s91
    %s93 = sphi 0, %s91
    %s94 = sphi 0, %s93
    %s108 = sphi 0, %s94
    %s112 = sphi 0, %s112
    %s114 = sphi 0, %s112
    %s115 = sphi 0, %s114
    %s129 = sphi 0, %s115
    %s133 = sphi 0, %s133
    %s135 = sphi 0, %s133
    %s136 = sphi 0, %s135
    %s150 = sphi 0, %s136
    %s154 = sphi 0, %s154
    %s156 = sphi 0, %s154
    %s157 = sphi 0, %s156
    %s171 = sphi 0, %s157
    %s175 = sphi 0, %s175
    %s177 = sphi 0, %s175
    %s178 = sphi 0, %s177
    %s192 = sphi 0, %s178
    %s196 = sphi 0, %s196
    %s198 = sphi 0, %s196
    %s199 = sphi 0, %s198
    %s213 = sphi 0, %s199
    %s219 = sphi 0, %s221
    %s222 = sphi 0, %s219
    %s223 = sphi 0, %s222
    %s239 = sphi 0, %s223
  $region4: #{_detector_raw.1} parent=0 // loop_header_branch
    %18 = sbr.rel (%p16) target = $region8
  $region5: #{_detector_raw.1} parent=0 // loop_body
    %s20 = ssub.s32 %s15, 1
    %s21 = ssub.s32 %s15, 2
    %s22 = sadd.s32 %s15, 1
    %s23 = ssub.s32 %s15, %s22
    %p24 = scmp.eq.s32.totalorder %s23, 0
    %s26 = sadd.s32 %s25, 1
    %s27 = scalar_select %p24, %s25, %s26
    %p30 = pneg %p24
    %p31 = scmp.eq.s32.totalorder %s15, 1
    %p32 = por %p30, %p31
    %p33 = scmp.ne.s32.totalorder %s25, %s28
    %p34 = scmp.eq.s32.totalorder %s15, 0
    %p35 = por %p33, %p34
    %p36 = scmp.ne.s32.totalorder %s25, %s28
    %p37 = scmp.eq.s32.totalorder %s20, 1
    %p38 = por %p36, %p37
    %p39 = scmp.ne.s32.totalorder %s28, %s29
    %p40 = scmp.eq.s32.totalorder %s20, 0
    %p41 = por %p39, %p40
    %p42 = scmp.ne.s32.totalorder %s28, %s29
    %p43 = scmp.eq.s32.totalorder %s21, 1
    %p44 = por %p42, %p43
    %p46 = scmp.ne.s32.totalorder %s29, %s45
    %p47 = scmp.eq.s32.totalorder %s21, 0
    %p48 = por %p46, %p47
    %s50 = sadd.s32 %s49, 1
    %p53 = scmp.eq.s32.totalorder %s15, 1
    %p54 = scmp.ne.s32.totalorder %s49, %s51
    %p55 = scmp.eq.s32.totalorder %s15, 0
    %p56 = por %p54, %p55
    %p57 = scmp.ne.s32.totalorder %s49, %s51
    %p58 = scmp.eq.s32.totalorder %s20, 1
    %p59 = por %p57, %p58
    %p60 = scmp.ne.s32.totalorder %s51, %s52
    %p61 = scmp.eq.s32.totalorder %s20, 0
    %p62 = por %p60, %p61
    %p63 = scmp.ne.s32.totalorder %s51, %s52
    %p64 = scmp.eq.s32.totalorder %s21, 1
    %p65 = por %p63, %p64
    %p67 = scmp.ne.s32.totalorder %s52, %s66
    %p68 = scmp.eq.s32.totalorder %s21, 0
    %p69 = por %p67, %p68
    %s71 = sadd.s32 %s70, 1
    %p74 = scmp.eq.s32.totalorder %s15, 1
    %p75 = scmp.ne.s32.totalorder %s70, %s72
    %p76 = scmp.eq.s32.totalorder %s15, 0
    %p77 = por %p75, %p76
    %p78 = scmp.ne.s32.totalorder %s70, %s72
    %p79 = scmp.eq.s32.totalorder %s20, 1
    %p80 = por %p78, %p79
    %p81 = scmp.ne.s32.totalorder %s72, %s73
    %p82 = scmp.eq.s32.totalorder %s20, 0
    %p83 = por %p81, %p82
    %p84 = scmp.ne.s32.totalorder %s72, %s73
    %p85 = scmp.eq.s32.totalorder %s21, 1
    %p86 = por %p84, %p85
    %p88 = scmp.ne.s32.totalorder %s73, %s87
    %p89 = scmp.eq.s32.totalorder %s21, 0
    %p90 = por %p88, %p89
    %s92 = sadd.s32 %s91, 1
    %p95 = scmp.eq.s32.totalorder %s15, 1
    %p96 = scmp.ne.s32.totalorder %s91, %s93
    %p97 = scmp.eq.s32.totalorder %s15, 0
    %p98 = por %p96, %p97
    %p99 = scmp.ne.s32.totalorder %s91, %s93
    %p100 = scmp.eq.s32.totalorder %s20, 1
    %p101 = por %p99, %p100
    %p102 = scmp.ne.s32.totalorder %s93, %s94
    %p103 = scmp.eq.s32.totalorder %s20, 0
    %p104 = por %p102, %p103
    %p105 = scmp.ne.s32.totalorder %s93, %s94
    %p106 = scmp.eq.s32.totalorder %s21, 1
    %p107 = por %p105, %p106
    %p109 = scmp.ne.s32.totalorder %s94, %s108
    %p110 = scmp.eq.s32.totalorder %s21, 0
    %p111 = por %p109, %p110
    %s113 = sadd.s32 %s112, 1
    %p116 = scmp.eq.s32.totalorder %s15, 1
    %p117 = scmp.ne.s32.totalorder %s112, %s114
    %p118 = scmp.eq.s32.totalorder %s15, 0
    %p119 = por %p117, %p118
    %p120 = scmp.ne.s32.totalorder %s112, %s114
    %p121 = scmp.eq.s32.totalorder %s20, 1
    %p122 = por %p120, %p121
    %p123 = scmp.ne.s32.totalorder %s114, %s115
    %p124 = scmp.eq.s32.totalorder %s20, 0
    %p125 = por %p123, %p124
    %p126 = scmp.ne.s32.totalorder %s114, %s115
    %p127 = scmp.eq.s32.totalorder %s21, 1
    %p128 = por %p126, %p127
    %p130 = scmp.ne.s32.totalorder %s115, %s129
    %p131 = scmp.eq.s32.totalorder %s21, 0
    %p132 = por %p130, %p131
    %s134 = sadd.s32 %s133, 1
    %p137 = scmp.eq.s32.totalorder %s15, 1
    %p138 = scmp.ne.s32.totalorder %s133, %s135
    %p139 = scmp.eq.s32.totalorder %s15, 0
    %p140 = por %p138, %p139
    %p141 = scmp.ne.s32.totalorder %s133, %s135
    %p142 = scmp.eq.s32.totalorder %s20, 1
    %p143 = por %p141, %p142
    %p144 = scmp.ne.s32.totalorder %s135, %s136
    %p145 = scmp.eq.s32.totalorder %s20, 0
    %p146 = por %p144, %p145
    %p147 = scmp.ne.s32.totalorder %s135, %s136
    %p148 = scmp.eq.s32.totalorder %s21, 1
    %p149 = por %p147, %p148
    %p151 = scmp.ne.s32.totalorder %s136, %s150
    %p152 = scmp.eq.s32.totalorder %s21, 0
    %p153 = por %p151, %p152
    %s155 = sadd.s32 %s154, 1
    %p158 = scmp.eq.s32.totalorder %s15, 1
    %p159 = scmp.ne.s32.totalorder %s154, %s156
    %p160 = scmp.eq.s32.totalorder %s15, 0
    %p161 = por %p159, %p160
    %p162 = scmp.ne.s32.totalorder %s154, %s156
    %p163 = scmp.eq.s32.totalorder %s20, 1
    %p164 = por %p162, %p163
    %p165 = scmp.ne.s32.totalorder %s156, %s157
    %p166 = scmp.eq.s32.totalorder %s20, 0
    %p167 = por %p165, %p166
    %p168 = scmp.ne.s32.totalorder %s156, %s157
    %p169 = scmp.eq.s32.totalorder %s21, 1
    %p170 = por %p168, %p169
    %p172 = scmp.ne.s32.totalorder %s157, %s171
    %p173 = scmp.eq.s32.totalorder %s21, 0
    %p174 = por %p172, %p173
    %s176 = sadd.s32 %s175, 1
    %p179 = scmp.eq.s32.totalorder %s15, 1
    %p180 = scmp.ne.s32.totalorder %s175, %s177
    %p181 = scmp.eq.s32.totalorder %s15, 0
    %p182 = por %p180, %p181
    %p183 = scmp.ne.s32.totalorder %s175, %s177
    %p184 = scmp.eq.s32.totalorder %s20, 1
    %p185 = por %p183, %p184
    %p186 = scmp.ne.s32.totalorder %s177, %s178
    %p187 = scmp.eq.s32.totalorder %s20, 0
    %p188 = por %p186, %p187
    %p189 = scmp.ne.s32.totalorder %s177, %s178
    %p190 = scmp.eq.s32.totalorder %s21, 1
    %p191 = por %p189, %p190
    %p193 = scmp.ne.s32.totalorder %s178, %s192
    %p194 = scmp.eq.s32.totalorder %s21, 0
    %p195 = por %p193, %p194
    %s197 = sadd.s32 %s196, 1
    %p200 = scmp.eq.s32.totalorder %s15, 1
    %p201 = scmp.ne.s32.totalorder %s196, %s198
    %p202 = scmp.eq.s32.totalorder %s15, 0
    %p203 = por %p201, %p202
    %p204 = scmp.ne.s32.totalorder %s196, %s198
    %p205 = scmp.eq.s32.totalorder %s20, 1
    %p206 = por %p204, %p205
    %p207 = scmp.ne.s32.totalorder %s198, %s199
    %p208 = scmp.eq.s32.totalorder %s20, 0
    %p209 = por %p207, %p208
    %p210 = scmp.ne.s32.totalorder %s198, %s199
    %p211 = scmp.eq.s32.totalorder %s21, 1
    %p212 = por %p210, %p211
    %p214 = scmp.ne.s32.totalorder %s199, %s213
    %p215 = scmp.eq.s32.totalorder %s21, 0
    %p216 = por %p214, %p215
    %s217 = ssub.s32 %s15, %s22
    %p218 = scmp.eq.s32.totalorder %s217, 0
    %s220 = sadd.s32 %s219, 1
    %s221 = scalar_select %p218, %s219, %s220
    %p224 = pneg %p218
    %p225 = scmp.eq.s32.totalorder %s15, 1
    %p226 = por %p224, %p225
    %p227 = scmp.ne.s32.totalorder %s219, %s222
    %p228 = scmp.eq.s32.totalorder %s15, 0
    %p229 = por %p227, %p228
    %p230 = scmp.ne.s32.totalorder %s219, %s222
    %p231 = scmp.eq.s32.totalorder %s20, 1
    %p232 = por %p230, %p231
    %p233 = scmp.ne.s32.totalorder %s222, %s223
    %p234 = scmp.eq.s32.totalorder %s20, 0
    %p235 = por %p233, %p234
    %p236 = scmp.ne.s32.totalorder %s222, %s223
    %p237 = scmp.eq.s32.totalorder %s21, 1
    %p238 = por %p236, %p237
    %p240 = scmp.ne.s32.totalorder %s223, %s239
    %p241 = scmp.eq.s32.totalorder %s21, 0
    %p242 = por %p240, %p241
    %p243 = scmp.le.s32.totalorder 1, %s15
    %p244 = scmp.lt.s32.totalorder %s15, 3
    %p245 = pnand %p243, %p244
    %p246 = pneg %p245
    // Predicated region
    $region9: #{_detector_raw.1} parent=5 // pred_check
      _
    $region10: #{_detector_raw.1} parent=5 // pred_check_branch
      %248 = sbr.rel (%p245) target = $region12
    $region11: #{_detector_raw.1} parent=5 // pred_region
      %s249 = ssub.s32 %s15, 1
      // Predicated region
      $region13: #{_detector_raw.1} parent=11 // pred_check
        %p250 = pneg %p62
      $region14: #{_detector_raw.1} parent=11 // pred_check_branch
        %252 = sbr.rel (%p250) target = $region16
      $region15: #{_detector_raw.1} parent=11 // pred_region
        _
      $region16: #{_detector_raw.1} parent=11 // pred_fallthru
        _
      // Predicated region
      $region17: #{_detector_raw.1} parent=11 // pred_check
        %p253 = pneg %p83
      $region18: #{_detector_raw.1} parent=11 // pred_check_branch
        %255 = sbr.rel (%p253) target = $region20
      $region19: #{_detector_raw.1} parent=11 // pred_region
        _
      $region20: #{_detector_raw.1} parent=11 // pred_fallthru
        _
      // Predicated region
      $region21: #{_detector_raw.1} parent=11 // pred_check
        %p256 = pneg %p104
      $region22: #{_detector_raw.1} parent=11 // pred_check_branch
        %258 = sbr.rel (%p256) target = $region24
      $region23: #{_detector_raw.1} parent=11 // pred_region
        _
      $region24: #{_detector_raw.1} parent=11 // pred_fallthru
        _
      // Predicated region
      $region25: #{_detector_raw.1} parent=11 // pred_check
        %p259 = pneg %p125
      $region26: #{_detector_raw.1} parent=11 // pred_check_branch
        %261 = sbr.rel (%p259) target = $region28
      $region27: #{_detector_raw.1} parent=11 // pred_region
        _
      $region28: #{_detector_raw.1} parent=11 // pred_fallthru
        _
      // Predicated region
      $region29: #{_detector_raw.1} parent=11 // pred_check
        %p262 = pneg %p146
      $region30: #{_detector_raw.1} parent=11 // pred_check_branch
        %264 = sbr.rel (%p262) target = $region32
      $region31: #{_detector_raw.1} parent=11 // pred_region
        _
      $region32: #{_detector_raw.1} parent=11 // pred_fallthru
        _
      // Predicated region
      $region33: #{_detector_raw.1} parent=11 // pred_check
        %p265 = pneg %p167
      $region34: #{_detector_raw.1} parent=11 // pred_check_branch
        %267 = sbr.rel (%p265) target = $region36
      $region35: #{_detector_raw.1} parent=11 // pred_region
        _
      $region36: #{_detector_raw.1} parent=11 // pred_fallthru
        _
      // Predicated region
      $region37: #{_detector_raw.1} parent=11 // pred_check
        %p268 = pneg %p188
      $region38: #{_detector_raw.1} parent=11 // pred_check_branch
        %270 = sbr.rel (%p268) target = $region40
      $region39: #{_detector_raw.1} parent=11 // pred_region
        _
      $region40: #{_detector_raw.1} parent=11 // pred_fallthru
        _
      // Predicated region
      $region41: #{_detector_raw.1} parent=11 // pred_check
        %p271 = pneg %p209
      $region42: #{_detector_raw.1} parent=11 // pred_check_branch
        %273 = sbr.rel (%p271) target = $region44
      $region43: #{_detector_raw.1} parent=11 // pred_region
        _
      $region44: #{_detector_raw.1} parent=11 // pred_fallthru
        _
    $region12: #{_detector_raw.1} parent=5 // pred_fallthru
      _
    %p274 = scmp.lt.s32.totalorder %s15, 2
    // Predicated region
    $region45: #{_detector_raw.1} parent=5 // pred_check
      %p275 = pneg %p274
    $region46: #{_detector_raw.1} parent=5 // pred_check_branch
      %277 = sbr.rel (%p275) target = $region48
    $region47: #{_detector_raw.1} parent=5 // pred_region
      // Predicated region
      $region49: #{_detector_raw.1} parent=47 // pred_check
        %p278 = pneg %p35
      $region50: #{_detector_raw.1} parent=47 // pred_check_branch
        %280 = sbr.rel (%p278) target = $region52
      $region51: #{_detector_raw.1} parent=47 // pred_region
        %p281 = scmp.lt.s32.totalorder %s15, 1
        %s282 = scalar_select %p281, %s15, 1
        %s283 = smul.addr %s282, 8
        %s284 = smul.addr %s283, 8
        %s285 = scalar_lea.vmem %s0, %s284
      $region52: #{_detector_raw.1} parent=47 // pred_fallthru
        _
    $region48: #{_detector_raw.1} parent=5 // pred_fallthru
      _
    %p286 = scmp.le.s32.totalorder 1, %s15
    %p287 = scmp.lt.s32.totalorder %s15, 3
    %p288 = pnand %p286, %p287
    %p289 = pneg %p288
    // Predicated region
    $region53: #{_detector_raw.1} parent=5 // pred_check
      _
    $region54: #{_detector_raw.1} parent=5 // pred_check_branch
      %291 = sbr.rel (%p288) target = $region56
    $region55: #{_detector_raw.1} parent=5 // pred_region
      %s292 = ssub.s32 %s15, 1
      %p293 = scmp.lt.s32.totalorder %s20, 1
      %s294 = scalar_select %p293, %s20, 1
      %s295 = smul.addr %s294, 8
      %s296 = smul.addr %s295, 8
      %s297 = scalar_lea.vmem %s0, %s296
      %p298 = pneg %p41
      %p299 = pneg %p38
      %p300 = pneg %p62
      %p301 = pneg %p59
      %p302 = pneg %p83
      %p303 = pneg %p80
      %p304 = pneg %p104
      %p305 = pneg %p101
      %p306 = pneg %p125
      %p307 = pneg %p122
      %p308 = pneg %p146
      %p309 = pneg %p143
      %p310 = pneg %p167
      %p311 = pneg %p164
      %p312 = pneg %p188
      %p313 = pneg %p185
      %p314 = pneg %p209
      %p315 = pneg %p206
      %p316 = pneg %p235
      %p317 = pneg %p232
      %p318 = scmp.lt.s32.totalorder %s20, 1
      %s319 = scalar_select %p318, %s20, 1
      %s320 = smul.addr %s319, 8
      %s321 = scalar_lea.vmem %s9, %s320
      %p322 = scmp.lt.s32.totalorder %s20, 1
      %s323 = scalar_select %p322, %s20, 1
      %s324 = smul.addr %s323, 8
      %s325 = smul.addr %s324, 8
      %s326 = scalar_lea.vmem %s0, %s325
      %p327 = scmp.lt.s32.totalorder %s20, 1
      %s328 = scalar_select %p327, %s20, 1
      %s329 = smul.addr %s328, 8
      %s330 = scalar_lea.vmem %s9, %s329
      %v331 = vld [vmem:[%s326] sm:$0xff]
      %v332 = vld [vmem:[%s326 + $0x8] sm:$0xff]
      %v333 = vld [vmem:[%s326 + $0x10] sm:$0xff]
      %v334 = vld [vmem:[%s326 + $0x18] sm:$0xff]
      %v335 = vld [vmem:[%s326 + $0x20] sm:$0xff]
      %v336 = vld [vmem:[%s326 + $0x28] sm:$0xff]
      %v337 = vld [vmem:[%s326 + $0x30] sm:$0x7]
      %v338 = vld [vmem:[%s326 + $0x38] sm:$0x7]
      %v339 = vld [vmem:[%s1] sm:$0xff]
      %v340 = vld [vmem:[%s1 + $0x8] sm:$0xff]
      %v341 = vld [vmem:[%s2] sm:$0xff]
      %v342 = vld [vmem:[%s2 + $0x8] sm:$0xff]
      %344 = vset.pattern.permute.xlu0 0
      %345 = vperm.xlu0 %344, %v341
      %v346 = vpop.permute.xlu0 %345
      %349 = vset.pattern.permute.xlu0 0
      %350 = vperm.xlu0 %349, %v342
      %v351 = vpop.permute.xlu0 %350
      %vm353 = vcmask 220160
      %v355 = vsel %vm353, %v339, 0
      %v358 = vsel %vm353, %v340, 0
      %vm360 = vcmask 1042432
      %v362 = vsel %vm360, %v337, 0
      %v365 = vsel %vm360, %v338, 0
      %367 = vmatprep.subr.mxu0 0.0
      %368 = vmatpush1.msra.mxu0 0.0
      %369 = vmatprep.subr.mxu0 0.0
      %370 = vmatpush1.msra.mxu0 0.0
      %371 = vmatprep.subr.mxu0 0.0
      %372 = vmatpush1.msra.mxu0 0.0
      %373 = vmatprep.subr.mxu0 0.0
      %374 = vmatpush1.msra.mxu0 0.0
      %375 = vmatprep.subr.mxu0 0.0
      %376 = vmatpush1.msra.mxu0 0.0
      %377 = vmatprep.subr.mxu0 0.0
      %378 = vmatpush1.msra.mxu0 0.0
      %379 = vmatprep.subr.mxu0 0.0
      %380 = vmatpush1.msra.mxu0 0.0
      %381 = vmatprep.subr.mxu0 0.0
      %382 = vmatpush1.msra.mxu0 0.0
      %383 = vmatprep.subr.mxu0 0.0
      %384 = vmatpush1.msra.mxu0 0.0
      %385 = vmatprep.subr.mxu0 0.0
      %386 = vmatpush1.msra.mxu0 0.0
      %387 = vmatprep.subr.mxu0 0.0
      %388 = vmatpush1.msra.mxu0 0.0
      %389 = vmatprep.subr.mxu0 0.0
      %390 = vmatpush1.msra.mxu0 0.0
      %391 = vmatprep.subr.mxu0 %v365
      %392 = vmatpush1.msra.mxu0 %v362
      %393 = vmatprep.subr.mxu0 %v336
      %394 = vmatpush1.msra.mxu0 %v335
      %395 = vmatprep.subr.mxu0 %v334
      %396 = vmatpush1.msra.mxu0 %v333
      %397 = vmatprep.subr.mxu0 %v332
      %398 = vmatpush1.msra.mxu0 %v331
      %399 = vmatprep.subr.mxu0 0.0
      %400 = vmatpush2.msra.mxu0 0.0
      %401 = vmatprep.subr.mxu0 0.0
      %402 = vmatpush2.msra.mxu0 0.0
      %403 = vmatprep.subr.mxu0 0.0
      %404 = vmatpush2.msra.mxu0 0.0
      %405 = vmatprep.subr.mxu0 0.0
      %406 = vmatpush2.msra.mxu0 0.0
      %407 = vmatprep.subr.mxu0 0.0
      %408 = vmatpush2.msra.mxu0 0.0
      %409 = vmatprep.subr.mxu0 0.0
      %410 = vmatpush2.msra.mxu0 0.0
      %411 = vmatprep.subr.mxu0 0.0
      %412 = vmatpush2.msra.mxu0 0.0
      %413 = vmatprep.subr.mxu0 0.0
      %414 = vmatpush2.msra.mxu0 0.0
      %415 = vmatprep.subr.mxu0 0.0
      %416 = vmatpush2.msra.mxu0 0.0
      %417 = vmatprep.subr.mxu0 0.0
      %418 = vmatpush2.msra.mxu0 0.0
      %419 = vmatprep.subr.mxu0 0.0
      %420 = vmatpush2.msra.mxu0 0.0
      %421 = vmatprep.subr.mxu0 0.0
      %422 = vmatpush2.msra.mxu0 0.0
      %423 = vmatprep.subr.mxu0 0.0
      %424 = vmatpush2.msra.mxu0 0.0
      %425 = vmatprep.subr.mxu0 0.0
      %426 = vmatpush2.msra.mxu0 0.0
      %427 = vmatprep.subr.mxu0 0.0
      %428 = vmatpush2.msra.mxu0 0.0
      %429 = vmatprep.subr.mxu0 0.0
      %430 = vmatpush2.msra.mxu0 0.0
      %431 = vmatprep.mubr.f32.mxu0 0.0
      %432 = vmatmul.mubr.f32.gmra.mxu0 %v355
      %v433 = vpop.f32.mrf.mxu0
      %v434 = vadd.f32 %v346, %v433
      %v435 = vpop.f32.mrf.mxu0
      %v436 = vadd.f32 %v346, %v435
      %437 = vmatprep.mubr.f32.mxu0 0.0
      %438 = vmatmul.mubr.f32.gmra.mxu0 %v358
      %v439 = vpop.f32.mrf.mxu0
      %v440 = vadd.f32 %v351, %v439
      %v441 = vpop.f32.mrf.mxu0
      %v442 = vadd.f32 %v351, %v441
      %443 = vdwg.mxu0
      %vm444 = vcmp.gt.f32.partialorder %v434, 0.0
      %vm445 = vcmp.gt.f32.partialorder %v436, 0.0
      %vm446 = vcmp.gt.f32.partialorder %v440, 0.0
      %vm447 = vcmp.gt.f32.partialorder %v442, 0.0
      %v448 = vmul.f32 %v434, 0.1
      %v449 = vmul.f32 %v436, 0.1
      %v450 = vmul.f32 %v440, 0.1
      %v451 = vmul.f32 %v442, 0.1
      %v452 = vsel %vm444, %v434, %v448
      %v453 = vsel %vm445, %v436, %v449
      %v454 = vsel %vm446, %v440, %v450
      %v455 = vsel %vm447, %v442, %v451
      %v456 = vld [vmem:[%s3] sm:$0xff]
      %v457 = vld [vmem:[%s3 + $0x8] sm:$0xff]
      %v458 = vld [vmem:[%s3 + $0x10] sm:$0xff]
      %v459 = vld [vmem:[%s3 + $0x18] sm:$0xff]
      %v460 = vld [vmem:[%s3 + $0x20] sm:$0xff]
      %v461 = vld [vmem:[%s3 + $0x28] sm:$0xff]
      %v462 = vld [vmem:[%s3 + $0x30] sm:$0xff]
      %v463 = vld [vmem:[%s3 + $0x38] sm:$0xff]
      %v464 = vld [vmem:[%s3 + $0x40] sm:$0xff]
      %v465 = vld [vmem:[%s3 + $0x48] sm:$0xff]
      %v466 = vld [vmem:[%s3 + $0x50] sm:$0xff]
      %v467 = vld [vmem:[%s3 + $0x58] sm:$0xff]
      %v468 = vld [vmem:[%s3 + $0x60] sm:$0xff]
      %v469 = vld [vmem:[%s3 + $0x68] sm:$0xff]
      %v470 = vld [vmem:[%s3 + $0x70] sm:$0xff]
      %v471 = vld [vmem:[%s3 + $0x78] sm:$0xff]
      %v472 = vld [vmem:[%s3 + $0x80] sm:$0xff]
      %v473 = vld [vmem:[%s3 + $0x88] sm:$0xff]
      %v474 = vld [vmem:[%s3 + $0x90] sm:$0xff]
      %v475 = vld [vmem:[%s3 + $0x98] sm:$0xff]
      %v476 = vld [vmem:[%s3 + $0xa0] sm:$0xff]
      %v477 = vld [vmem:[%s3 + $0xa8] sm:$0xff]
      %v478 = vld [vmem:[%s3 + $0xb0] sm:$0xff]
      %v479 = vld [vmem:[%s3 + $0xb8] sm:$0xff]
      %v480 = vld [vmem:[%s3 + $0xc0] sm:$0xff]
      %v481 = vld [vmem:[%s3 + $0xc8] sm:$0xff]
      %v482 = vld [vmem:[%s3 + $0xd0] sm:$0xff]
      %v483 = vld [vmem:[%s3 + $0xd8] sm:$0xff]
      %v484 = vld [vmem:[%s3 + $0xe0] sm:$0xff]
      %v485 = vld [vmem:[%s3 + $0xe8] sm:$0xff]
      %v486 = vld [vmem:[%s3 + $0xf0] sm:$0xff]
      %v487 = vld [vmem:[%s3 + $0xf8] sm:$0xff]
      %488 = vmatprep.subr.mxu0 0.0
      %489 = vmatpush1.msra.mxu0 %v471
      %490 = vmatprep.subr.mxu0 0.0
      %491 = vmatpush1.msra.mxu0 %v470
      %492 = vmatprep.subr.mxu0 0.0
      %493 = vmatpush1.msra.mxu0 %v469
      %494 = vmatprep.subr.mxu0 0.0
      %495 = vmatpush1.msra.mxu0 %v468
      %496 = vmatprep.subr.mxu0 0.0
      %497 = vmatpush1.msra.mxu0 %v467
      %498 = vmatprep.subr.mxu0 0.0
      %499 = vmatpush1.msra.mxu0 %v466
      %500 = vmatprep.subr.mxu0 0.0
      %501 = vmatpush1.msra.mxu0 %v465
      %502 = vmatprep.subr.mxu0 0.0
      %503 = vmatpush1.msra.mxu0 %v464
      %504 = vmatprep.subr.mxu0 0.0
      %505 = vmatpush1.msra.mxu0 %v463
      %506 = vmatprep.subr.mxu0 0.0
      %507 = vmatpush1.msra.mxu0 %v462
      %508 = vmatprep.subr.mxu0 0.0
      %509 = vmatpush1.msra.mxu0 %v461
      %510 = vmatprep.subr.mxu0 0.0
      %511 = vmatpush1.msra.mxu0 %v460
      %512 = vmatprep.subr.mxu0 0.0
      %513 = vmatpush1.msra.mxu0 %v459
      %514 = vmatprep.subr.mxu0 0.0
      %515 = vmatpush1.msra.mxu0 %v458
      %516 = vmatprep.subr.mxu0 0.0
      %517 = vmatpush1.msra.mxu0 %v457
      %518 = vmatprep.subr.mxu0 0.0
      %519 = vmatpush1.msra.mxu0 %v456
      %520 = vmatprep.subr.mxu0 0.0
      %521 = vmatpush2.msra.mxu0 %v487
      %522 = vmatprep.subr.mxu0 0.0
      %523 = vmatpush2.msra.mxu0 %v486
      %524 = vmatprep.subr.mxu0 0.0
      %525 = vmatpush2.msra.mxu0 %v485
      %526 = vmatprep.subr.mxu0 0.0
      %527 = vmatpush2.msra.mxu0 %v484
      %528 = vmatprep.subr.mxu0 0.0
      %529 = vmatpush2.msra.mxu0 %v483
      %530 = vmatprep.subr.mxu0 0.0
      %531 = vmatpush2.msra.mxu0 %v482
      %532 = vmatprep.subr.mxu0 0.0
      %533 = vmatpush2.msra.mxu0 %v481
      %534 = vmatprep.subr.mxu0 0.0
      %535 = vmatpush2.msra.mxu0 %v480
      %536 = vmatprep.subr.mxu0 0.0
      %537 = vmatpush2.msra.mxu0 %v479
      %538 = vmatprep.subr.mxu0 0.0
      %539 = vmatpush2.msra.mxu0 %v478
      %540 = vmatprep.subr.mxu0 0.0
      %541 = vmatpush2.msra.mxu0 %v477
      %542 = vmatprep.subr.mxu0 0.0
      %543 = vmatpush2.msra.mxu0 %v476
      %544 = vmatprep.subr.mxu0 0.0
      %545 = vmatpush2.msra.mxu0 %v475
      %546 = vmatprep.subr.mxu0 0.0
      %547 = vmatpush2.msra.mxu0 %v474
      %548 = vmatprep.subr.mxu0 0.0
      %549 = vmatpush2.msra.mxu0 %v473
      %550 = vmatprep.subr.mxu0 0.0
      %551 = vmatpush2.msra.mxu0 %v472
      %552 = vmatprep.mubr.f32.mxu0 %v453
      %553 = vmatmul.mubr.f32.gmra.mxu0 %v452
      %v554 = vpop.f32.mrf.mxu0
      %v555 = vadd.f32 0.0, %v554
      %v556 = vpop.f32.mrf.mxu0
      %557 = vmatprep.mubr.f32.mxu0 %v455
      %558 = vmatmul.mubr.f32.gmra.mxu0 %v454
      %v559 = vpop.f32.mrf.mxu0
      %v560 = vadd.f32 0.0, %v559
      %v561 = vpop.f32.mrf.mxu0
      %562 = vdwg.mxu0
      %v563 = vld [vmem:[%s4] sm:$0xff]
      %v564 = vld [vmem:[%s4 + $0x8] sm:$0xff]
      %v565 = vld [vmem:[%s4 + $0x10] sm:$0xff]
      %v566 = vld [vmem:[%s4 + $0x18] sm:$0xff]
      %s567 = scalar_lea.vmem %s3, 256
      %v568 = vld [vmem:[%s567] sm:$0xff]
      %v569 = vld [vmem:[%s567 + $0x8] sm:$0xff]
      %v570 = vld [vmem:[%s567 + $0x10] sm:$0xff]
      %v571 = vld [vmem:[%s567 + $0x18] sm:$0xff]
      %v572 = vld [vmem:[%s567 + $0x20] sm:$0xff]
      %v573 = vld [vmem:[%s567 + $0x28] sm:$0xff]
      %v574 = vld [vmem:[%s567 + $0x30] sm:$0xff]
      %v575 = vld [vmem:[%s567 + $0x38] sm:$0xff]
      %v576 = vld [vmem:[%s567 + $0x40] sm:$0xff]
      %v577 = vld [vmem:[%s567 + $0x48] sm:$0xff]
      %v578 = vld [vmem:[%s567 + $0x50] sm:$0xff]
      %v579 = vld [vmem:[%s567 + $0x58] sm:$0xff]
      %v580 = vld [vmem:[%s567 + $0x60] sm:$0xff]
      %v581 = vld [vmem:[%s567 + $0x68] sm:$0xff]
      %v582 = vld [vmem:[%s567 + $0x70] sm:$0xff]
      %v583 = vld [vmem:[%s567 + $0x78] sm:$0xff]
      %v584 = vld [vmem:[%s567 + $0x80] sm:$0xff]
      %v585 = vld [vmem:[%s567 + $0x88] sm:$0xff]
      %v586 = vld [vmem:[%s567 + $0x90] sm:$0xff]
      %v587 = vld [vmem:[%s567 + $0x98] sm:$0xff]
      %v588 = vld [vmem:[%s567 + $0xa0] sm:$0xff]
      %v589 = vld [vmem:[%s567 + $0xa8] sm:$0xff]
      %v590 = vld [vmem:[%s567 + $0xb0] sm:$0xff]
      %v591 = vld [vmem:[%s567 + $0xb8] sm:$0xff]
      %v592 = vld [vmem:[%s567 + $0xc0] sm:$0xff]
      %v593 = vld [vmem:[%s567 + $0xc8] sm:$0xff]
      %v594 = vld [vmem:[%s567 + $0xd0] sm:$0xff]
      %v595 = vld [vmem:[%s567 + $0xd8] sm:$0xff]
      %v596 = vld [vmem:[%s567 + $0xe0] sm:$0xff]
      %v597 = vld [vmem:[%s567 + $0xe8] sm:$0xff]
      %v598 = vld [vmem:[%s567 + $0xf0] sm:$0xff]
      %v599 = vld [vmem:[%s567 + $0xf8] sm:$0xff]
      %600 = vmatprep.subr.mxu0 0.0
      %601 = vmatpush1.msra.mxu0 %v583
      %602 = vmatprep.subr.mxu0 0.0
      %603 = vmatpush1.msra.mxu0 %v582
      %604 = vmatprep.subr.mxu0 0.0
      %605 = vmatpush1.msra.mxu0 %v581
      %606 = vmatprep.subr.mxu0 0.0
      %607 = vmatpush1.msra.mxu0 %v580
      %608 = vmatprep.subr.mxu0 0.0
      %609 = vmatpush1.msra.mxu0 %v579
      %610 = vmatprep.subr.mxu0 0.0
      %611 = vmatpush1.msra.mxu0 %v578
      %612 = vmatprep.subr.mxu0 0.0
      %613 = vmatpush1.msra.mxu0 %v577
      %614 = vmatprep.subr.mxu0 0.0
      %615 = vmatpush1.msra.mxu0 %v576
      %616 = vmatprep.subr.mxu0 0.0
      %617 = vmatpush1.msra.mxu0 %v575
      %618 = vmatprep.subr.mxu0 0.0
      %619 = vmatpush1.msra.mxu0 %v574
      %620 = vmatprep.subr.mxu0 0.0
      %621 = vmatpush1.msra.mxu0 %v573
      %622 = vmatprep.subr.mxu0 0.0
      %623 = vmatpush1.msra.mxu0 %v572
      %624 = vmatprep.subr.mxu0 0.0
      %625 = vmatpush1.msra.mxu0 %v571
      %626 = vmatprep.subr.mxu0 0.0
      %627 = vmatpush1.msra.mxu0 %v570
      %628 = vmatprep.subr.mxu0 0.0
      %629 = vmatpush1.msra.mxu0 %v569
      %630 = vmatprep.subr.mxu0 0.0
      %631 = vmatpush1.msra.mxu0 %v568
      %632 = vmatprep.subr.mxu0 0.0
      %633 = vmatpush2.msra.mxu0 %v599
      %634 = vmatprep.subr.mxu0 0.0
      %635 = vmatpush2.msra.mxu0 %v598
      %636 = vmatprep.subr.mxu0 0.0
      %637 = vmatpush2.msra.mxu0 %v597
      %638 = vmatprep.subr.mxu0 0.0
      %639 = vmatpush2.msra.mxu0 %v596
      %640 = vmatprep.subr.mxu0 0.0
      %641 = vmatpush2.msra.mxu0 %v595
      %642 = vmatprep.subr.mxu0 0.0
      %643 = vmatpush2.msra.mxu0 %v594
      %644 = vmatprep.subr.mxu0 0.0
      %645 = vmatpush2.msra.mxu0 %v593
      %646 = vmatprep.subr.mxu0 0.0
      %647 = vmatpush2.msra.mxu0 %v592
      %648 = vmatprep.subr.mxu0 0.0
      %649 = vmatpush2.msra.mxu0 %v591
      %650 = vmatprep.subr.mxu0 0.0
      %651 = vmatpush2.msra.mxu0 %v590
      %652 = vmatprep.subr.mxu0 0.0
      %653 = vmatpush2.msra.mxu0 %v589
      %654 = vmatprep.subr.mxu0 0.0
      %655 = vmatpush2.msra.mxu0 %v588
      %656 = vmatprep.subr.mxu0 0.0
      %657 = vmatpush2.msra.mxu0 %v587
      %658 = vmatprep.subr.mxu0 0.0
      %659 = vmatpush2.msra.mxu0 %v586
      %660 = vmatprep.subr.mxu0 0.0
      %661 = vmatpush2.msra.mxu0 %v585
      %662 = vmatprep.subr.mxu0 0.0
      %663 = vmatpush2.msra.mxu0 %v584
      %664 = vmatprep.mubr.f32.mxu0 %v453
      %665 = vmatmul.mubr.f32.gmra.mxu0 %v452
      %v666 = vpop.f32.mrf.mxu0
      %v667 = vadd.f32 0.0, %v666
      %v668 = vpop.f32.mrf.mxu0
      %669 = vmatprep.mubr.f32.mxu0 %v455
      %670 = vmatmul.mubr.f32.gmra.mxu0 %v454
      %v671 = vpop.f32.mrf.mxu0
      %v672 = vadd.f32 0.0, %v671
      %v673 = vpop.f32.mrf.mxu0
      %674 = vdwg.mxu0
      %s675 = scalar_lea.vmem %s4, 32
      %v676 = vld [vmem:[%s675] sm:$0xff]
      %v677 = vld [vmem:[%s675 + $0x8] sm:$0xff]
      %v678 = vld [vmem:[%s675 + $0x10] sm:$0xff]
      %v679 = vld [vmem:[%s675 + $0x18] sm:$0xff]
      %vm680 = vcmask 130048
      %v682 = vsel %vm680, %v676, 0
      %v685 = vsel %vm680, %v677, 0
      %v688 = vsel %vm680, %v678, 0
      %v691 = vsel %vm680, %v679, 0
      %693 = vmatprep.subr.mxu0 0.0
      %694 = vmatpush1.msra.mxu0 0.0
      %695 = vmatprep.subr.mxu0 0.0
      %696 = vmatpush1.msra.mxu0 0.0
      %697 = vmatprep.subr.mxu0 0.0
      %698 = vmatpush1.msra.mxu0 0.0
      %699 = vmatprep.subr.mxu0 0.0
      %700 = vmatpush1.msra.mxu0 0.0
      %701 = vmatprep.subr.mxu0 0.0
      %702 = vmatpush1.msra.mxu0 0.0
      %703 = vmatprep.subr.mxu0 0.0
      %704 = vmatpush1.msra.mxu0 0.0
      %705 = vmatprep.subr.mxu0 0.0
      %706 = vmatpush1.msra.mxu0 0.0
      %707 = vmatprep.subr.mxu0 0.0
      %708 = vmatpush1.msra.mxu0 0.0
      %709 = vmatprep.subr.mxu0 0.0
      %710 = vmatpush1.msra.mxu0 0.0
      %711 = vmatprep.subr.mxu0 0.0
      %712 = vmatpush1.msra.mxu0 0.0
      %713 = vmatprep.subr.mxu0 0.0
      %714 = vmatpush1.msra.mxu0 0.0
      %715 = vmatprep.subr.mxu0 0.0
      %716 = vmatpush1.msra.mxu0 0.0
      %717 = vmatprep.subr.mxu0 0.0
      %718 = vmatpush1.msra.mxu0 0.0
      %719 = vmatprep.subr.mxu0 0.0
      %720 = vmatpush1.msra.mxu0 0.0
      %721 = vmatprep.subr.mxu0 0.0
      %722 = vmatpush1.msra.mxu0 %v672
      %723 = vmatprep.subr.mxu0 0.0
      %724 = vmatpush1.msra.mxu0 %v667
      %725 = vmatprep.subr.mxu0 0.0
      %726 = vmatpush2.msra.mxu0 0.0
      %727 = vmatprep.subr.mxu0 0.0
      %728 = vmatpush2.msra.mxu0 0.0
      %729 = vmatprep.subr.mxu0 0.0
      %730 = vmatpush2.msra.mxu0 0.0
      %731 = vmatprep.subr.mxu0 0.0
      %732 = vmatpush2.msra.mxu0 0.0
      %733 = vmatprep.subr.mxu0 0.0
      %734 = vmatpush2.msra.mxu0 0.0
      %735 = vmatprep.subr.mxu0 0.0
      %736 = vmatpush2.msra.mxu0 0.0
      %737 = vmatprep.subr.mxu0 0.0
      %738 = vmatpush2.msra.mxu0 0.0
      %739 = vmatprep.subr.mxu0 0.0
      %740 = vmatpush2.msra.mxu0 0.0
      %741 = vmatprep.subr.mxu0 0.0
      %742 = vmatpush2.msra.mxu0 0.0
      %743 = vmatprep.subr.mxu0 0.0
      %744 = vmatpush2.msra.mxu0 0.0
      %745 = vmatprep.subr.mxu0 0.0
      %746 = vmatpush2.msra.mxu0 0.0
      %747 = vmatprep.subr.mxu0 0.0
      %748 = vmatpush2.msra.mxu0 0.0
      %749 = vmatprep.subr.mxu0 0.0
      %750 = vmatpush2.msra.mxu0 0.0
      %751 = vmatprep.subr.mxu0 0.0
      %752 = vmatpush2.msra.mxu0 0.0
      %753 = vmatprep.subr.mxu0 0.0
      %754 = vmatpush2.msra.mxu0 0.0
      %755 = vmatprep.subr.mxu0 0.0
      %756 = vmatpush2.msra.mxu0 0.0
      %757 = vmatprep.mubr.f32.mxu0 0.0
      %758 = vmatmul.mubr.f32.gmra.mxu0 %v682
      %v759 = vpop.f32.mrf.mxu0
      %v760 = vadd.f32 0.0, %v759
      %v761 = vpop.f32.mrf.mxu0
      %762 = vmatprep.mubr.f32.mxu0 0.0
      %763 = vmatmul.mubr.f32.gmra.mxu0 %v685
      %v764 = vpop.f32.mrf.mxu0
      %v765 = vadd.f32 0.0, %v764
      %v766 = vpop.f32.mrf.mxu0
      %767 = vmatprep.mubr.f32.mxu0 0.0
      %768 = vmatmul.mubr.f32.gmra.mxu0 %v688
      %v769 = vpop.f32.mrf.mxu0
      %v770 = vadd.f32 0.0, %v769
      %v771 = vpop.f32.mrf.mxu0
      %772 = vmatprep.mubr.f32.mxu0 0.0
      %773 = vmatmul.mubr.f32.gmra.mxu0 %v691
      %v774 = vpop.f32.mrf.mxu0
      %v775 = vadd.f32 0.0, %v774
      %v776 = vpop.f32.mrf.mxu0
      %777 = vdwg.mxu0
      %v779 = vsel %vm680, %v563, 0
      %v782 = vsel %vm680, %v564, 0
      %v785 = vsel %vm680, %v565, 0
      %v788 = vsel %vm680, %v566, 0
      %790 = vmatprep.subr.mxu0 0.0
      %791 = vmatpush1.msra.mxu0 0.0
      %792 = vmatprep.subr.mxu0 0.0
      %793 = vmatpush1.msra.mxu0 0.0
      %794 = vmatprep.subr.mxu0 0.0
      %795 = vmatpush1.msra.mxu0 0.0
      %796 = vmatprep.subr.mxu0 0.0
      %797 = vmatpush1.msra.mxu0 0.0
      %798 = vmatprep.subr.mxu0 0.0
      %799 = vmatpush1.msra.mxu0 0.0
      %800 = vmatprep.subr.mxu0 0.0
      %801 = vmatpush1.msra.mxu0 0.0
      %802 = vmatprep.subr.mxu0 0.0
      %803 = vmatpush1.msra.mxu0 0.0
      %804 = vmatprep.subr.mxu0 0.0
      %805 = vmatpush1.msra.mxu0 0.0
      %806 = vmatprep.subr.mxu0 0.0
      %807 = vmatpush1.msra.mxu0 0.0
      %808 = vmatprep.subr.mxu0 0.0
      %809 = vmatpush1.msra.mxu0 0.0
      %810 = vmatprep.subr.mxu0 0.0
      %811 = vmatpush1.msra.mxu0 0.0
      %812 = vmatprep.subr.mxu0 0.0
      %813 = vmatpush1.msra.mxu0 0.0
      %814 = vmatprep.subr.mxu0 0.0
      %815 = vmatpush1.msra.mxu0 0.0
      %816 = vmatprep.subr.mxu0 0.0
      %817 = vmatpush1.msra.mxu0 0.0
      %818 = vmatprep.subr.mxu0 0.0
      %819 = vmatpush1.msra.mxu0 %v560
      %820 = vmatprep.subr.mxu0 0.0
      %821 = vmatpush1.msra.mxu0 %v555
      %822 = vmatprep.subr.mxu0 0.0
      %823 = vmatpush2.msra.mxu0 0.0
      %824 = vmatprep.subr.mxu0 0.0
      %825 = vmatpush2.msra.mxu0 0.0
      %826 = vmatprep.subr.mxu0 0.0
      %827 = vmatpush2.msra.mxu0 0.0
      %828 = vmatprep.subr.mxu0 0.0
      %829 = vmatpush2.msra.mxu0 0.0
      %830 = vmatprep.subr.mxu0 0.0
      %831 = vmatpush2.msra.mxu0 0.0
      %832 = vmatprep.subr.mxu0 0.0
      %833 = vmatpush2.msra.mxu0 0.0
      %834 = vmatprep.subr.mxu0 0.0
      %835 = vmatpush2.msra.mxu0 0.0
      %836 = vmatprep.subr.mxu0 0.0
      %837 = vmatpush2.msra.mxu0 0.0
      %838 = vmatprep.subr.mxu0 0.0
      %839 = vmatpush2.msra.mxu0 0.0
      %840 = vmatprep.subr.mxu0 0.0
      %841 = vmatpush2.msra.mxu0 0.0
      %842 = vmatprep.subr.mxu0 0.0
      %843 = vmatpush2.msra.mxu0 0.0
      %844 = vmatprep.subr.mxu0 0.0
      %845 = vmatpush2.msra.mxu0 0.0
      %846 = vmatprep.subr.mxu0 0.0
      %847 = vmatpush2.msra.mxu0 0.0
      %848 = vmatprep.subr.mxu0 0.0
      %849 = vmatpush2.msra.mxu0 0.0
      %850 = vmatprep.subr.mxu0 0.0
      %851 = vmatpush2.msra.mxu0 0.0
      %852 = vmatprep.subr.mxu0 0.0
      %853 = vmatpush2.msra.mxu0 0.0
      %854 = vmatprep.mubr.f32.mxu0 0.0
      %855 = vmatmul.mubr.f32.gmra.mxu0 %v779
      %v856 = vpop.f32.mrf.mxu0
      %v857 = vadd.f32 %v760, %v856
      %v858 = vpop.f32.mrf.mxu0
      %859 = vmatprep.mubr.f32.mxu0 0.0
      %860 = vmatmul.mubr.f32.gmra.mxu0 %v782
      %v861 = vpop.f32.mrf.mxu0
      %v862 = vadd.f32 %v765, %v861
      %v863 = vpop.f32.mrf.mxu0
      %864 = vmatprep.mubr.f32.mxu0 0.0
      %865 = vmatmul.mubr.f32.gmra.mxu0 %v785
      %v866 = vpop.f32.mrf.mxu0
      %v867 = vadd.f32 %v770, %v866
      %v868 = vpop.f32.mrf.mxu0
      %869 = vmatprep.mubr.f32.mxu0 0.0
      %870 = vmatmul.mubr.f32.gmra.mxu0 %v788
      %v871 = vpop.f32.mrf.mxu0
      %v872 = vadd.f32 %v775, %v871
      %v873 = vpop.f32.mrf.mxu0
      %874 = vdwg.mxu0
      %s875 = scalar_lea.vmem %s3, 512
      %v876 = vld [vmem:[%s875] sm:$0xff]
      %v877 = vld [vmem:[%s875 + $0x8] sm:$0xff]
      %v878 = vld [vmem:[%s875 + $0x10] sm:$0xff]
      %v879 = vld [vmem:[%s875 + $0x18] sm:$0xff]
      %v880 = vld [vmem:[%s875 + $0x20] sm:$0xff]
      %v881 = vld [vmem:[%s875 + $0x28] sm:$0xff]
      %v882 = vld [vmem:[%s875 + $0x30] sm:$0xff]
      %v883 = vld [vmem:[%s875 + $0x38] sm:$0xff]
      %v884 = vld [vmem:[%s875 + $0x40] sm:$0xff]
      %v885 = vld [vmem:[%s875 + $0x48] sm:$0xff]
      %v886 = vld [vmem:[%s875 + $0x50] sm:$0xff]
      %v887 = vld [vmem:[%s875 + $0x58] sm:$0xff]
      %v888 = vld [vmem:[%s875 + $0x60] sm:$0xff]
      %v889 = vld [vmem:[%s875 + $0x68] sm:$0xff]
      %v890 = vld [vmem:[%s875 + $0x70] sm:$0xff]
      %v891 = vld [vmem:[%s875 + $0x78] sm:$0xff]
      %v892 = vld [vmem:[%s875 + $0x80] sm:$0xff]
      %v893 = vld [vmem:[%s875 + $0x88] sm:$0xff]
      %v894 = vld [vmem:[%s875 + $0x90] sm:$0xff]
      %v895 = vld [vmem:[%s875 + $0x98] sm:$0xff]
      %v896 = vld [vmem:[%s875 + $0xa0] sm:$0xff]
      %v897 = vld [vmem:[%s875 + $0xa8] sm:$0xff]
      %v898 = vld [vmem:[%s875 + $0xb0] sm:$0xff]
      %v899 = vld [vmem:[%s875 + $0xb8] sm:$0xff]
      %v900 = vld [vmem:[%s875 + $0xc0] sm:$0xff]
      %v901 = vld [vmem:[%s875 + $0xc8] sm:$0xff]
      %v902 = vld [vmem:[%s875 + $0xd0] sm:$0xff]
      %v903 = vld [vmem:[%s875 + $0xd8] sm:$0xff]
      %v904 = vld [vmem:[%s875 + $0xe0] sm:$0xff]
      %v905 = vld [vmem:[%s875 + $0xe8] sm:$0xff]
      %v906 = vld [vmem:[%s875 + $0xf0] sm:$0xff]
      %v907 = vld [vmem:[%s875 + $0xf8] sm:$0xff]
      %908 = vmatprep.subr.mxu0 0.0
      %909 = vmatpush1.msra.mxu0 %v891
      %910 = vmatprep.subr.mxu0 0.0
      %911 = vmatpush1.msra.mxu0 %v890
      %912 = vmatprep.subr.mxu0 0.0
      %913 = vmatpush1.msra.mxu0 %v889
      %914 = vmatprep.subr.mxu0 0.0
      %915 = vmatpush1.msra.mxu0 %v888
      %916 = vmatprep.subr.mxu0 0.0
      %917 = vmatpush1.msra.mxu0 %v887
      %918 = vmatprep.subr.mxu0 0.0
      %919 = vmatpush1.msra.mxu0 %v886
      %920 = vmatprep.subr.mxu0 0.0
      %921 = vmatpush1.msra.mxu0 %v885
      %922 = vmatprep.subr.mxu0 0.0
      %923 = vmatpush1.msra.mxu0 %v884
      %924 = vmatprep.subr.mxu0 0.0
      %925 = vmatpush1.msra.mxu0 %v883
      %926 = vmatprep.subr.mxu0 0.0
      %927 = vmatpush1.msra.mxu0 %v882
      %928 = vmatprep.subr.mxu0 0.0
      %929 = vmatpush1.msra.mxu0 %v881
      %930 = vmatprep.subr.mxu0 0.0
      %931 = vmatpush1.msra.mxu0 %v880
      %932 = vmatprep.subr.mxu0 0.0
      %933 = vmatpush1.msra.mxu0 %v879
      %934 = vmatprep.subr.mxu0 0.0
      %935 = vmatpush1.msra.mxu0 %v878
      %936 = vmatprep.subr.mxu0 0.0
      %937 = vmatpush1.msra.mxu0 %v877
      %938 = vmatprep.subr.mxu0 0.0
      %939 = vmatpush1.msra.mxu0 %v876
      %940 = vmatprep.subr.mxu0 0.0
      %941 = vmatpush2.msra.mxu0 %v907
      %942 = vmatprep.subr.mxu0 0.0
      %943 = vmatpush2.msra.mxu0 %v906
      %944 = vmatprep.subr.mxu0 0.0
      %945 = vmatpush2.msra.mxu0 %v905
      %946 = vmatprep.subr.mxu0 0.0
      %947 = vmatpush2.msra.mxu0 %v904
      %948 = vmatprep.subr.mxu0 0.0
      %949 = vmatpush2.msra.mxu0 %v903
      %950 = vmatprep.subr.mxu0 0.0
      %951 = vmatpush2.msra.mxu0 %v902
      %952 = vmatprep.subr.mxu0 0.0
      %953 = vmatpush2.msra.mxu0 %v901
      %954 = vmatprep.subr.mxu0 0.0
      %955 = vmatpush2.msra.mxu0 %v900
      %956 = vmatprep.subr.mxu0 0.0
      %957 = vmatpush2.msra.mxu0 %v899
      %958 = vmatprep.subr.mxu0 0.0
      %959 = vmatpush2.msra.mxu0 %v898
      %960 = vmatprep.subr.mxu0 0.0
      %961 = vmatpush2.msra.mxu0 %v897
      %962 = vmatprep.subr.mxu0 0.0
      %963 = vmatpush2.msra.mxu0 %v896
      %964 = vmatprep.subr.mxu0 0.0
      %965 = vmatpush2.msra.mxu0 %v895
      %966 = vmatprep.subr.mxu0 0.0
      %967 = vmatpush2.msra.mxu0 %v894
      %968 = vmatprep.subr.mxu0 0.0
      %969 = vmatpush2.msra.mxu0 %v893
      %970 = vmatprep.subr.mxu0 0.0
      %971 = vmatpush2.msra.mxu0 %v892
      %972 = vmatprep.mubr.f32.mxu0 %v453
      %973 = vmatmul.mubr.f32.gmra.mxu0 %v452
      %v974 = vpop.f32.mrf.mxu0
      %v975 = vadd.f32 0.0, %v974
      %v976 = vpop.f32.mrf.mxu0
      %977 = vmatprep.mubr.f32.mxu0 %v455
      %978 = vmatmul.mubr.f32.gmra.mxu0 %v454
      %v979 = vpop.f32.mrf.mxu0
      %v980 = vadd.f32 0.0, %v979
      %v981 = vpop.f32.mrf.mxu0
      %982 = vdwg.mxu0
      %s983 = scalar_lea.vmem %s4, 64
      %v984 = vld [vmem:[%s983] sm:$0xff]
      %v985 = vld [vmem:[%s983 + $0x8] sm:$0xff]
      %v986 = vld [vmem:[%s983 + $0x10] sm:$0xff]
      %v987 = vld [vmem:[%s983 + $0x18] sm:$0xff]
      %v989 = vsel %vm680, %v984, 0
      %v992 = vsel %vm680, %v985, 0
      %v995 = vsel %vm680, %v986, 0
      %v998 = vsel %vm680, %v987, 0
      %1000 = vmatprep.subr.mxu0 0.0
      %1001 = vmatpush1.msra.mxu0 0.0
      %1002 = vmatprep.subr.mxu0 0.0
      %1003 = vmatpush1.msra.mxu0 0.0
      %1004 = vmatprep.subr.mxu0 0.0
      %1005 = vmatpush1.msra.mxu0 0.0
      %1006 = vmatprep.subr.mxu0 0.0
      %1007 = vmatpush1.msra.mxu0 0.0
      %1008 = vmatprep.subr.mxu0 0.0
      %1009 = vmatpush1.msra.mxu0 0.0
      %1010 = vmatprep.subr.mxu0 0.0
      %1011 = vmatpush1.msra.mxu0 0.0
      %1012 = vmatprep.subr.mxu0 0.0
      %1013 = vmatpush1.msra.mxu0 0.0
      %1014 = vmatprep.subr.mxu0 0.0
      %1015 = vmatpush1.msra.mxu0 0.0
      %1016 = vmatprep.subr.mxu0 0.0
      %1017 = vmatpush1.msra.mxu0 0.0
      %1018 = vmatprep.subr.mxu0 0.0
      %1019 = vmatpush1.msra.mxu0 0.0
      %1020 = vmatprep.subr.mxu0 0.0
      %1021 = vmatpush1.msra.mxu0 0.0
      %1022 = vmatprep.subr.mxu0 0.0
      %1023 = vmatpush1.msra.mxu0 0.0
      %1024 = vmatprep.subr.mxu0 0.0
      %1025 = vmatpush1.msra.mxu0 0.0
      %1026 = vmatprep.subr.mxu0 0.0
      %1027 = vmatpush1.msra.mxu0 0.0
      %1028 = vmatprep.subr.mxu0 0.0
      %1029 = vmatpush1.msra.mxu0 %v980
      %1030 = vmatprep.subr.mxu0 0.0
      %1031 = vmatpush1.msra.mxu0 %v975
      %1032 = vmatprep.subr.mxu0 0.0
      %1033 = vmatpush2.msra.mxu0 0.0
      %1034 = vmatprep.subr.mxu0 0.0
      %1035 = vmatpush2.msra.mxu0 0.0
      %1036 = vmatprep.subr.mxu0 0.0
      %1037 = vmatpush2.msra.mxu0 0.0
      %1038 = vmatprep.subr.mxu0 0.0
      %1039 = vmatpush2.msra.mxu0 0.0
      %1040 = vmatprep.subr.mxu0 0.0
      %1041 = vmatpush2.msra.mxu0 0.0
      %1042 = vmatprep.subr.mxu0 0.0
      %1043 = vmatpush2.msra.mxu0 0.0
      %1044 = vmatprep.subr.mxu0 0.0
      %1045 = vmatpush2.msra.mxu0 0.0
      %1046 = vmatprep.subr.mxu0 0.0
      %1047 = vmatpush2.msra.mxu0 0.0
      %1048 = vmatprep.subr.mxu0 0.0
      %1049 = vmatpush2.msra.mxu0 0.0
      %1050 = vmatprep.subr.mxu0 0.0
      %1051 = vmatpush2.msra.mxu0 0.0
      %1052 = vmatprep.subr.mxu0 0.0
      %1053 = vmatpush2.msra.mxu0 0.0
      %1054 = vmatprep.subr.mxu0 0.0
      %1055 = vmatpush2.msra.mxu0 0.0
      %1056 = vmatprep.subr.mxu0 0.0
      %1057 = vmatpush2.msra.mxu0 0.0
      %1058 = vmatprep.subr.mxu0 0.0
      %1059 = vmatpush2.msra.mxu0 0.0
      %1060 = vmatprep.subr.mxu0 0.0
      %1061 = vmatpush2.msra.mxu0 0.0
      %1062 = vmatprep.subr.mxu0 0.0
      %1063 = vmatpush2.msra.mxu0 0.0
      %1064 = vmatprep.mubr.f32.mxu0 0.0
      %1065 = vmatmul.mubr.f32.gmra.mxu0 %v989
      %v1066 = vpop.f32.mrf.mxu0
      %v1067 = vadd.f32 0.0, %v1066
      %v1068 = vpop.f32.mrf.mxu0
      %1069 = vmatprep.mubr.f32.mxu0 0.0
      %1070 = vmatmul.mubr.f32.gmra.mxu0 %v992
      %v1071 = vpop.f32.mrf.mxu0
      %v1072 = vadd.f32 0.0, %v1071
      %v1073 = vpop.f32.mrf.mxu0
      %1074 = vmatprep.mubr.f32.mxu0 0.0
      %1075 = vmatmul.mubr.f32.gmra.mxu0 %v995
      %v1076 = vpop.f32.mrf.mxu0
      %v1077 = vadd.f32 0.0, %v1076
      %v1078 = vpop.f32.mrf.mxu0
      %1079 = vmatprep.mubr.f32.mxu0 0.0
      %1080 = vmatmul.mubr.f32.gmra.mxu0 %v998
      %v1081 = vpop.f32.mrf.mxu0
      %v1082 = vadd.f32 0.0, %v1081
      %v1083 = vpop.f32.mrf.mxu0
      %1084 = vdwg.mxu0
      %v1085 = vadd.f32 %v857, %v1067
      %v1086 = vadd.f32 %v862, %v1072
      %v1087 = vadd.f32 %v867, %v1077
      %v1088 = vadd.f32 %v872, %v1082
      %s1089 = scalar_lea.vmem %s3, 768
      %v1090 = vld [vmem:[%s1089] sm:$0xff]
      %v1091 = vld [vmem:[%s1089 + $0x8] sm:$0xff]
      %v1092 = vld [vmem:[%s1089 + $0x10] sm:$0xff]
      %v1093 = vld [vmem:[%s1089 + $0x18] sm:$0xff]
      %v1094 = vld [vmem:[%s1089 + $0x20] sm:$0xff]
      %v1095 = vld [vmem:[%s1089 + $0x28] sm:$0xff]
      %v1096 = vld [vmem:[%s1089 + $0x30] sm:$0xff]
      %v1097 = vld [vmem:[%s1089 + $0x38] sm:$0xff]
      %v1098 = vld [vmem:[%s1089 + $0x40] sm:$0xff]
      %v1099 = vld [vmem:[%s1089 + $0x48] sm:$0xff]
      %v1100 = vld [vmem:[%s1089 + $0x50] sm:$0xff]
      %v1101 = vld [vmem:[%s1089 + $0x58] sm:$0xff]
      %v1102 = vld [vmem:[%s1089 + $0x60] sm:$0xff]
      %v1103 = vld [vmem:[%s1089 + $0x68] sm:$0xff]
      %v1104 = vld [vmem:[%s1089 + $0x70] sm:$0xff]
      %v1105 = vld [vmem:[%s1089 + $0x78] sm:$0xff]
      %v1106 = vld [vmem:[%s1089 + $0x80] sm:$0xff]
      %v1107 = vld [vmem:[%s1089 + $0x88] sm:$0xff]
      %v1108 = vld [vmem:[%s1089 + $0x90] sm:$0xff]
      %v1109 = vld [vmem:[%s1089 + $0x98] sm:$0xff]
      %v1110 = vld [vmem:[%s1089 + $0xa0] sm:$0xff]
      %v1111 = vld [vmem:[%s1089 + $0xa8] sm:$0xff]
      %v1112 = vld [vmem:[%s1089 + $0xb0] sm:$0xff]
      %v1113 = vld [vmem:[%s1089 + $0xb8] sm:$0xff]
      %v1114 = vld [vmem:[%s1089 + $0xc0] sm:$0xff]
      %v1115 = vld [vmem:[%s1089 + $0xc8] sm:$0xff]
      %v1116 = vld [vmem:[%s1089 + $0xd0] sm:$0xff]
      %v1117 = vld [vmem:[%s1089 + $0xd8] sm:$0xff]
      %v1118 = vld [vmem:[%s1089 + $0xe0] sm:$0xff]
      %v1119 = vld [vmem:[%s1089 + $0xe8] sm:$0xff]
      %v1120 = vld [vmem:[%s1089 + $0xf0] sm:$0xff]
      %v1121 = vld [vmem:[%s1089 + $0xf8] sm:$0xff]
      %1122 = vmatprep.subr.mxu0 0.0
      %1123 = vmatpush1.msra.mxu0 %v1105
      %1124 = vmatprep.subr.mxu0 0.0
      %1125 = vmatpush1.msra.mxu0 %v1104
      %1126 = vmatprep.subr.mxu0 0.0
      %1127 = vmatpush1.msra.mxu0 %v1103
      %1128 = vmatprep.subr.mxu0 0.0
      %1129 = vmatpush1.msra.mxu0 %v1102
      %1130 = vmatprep.subr.mxu0 0.0
      %1131 = vmatpush1.msra.mxu0 %v1101
      %1132 = vmatprep.subr.mxu0 0.0
      %1133 = vmatpush1.msra.mxu0 %v1100
      %1134 = vmatprep.subr.mxu0 0.0
      %1135 = vmatpush1.msra.mxu0 %v1099
      %1136 = vmatprep.subr.mxu0 0.0
      %1137 = vmatpush1.msra.mxu0 %v1098
      %1138 = vmatprep.subr.mxu0 0.0
      %1139 = vmatpush1.msra.mxu0 %v1097
      %1140 = vmatprep.subr.mxu0 0.0
      %1141 = vmatpush1.msra.mxu0 %v1096
      %1142 = vmatprep.subr.mxu0 0.0
      %1143 = vmatpush1.msra.mxu0 %v1095
      %1144 = vmatprep.subr.mxu0 0.0
      %1145 = vmatpush1.msra.mxu0 %v1094
      %1146 = vmatprep.subr.mxu0 0.0
      %1147 = vmatpush1.msra.mxu0 %v1093
      %1148 = vmatprep.subr.mxu0 0.0
      %1149 = vmatpush1.msra.mxu0 %v1092
      %1150 = vmatprep.subr.mxu0 0.0
      %1151 = vmatpush1.msra.mxu0 %v1091
      %1152 = vmatprep.subr.mxu0 0.0
      %1153 = vmatpush1.msra.mxu0 %v1090
      %1154 = vmatprep.subr.mxu0 0.0
      %1155 = vmatpush2.msra.mxu0 %v1121
      %1156 = vmatprep.subr.mxu0 0.0
      %1157 = vmatpush2.msra.mxu0 %v1120
      %1158 = vmatprep.subr.mxu0 0.0
      %1159 = vmatpush2.msra.mxu0 %v1119
      %1160 = vmatprep.subr.mxu0 0.0
      %1161 = vmatpush2.msra.mxu0 %v1118
      %1162 = vmatprep.subr.mxu0 0.0
      %1163 = vmatpush2.msra.mxu0 %v1117
      %1164 = vmatprep.subr.mxu0 0.0
      %1165 = vmatpush2.msra.mxu0 %v1116
      %1166 = vmatprep.subr.mxu0 0.0
      %1167 = vmatpush2.msra.mxu0 %v1115
      %1168 = vmatprep.subr.mxu0 0.0
      %1169 = vmatpush2.msra.mxu0 %v1114
      %1170 = vmatprep.subr.mxu0 0.0
      %1171 = vmatpush2.msra.mxu0 %v1113
      %1172 = vmatprep.subr.mxu0 0.0
      %1173 = vmatpush2.msra.mxu0 %v1112
      %1174 = vmatprep.subr.mxu0 0.0
      %1175 = vmatpush2.msra.mxu0 %v1111
      %1176 = vmatprep.subr.mxu0 0.0
      %1177 = vmatpush2.msra.mxu0 %v1110
      %1178 = vmatprep.subr.mxu0 0.0
      %1179 = vmatpush2.msra.mxu0 %v1109
      %1180 = vmatprep.subr.mxu0 0.0
      %1181 = vmatpush2.msra.mxu0 %v1108
      %1182 = vmatprep.subr.mxu0 0.0
      %1183 = vmatpush2.msra.mxu0 %v1107
      %1184 = vmatprep.subr.mxu0 0.0
      %1185 = vmatpush2.msra.mxu0 %v1106
      %1186 = vmatprep.mubr.f32.mxu0 %v453
      %1187 = vmatmul.mubr.f32.gmra.mxu0 %v452
      %v1188 = vpop.f32.mrf.mxu0
      %v1189 = vadd.f32 0.0, %v1188
      %v1190 = vpop.f32.mrf.mxu0
      %1191 = vmatprep.mubr.f32.mxu0 %v455
      %1192 = vmatmul.mubr.f32.gmra.mxu0 %v454
      %v1193 = vpop.f32.mrf.mxu0
      %v1194 = vadd.f32 0.0, %v1193
      %v1195 = vpop.f32.mrf.mxu0
      %1196 = vdwg.mxu0
      %s1197 = scalar_lea.vmem %s4, 96
      %v1198 = vld [vmem:[%s1197] sm:$0xff]
      %v1199 = vld [vmem:[%s1197 + $0x8] sm:$0xff]
      %v1200 = vld [vmem:[%s1197 + $0x10] sm:$0xff]
      %v1201 = vld [vmem:[%s1197 + $0x18] sm:$0xff]
      %v1203 = vsel %vm680, %v1198, 0
      %v1206 = vsel %vm680, %v1199, 0
      %v1209 = vsel %vm680, %v1200, 0
      %v1212 = vsel %vm680, %v1201, 0
      %1214 = vmatprep.subr.mxu0 0.0
      %1215 = vmatpush1.msra.mxu0 0.0
      %1216 = vmatprep.subr.mxu0 0.0
      %1217 = vmatpush1.msra.mxu0 0.0
      %1218 = vmatprep.subr.mxu0 0.0
      %1219 = vmatpush1.msra.mxu0 0.0
      %1220 = vmatprep.subr.mxu0 0.0
      %1221 = vmatpush1.msra.mxu0 0.0
      %1222 = vmatprep.subr.mxu0 0.0
      %1223 = vmatpush1.msra.mxu0 0.0
      %1224 = vmatprep.subr.mxu0 0.0
      %1225 = vmatpush1.msra.mxu0 0.0
      %1226 = vmatprep.subr.mxu0 0.0
      %1227 = vmatpush1.msra.mxu0 0.0
      %1228 = vmatprep.subr.mxu0 0.0
      %1229 = vmatpush1.msra.mxu0 0.0
      %1230 = vmatprep.subr.mxu0 0.0
      %1231 = vmatpush1.msra.mxu0 0.0
      %1232 = vmatprep.subr.mxu0 0.0
      %1233 = vmatpush1.msra.mxu0 0.0
      %1234 = vmatprep.subr.mxu0 0.0
      %1235 = vmatpush1.msra.mxu0 0.0
      %1236 = vmatprep.subr.mxu0 0.0
      %1237 = vmatpush1.msra.mxu0 0.0
      %1238 = vmatprep.subr.mxu0 0.0
      %1239 = vmatpush1.msra.mxu0 0.0
      %1240 = vmatprep.subr.mxu0 0.0
      %1241 = vmatpush1.msra.mxu0 0.0
      %1242 = vmatprep.subr.mxu0 0.0
      %1243 = vmatpush1.msra.mxu0 %v1194
      %1244 = vmatprep.subr.mxu0 0.0
      %1245 = vmatpush1.msra.mxu0 %v1189
      %1246 = vmatprep.subr.mxu0 0.0
      %1247 = vmatpush2.msra.mxu0 0.0
      %1248 = vmatprep.subr.mxu0 0.0
      %1249 = vmatpush2.msra.mxu0 0.0
      %1250 = vmatprep.subr.mxu0 0.0
      %1251 = vmatpush2.msra.mxu0 0.0
      %1252 = vmatprep.subr.mxu0 0.0
      %1253 = vmatpush2.msra.mxu0 0.0
      %1254 = vmatprep.subr.mxu0 0.0
      %1255 = vmatpush2.msra.mxu0 0.0
      %1256 = vmatprep.subr.mxu0 0.0
      %1257 = vmatpush2.msra.mxu0 0.0
      %1258 = vmatprep.subr.mxu0 0.0
      %1259 = vmatpush2.msra.mxu0 0.0
      %1260 = vmatprep.subr.mxu0 0.0
      %1261 = vmatpush2.msra.mxu0 0.0
      %1262 = vmatprep.subr.mxu0 0.0
      %1263 = vmatpush2.msra.mxu0 0.0
      %1264 = vmatprep.subr.mxu0 0.0
      %1265 = vmatpush2.msra.mxu0 0.0
      %1266 = vmatprep.subr.mxu0 0.0
      %1267 = vmatpush2.msra.mxu0 0.0
      %1268 = vmatprep.subr.mxu0 0.0
      %1269 = vmatpush2.msra.mxu0 0.0
      %1270 = vmatprep.subr.mxu0 0.0
      %1271 = vmatpush2.msra.mxu0 0.0
      %1272 = vmatprep.subr.mxu0 0.0
      %1273 = vmatpush2.msra.mxu0 0.0
      %1274 = vmatprep.subr.mxu0 0.0
      %1275 = vmatpush2.msra.mxu0 0.0
      %1276 = vmatprep.subr.mxu0 0.0
      %1277 = vmatpush2.msra.mxu0 0.0
      %1278 = vmatprep.mubr.f32.mxu0 0.0
      %1279 = vmatmul.mubr.f32.gmra.mxu0 %v1203
      %v1280 = vpop.f32.mrf.mxu0
      %v1281 = vadd.f32 0.0, %v1280
      %v1282 = vpop.f32.mrf.mxu0
      %1283 = vmatprep.mubr.f32.mxu0 0.0
      %1284 = vmatmul.mubr.f32.gmra.mxu0 %v1206
      %v1285 = vpop.f32.mrf.mxu0
      %v1286 = vadd.f32 0.0, %v1285
      %v1287 = vpop.f32.mrf.mxu0
      %1288 = vmatprep.mubr.f32.mxu0 0.0
      %1289 = vmatmul.mubr.f32.gmra.mxu0 %v1209
      %v1290 = vpop.f32.mrf.mxu0
      %v1291 = vadd.f32 0.0, %v1290
      %v1292 = vpop.f32.mrf.mxu0
      %1293 = vmatprep.mubr.f32.mxu0 0.0
      %1294 = vmatmul.mubr.f32.gmra.mxu0 %v1212
      %v1295 = vpop.f32.mrf.mxu0
      %v1296 = vadd.f32 0.0, %v1295
      %v1297 = vpop.f32.mrf.mxu0
      %1298 = vdwg.mxu0
      %v1299 = vadd.f32 %v1085, %v1281
      %v1300 = vadd.f32 %v1086, %v1286
      %v1301 = vadd.f32 %v1087, %v1291
      %v1302 = vadd.f32 %v1088, %v1296
      %s1303 = scalar_lea.vmem %s3, 1024
      %v1304 = vld [vmem:[%s1303] sm:$0xff]
      %v1305 = vld [vmem:[%s1303 + $0x8] sm:$0xff]
      %v1306 = vld [vmem:[%s1303 + $0x10] sm:$0xff]
      %v1307 = vld [vmem:[%s1303 + $0x18] sm:$0xff]
      %v1308 = vld [vmem:[%s1303 + $0x20] sm:$0xff]
      %v1309 = vld [vmem:[%s1303 + $0x28] sm:$0xff]
      %v1310 = vld [vmem:[%s1303 + $0x30] sm:$0xff]
      %v1311 = vld [vmem:[%s1303 + $0x38] sm:$0xff]
      %v1312 = vld [vmem:[%s1303 + $0x40] sm:$0xff]
      %v1313 = vld [vmem:[%s1303 + $0x48] sm:$0xff]
      %v1314 = vld [vmem:[%s1303 + $0x50] sm:$0xff]
      %v1315 = vld [vmem:[%s1303 + $0x58] sm:$0xff]
      %v1316 = vld [vmem:[%s1303 + $0x60] sm:$0xff]
      %v1317 = vld [vmem:[%s1303 + $0x68] sm:$0xff]
      %v1318 = vld [vmem:[%s1303 + $0x70] sm:$0xff]
      %v1319 = vld [vmem:[%s1303 + $0x78] sm:$0xff]
      %v1320 = vld [vmem:[%s1303 + $0x80] sm:$0xff]
      %v1321 = vld [vmem:[%s1303 + $0x88] sm:$0xff]
      %v1322 = vld [vmem:[%s1303 + $0x90] sm:$0xff]
      %v1323 = vld [vmem:[%s1303 + $0x98] sm:$0xff]
      %v1324 = vld [vmem:[%s1303 + $0xa0] sm:$0xff]
      %v1325 = vld [vmem:[%s1303 + $0xa8] sm:$0xff]
      %v1326 = vld [vmem:[%s1303 + $0xb0] sm:$0xff]
      %v1327 = vld [vmem:[%s1303 + $0xb8] sm:$0xff]
      %v1328 = vld [vmem:[%s1303 + $0xc0] sm:$0xff]
      %v1329 = vld [vmem:[%s1303 + $0xc8] sm:$0xff]
      %v1330 = vld [vmem:[%s1303 + $0xd0] sm:$0xff]
      %v1331 = vld [vmem:[%s1303 + $0xd8] sm:$0xff]
      %v1332 = vld [vmem:[%s1303 + $0xe0] sm:$0xff]
      %v1333 = vld [vmem:[%s1303 + $0xe8] sm:$0xff]
      %v1334 = vld [vmem:[%s1303 + $0xf0] sm:$0xff]
      %v1335 = vld [vmem:[%s1303 + $0xf8] sm:$0xff]
      %1336 = vmatprep.subr.mxu0 0.0
      %1337 = vmatpush1.msra.mxu0 %v1319
      %1338 = vmatprep.subr.mxu0 0.0
      %1339 = vmatpush1.msra.mxu0 %v1318
      %1340 = vmatprep.subr.mxu0 0.0
      %1341 = vmatpush1.msra.mxu0 %v1317
      %1342 = vmatprep.subr.mxu0 0.0
      %1343 = vmatpush1.msra.mxu0 %v1316
      %1344 = vmatprep.subr.mxu0 0.0
      %1345 = vmatpush1.msra.mxu0 %v1315
      %1346 = vmatprep.subr.mxu0 0.0
      %1347 = vmatpush1.msra.mxu0 %v1314
      %1348 = vmatprep.subr.mxu0 0.0
      %1349 = vmatpush1.msra.mxu0 %v1313
      %1350 = vmatprep.subr.mxu0 0.0
      %1351 = vmatpush1.msra.mxu0 %v1312
      %1352 = vmatprep.subr.mxu0 0.0
      %1353 = vmatpush1.msra.mxu0 %v1311
      %1354 = vmatprep.subr.mxu0 0.0
      %1355 = vmatpush1.msra.mxu0 %v1310
      %1356 = vmatprep.subr.mxu0 0.0
      %1357 = vmatpush1.msra.mxu0 %v1309
      %1358 = vmatprep.subr.mxu0 0.0
      %1359 = vmatpush1.msra.mxu0 %v1308
      %1360 = vmatprep.subr.mxu0 0.0
      %1361 = vmatpush1.msra.mxu0 %v1307
      %1362 = vmatprep.subr.mxu0 0.0
      %1363 = vmatpush1.msra.mxu0 %v1306
      %1364 = vmatprep.subr.mxu0 0.0
      %1365 = vmatpush1.msra.mxu0 %v1305
      %1366 = vmatprep.subr.mxu0 0.0
      %1367 = vmatpush1.msra.mxu0 %v1304
      %1368 = vmatprep.subr.mxu0 0.0
      %1369 = vmatpush2.msra.mxu0 %v1335
      %1370 = vmatprep.subr.mxu0 0.0
      %1371 = vmatpush2.msra.mxu0 %v1334
      %1372 = vmatprep.subr.mxu0 0.0
      %1373 = vmatpush2.msra.mxu0 %v1333
      %1374 = vmatprep.subr.mxu0 0.0
      %1375 = vmatpush2.msra.mxu0 %v1332
      %1376 = vmatprep.subr.mxu0 0.0
      %1377 = vmatpush2.msra.mxu0 %v1331
      %1378 = vmatprep.subr.mxu0 0.0
      %1379 = vmatpush2.msra.mxu0 %v1330
      %1380 = vmatprep.subr.mxu0 0.0
      %1381 = vmatpush2.msra.mxu0 %v1329
      %1382 = vmatprep.subr.mxu0 0.0
      %1383 = vmatpush2.msra.mxu0 %v1328
      %1384 = vmatprep.subr.mxu0 0.0
      %1385 = vmatpush2.msra.mxu0 %v1327
      %1386 = vmatprep.subr.mxu0 0.0
      %1387 = vmatpush2.msra.mxu0 %v1326
      %1388 = vmatprep.subr.mxu0 0.0
      %1389 = vmatpush2.msra.mxu0 %v1325
      %1390 = vmatprep.subr.mxu0 0.0
      %1391 = vmatpush2.msra.mxu0 %v1324
      %1392 = vmatprep.subr.mxu0 0.0
      %1393 = vmatpush2.msra.mxu0 %v1323
      %1394 = vmatprep.subr.mxu0 0.0
      %1395 = vmatpush2.msra.mxu0 %v1322
      %1396 = vmatprep.subr.mxu0 0.0
      %1397 = vmatpush2.msra.mxu0 %v1321
      %1398 = vmatprep.subr.mxu0 0.0
      %1399 = vmatpush2.msra.mxu0 %v1320
      %1400 = vmatprep.mubr.f32.mxu0 %v453
      %1401 = vmatmul.mubr.f32.gmra.mxu0 %v452
      %v1402 = vpop.f32.mrf.mxu0
      %v1403 = vadd.f32 0.0, %v1402
      %v1404 = vpop.f32.mrf.mxu0
      %1405 = vmatprep.mubr.f32.mxu0 %v455
      %1406 = vmatmul.mubr.f32.gmra.mxu0 %v454
      %v1407 = vpop.f32.mrf.mxu0
      %v1408 = vadd.f32 0.0, %v1407
      %v1409 = vpop.f32.mrf.mxu0
      %1410 = vdwg.mxu0
      %s1411 = scalar_lea.vmem %s4, 128
      %v1412 = vld [vmem:[%s1411] sm:$0xff]
      %v1413 = vld [vmem:[%s1411 + $0x8] sm:$0xff]
      %v1414 = vld [vmem:[%s1411 + $0x10] sm:$0xff]
      %v1415 = vld [vmem:[%s1411 + $0x18] sm:$0xff]
      %v1417 = vsel %vm680, %v1412, 0
      %v1420 = vsel %vm680, %v1413, 0
      %v1423 = vsel %vm680, %v1414, 0
      %v1426 = vsel %vm680, %v1415, 0
      %1428 = vmatprep.subr.mxu0 0.0
      %1429 = vmatpush1.msra.mxu0 0.0
      %1430 = vmatprep.subr.mxu0 0.0
      %1431 = vmatpush1.msra.mxu0 0.0
      %1432 = vmatprep.subr.mxu0 0.0
      %1433 = vmatpush1.msra.mxu0 0.0
      %1434 = vmatprep.subr.mxu0 0.0
      %1435 = vmatpush1.msra.mxu0 0.0
      %1436 = vmatprep.subr.mxu0 0.0
      %1437 = vmatpush1.msra.mxu0 0.0
      %1438 = vmatprep.subr.mxu0 0.0
      %1439 = vmatpush1.msra.mxu0 0.0
      %1440 = vmatprep.subr.mxu0 0.0
      %1441 = vmatpush1.msra.mxu0 0.0
      %1442 = vmatprep.subr.mxu0 0.0
      %1443 = vmatpush1.msra.mxu0 0.0
      %1444 = vmatprep.subr.mxu0 0.0
      %1445 = vmatpush1.msra.mxu0 0.0
      %1446 = vmatprep.subr.mxu0 0.0
      %1447 = vmatpush1.msra.mxu0 0.0
      %1448 = vmatprep.subr.mxu0 0.0
      %1449 = vmatpush1.msra.mxu0 0.0
      %1450 = vmatprep.subr.mxu0 0.0
      %1451 = vmatpush1.msra.mxu0 0.0
      %1452 = vmatprep.subr.mxu0 0.0
      %1453 = vmatpush1.msra.mxu0 0.0
      %1454 = vmatprep.subr.mxu0 0.0
      %1455 = vmatpush1.msra.mxu0 0.0
      %1456 = vmatprep.subr.mxu0 0.0
      %1457 = vmatpush1.msra.mxu0 %v1408
      %1458 = vmatprep.subr.mxu0 0.0
      %1459 = vmatpush1.msra.mxu0 %v1403
      %1460 = vmatprep.subr.mxu0 0.0
      %1461 = vmatpush2.msra.mxu0 0.0
      %1462 = vmatprep.subr.mxu0 0.0
      %1463 = vmatpush2.msra.mxu0 0.0
      %1464 = vmatprep.subr.mxu0 0.0
      %1465 = vmatpush2.msra.mxu0 0.0
      %1466 = vmatprep.subr.mxu0 0.0
      %1467 = vmatpush2.msra.mxu0 0.0
      %1468 = vmatprep.subr.mxu0 0.0
      %1469 = vmatpush2.msra.mxu0 0.0
      %1470 = vmatprep.subr.mxu0 0.0
      %1471 = vmatpush2.msra.mxu0 0.0
      %1472 = vmatprep.subr.mxu0 0.0
      %1473 = vmatpush2.msra.mxu0 0.0
      %1474 = vmatprep.subr.mxu0 0.0
      %1475 = vmatpush2.msra.mxu0 0.0
      %1476 = vmatprep.subr.mxu0 0.0
      %1477 = vmatpush2.msra.mxu0 0.0
      %1478 = vmatprep.subr.mxu0 0.0
      %1479 = vmatpush2.msra.mxu0 0.0
      %1480 = vmatprep.subr.mxu0 0.0
      %1481 = vmatpush2.msra.mxu0 0.0
      %1482 = vmatprep.subr.mxu0 0.0
      %1483 = vmatpush2.msra.mxu0 0.0
      %1484 = vmatprep.subr.mxu0 0.0
      %1485 = vmatpush2.msra.mxu0 0.0
      %1486 = vmatprep.subr.mxu0 0.0
      %1487 = vmatpush2.msra.mxu0 0.0
      %1488 = vmatprep.subr.mxu0 0.0
      %1489 = vmatpush2.msra.mxu0 0.0
      %1490 = vmatprep.subr.mxu0 0.0
      %1491 = vmatpush2.msra.mxu0 0.0
      %1492 = vmatprep.mubr.f32.mxu0 0.0
      %1493 = vmatmul.mubr.f32.gmra.mxu0 %v1417
      %v1494 = vpop.f32.mrf.mxu0
      %v1495 = vadd.f32 0.0, %v1494
      %v1496 = vpop.f32.mrf.mxu0
      %1497 = vmatprep.mubr.f32.mxu0 0.0
      %1498 = vmatmul.mubr.f32.gmra.mxu0 %v1420
      %v1499 = vpop.f32.mrf.mxu0
      %v1500 = vadd.f32 0.0, %v1499
      %v1501 = vpop.f32.mrf.mxu0
      %1502 = vmatprep.mubr.f32.mxu0 0.0
      %1503 = vmatmul.mubr.f32.gmra.mxu0 %v1423
      %v1504 = vpop.f32.mrf.mxu0
      %v1505 = vadd.f32 0.0, %v1504
      %v1506 = vpop.f32.mrf.mxu0
      %1507 = vmatprep.mubr.f32.mxu0 0.0
      %1508 = vmatmul.mubr.f32.gmra.mxu0 %v1426
      %v1509 = vpop.f32.mrf.mxu0
      %v1510 = vadd.f32 0.0, %v1509
      %v1511 = vpop.f32.mrf.mxu0
      %1512 = vdwg.mxu0
      %v1513 = vadd.f32 %v1299, %v1495
      %v1514 = vadd.f32 %v1300, %v1500
      %v1515 = vadd.f32 %v1301, %v1505
      %v1516 = vadd.f32 %v1302, %v1510
      %s1517 = scalar_lea.vmem %s3, 1280
      %v1518 = vld [vmem:[%s1517] sm:$0xff]
      %v1519 = vld [vmem:[%s1517 + $0x8] sm:$0xff]
      %v1520 = vld [vmem:[%s1517 + $0x10] sm:$0xff]
      %v1521 = vld [vmem:[%s1517 + $0x18] sm:$0xff]
      %v1522 = vld [vmem:[%s1517 + $0x20] sm:$0xff]
      %v1523 = vld [vmem:[%s1517 + $0x28] sm:$0xff]
      %v1524 = vld [vmem:[%s1517 + $0x30] sm:$0xff]
      %v1525 = vld [vmem:[%s1517 + $0x38] sm:$0xff]
      %v1526 = vld [vmem:[%s1517 + $0x40] sm:$0xff]
      %v1527 = vld [vmem:[%s1517 + $0x48] sm:$0xff]
      %v1528 = vld [vmem:[%s1517 + $0x50] sm:$0xff]
      %v1529 = vld [vmem:[%s1517 + $0x58] sm:$0xff]
      %v1530 = vld [vmem:[%s1517 + $0x60] sm:$0xff]
      %v1531 = vld [vmem:[%s1517 + $0x68] sm:$0xff]
      %v1532 = vld [vmem:[%s1517 + $0x70] sm:$0xff]
      %v1533 = vld [vmem:[%s1517 + $0x78] sm:$0xff]
      %v1534 = vld [vmem:[%s1517 + $0x80] sm:$0xff]
      %v1535 = vld [vmem:[%s1517 + $0x88] sm:$0xff]
      %v1536 = vld [vmem:[%s1517 + $0x90] sm:$0xff]
      %v1537 = vld [vmem:[%s1517 + $0x98] sm:$0xff]
      %v1538 = vld [vmem:[%s1517 + $0xa0] sm:$0xff]
      %v1539 = vld [vmem:[%s1517 + $0xa8] sm:$0xff]
      %v1540 = vld [vmem:[%s1517 + $0xb0] sm:$0xff]
      %v1541 = vld [vmem:[%s1517 + $0xb8] sm:$0xff]
      %v1542 = vld [vmem:[%s1517 + $0xc0] sm:$0xff]
      %v1543 = vld [vmem:[%s1517 + $0xc8] sm:$0xff]
      %v1544 = vld [vmem:[%s1517 + $0xd0] sm:$0xff]
      %v1545 = vld [vmem:[%s1517 + $0xd8] sm:$0xff]
      %v1546 = vld [vmem:[%s1517 + $0xe0] sm:$0xff]
      %v1547 = vld [vmem:[%s1517 + $0xe8] sm:$0xff]
      %v1548 = vld [vmem:[%s1517 + $0xf0] sm:$0xff]
      %v1549 = vld [vmem:[%s1517 + $0xf8] sm:$0xff]
      %1550 = vmatprep.subr.mxu0 0.0
      %1551 = vmatpush1.msra.mxu0 %v1533
      %1552 = vmatprep.subr.mxu0 0.0
      %1553 = vmatpush1.msra.mxu0 %v1532
      %1554 = vmatprep.subr.mxu0 0.0
      %1555 = vmatpush1.msra.mxu0 %v1531
      %1556 = vmatprep.subr.mxu0 0.0
      %1557 = vmatpush1.msra.mxu0 %v1530
      %1558 = vmatprep.subr.mxu0 0.0
      %1559 = vmatpush1.msra.mxu0 %v1529
      %1560 = vmatprep.subr.mxu0 0.0
      %1561 = vmatpush1.msra.mxu0 %v1528
      %1562 = vmatprep.subr.mxu0 0.0
      %1563 = vmatpush1.msra.mxu0 %v1527
      %1564 = vmatprep.subr.mxu0 0.0
      %1565 = vmatpush1.msra.mxu0 %v1526
      %1566 = vmatprep.subr.mxu0 0.0
      %1567 = vmatpush1.msra.mxu0 %v1525
      %1568 = vmatprep.subr.mxu0 0.0
      %1569 = vmatpush1.msra.mxu0 %v1524
      %1570 = vmatprep.subr.mxu0 0.0
      %1571 = vmatpush1.msra.mxu0 %v1523
      %1572 = vmatprep.subr.mxu0 0.0
      %1573 = vmatpush1.msra.mxu0 %v1522
      %1574 = vmatprep.subr.mxu0 0.0
      %1575 = vmatpush1.msra.mxu0 %v1521
      %1576 = vmatprep.subr.mxu0 0.0
      %1577 = vmatpush1.msra.mxu0 %v1520
      %1578 = vmatprep.subr.mxu0 0.0
      %1579 = vmatpush1.msra.mxu0 %v1519
      %1580 = vmatprep.subr.mxu0 0.0
      %1581 = vmatpush1.msra.mxu0 %v1518
      %1582 = vmatprep.subr.mxu0 0.0
      %1583 = vmatpush2.msra.mxu0 %v1549
      %1584 = vmatprep.subr.mxu0 0.0
      %1585 = vmatpush2.msra.mxu0 %v1548
      %1586 = vmatprep.subr.mxu0 0.0
      %1587 = vmatpush2.msra.mxu0 %v1547
      %1588 = vmatprep.subr.mxu0 0.0
      %1589 = vmatpush2.msra.mxu0 %v1546
      %1590 = vmatprep.subr.mxu0 0.0
      %1591 = vmatpush2.msra.mxu0 %v1545
      %1592 = vmatprep.subr.mxu0 0.0
      %1593 = vmatpush2.msra.mxu0 %v1544
      %1594 = vmatprep.subr.mxu0 0.0
      %1595 = vmatpush2.msra.mxu0 %v1543
      %1596 = vmatprep.subr.mxu0 0.0
      %1597 = vmatpush2.msra.mxu0 %v1542
      %1598 = vmatprep.subr.mxu0 0.0
      %1599 = vmatpush2.msra.mxu0 %v1541
      %1600 = vmatprep.subr.mxu0 0.0
      %1601 = vmatpush2.msra.mxu0 %v1540
      %1602 = vmatprep.subr.mxu0 0.0
      %1603 = vmatpush2.msra.mxu0 %v1539
      %1604 = vmatprep.subr.mxu0 0.0
      %1605 = vmatpush2.msra.mxu0 %v1538
      %1606 = vmatprep.subr.mxu0 0.0
      %1607 = vmatpush2.msra.mxu0 %v1537
      %1608 = vmatprep.subr.mxu0 0.0
      %1609 = vmatpush2.msra.mxu0 %v1536
      %1610 = vmatprep.subr.mxu0 0.0
      %1611 = vmatpush2.msra.mxu0 %v1535
      %1612 = vmatprep.subr.mxu0 0.0
      %1613 = vmatpush2.msra.mxu0 %v1534
      %1614 = vmatprep.mubr.f32.mxu0 %v453
      %1615 = vmatmul.mubr.f32.gmra.mxu0 %v452
      %v1616 = vpop.f32.mrf.mxu0
      %v1617 = vadd.f32 0.0, %v1616
      %v1618 = vpop.f32.mrf.mxu0
      %1619 = vmatprep.mubr.f32.mxu0 %v455
      %1620 = vmatmul.mubr.f32.gmra.mxu0 %v454
      %v1621 = vpop.f32.mrf.mxu0
      %v1622 = vadd.f32 0.0, %v1621
      %v1623 = vpop.f32.mrf.mxu0
      %1624 = vdwg.mxu0
      %s1625 = scalar_lea.vmem %s4, 160
      %v1626 = vld [vmem:[%s1625] sm:$0xff]
      %v1627 = vld [vmem:[%s1625 + $0x8] sm:$0xff]
      %v1628 = vld [vmem:[%s1625 + $0x10] sm:$0xff]
      %v1629 = vld [vmem:[%s1625 + $0x18] sm:$0xff]
      %v1631 = vsel %vm680, %v1626, 0
      %v1634 = vsel %vm680, %v1627, 0
      %v1637 = vsel %vm680, %v1628, 0
      %v1640 = vsel %vm680, %v1629, 0
      %1642 = vmatprep.subr.mxu0 0.0
      %1643 = vmatpush1.msra.mxu0 0.0
      %1644 = vmatprep.subr.mxu0 0.0
      %1645 = vmatpush1.msra.mxu0 0.0
      %1646 = vmatprep.subr.mxu0 0.0
      %1647 = vmatpush1.msra.mxu0 0.0
      %1648 = vmatprep.subr.mxu0 0.0
      %1649 = vmatpush1.msra.mxu0 0.0
      %1650 = vmatprep.subr.mxu0 0.0
      %1651 = vmatpush1.msra.mxu0 0.0
      %1652 = vmatprep.subr.mxu0 0.0
      %1653 = vmatpush1.msra.mxu0 0.0
      %1654 = vmatprep.subr.mxu0 0.0
      %1655 = vmatpush1.msra.mxu0 0.0
      %1656 = vmatprep.subr.mxu0 0.0
      %1657 = vmatpush1.msra.mxu0 0.0
      %1658 = vmatprep.subr.mxu0 0.0
      %1659 = vmatpush1.msra.mxu0 0.0
      %1660 = vmatprep.subr.mxu0 0.0
      %1661 = vmatpush1.msra.mxu0 0.0
      %1662 = vmatprep.subr.mxu0 0.0
      %1663 = vmatpush1.msra.mxu0 0.0
      %1664 = vmatprep.subr.mxu0 0.0
      %1665 = vmatpush1.msra.mxu0 0.0
      %1666 = vmatprep.subr.mxu0 0.0
      %1667 = vmatpush1.msra.mxu0 0.0
      %1668 = vmatprep.subr.mxu0 0.0
      %1669 = vmatpush1.msra.mxu0 0.0
      %1670 = vmatprep.subr.mxu0 0.0
      %1671 = vmatpush1.msra.mxu0 %v1622
      %1672 = vmatprep.subr.mxu0 0.0
      %1673 = vmatpush1.msra.mxu0 %v1617
      %1674 = vmatprep.subr.mxu0 0.0
      %1675 = vmatpush2.msra.mxu0 0.0
      %1676 = vmatprep.subr.mxu0 0.0
      %1677 = vmatpush2.msra.mxu0 0.0
      %1678 = vmatprep.subr.mxu0 0.0
      %1679 = vmatpush2.msra.mxu0 0.0
      %1680 = vmatprep.subr.mxu0 0.0
      %1681 = vmatpush2.msra.mxu0 0.0
      %1682 = vmatprep.subr.mxu0 0.0
      %1683 = vmatpush2.msra.mxu0 0.0
      %1684 = vmatprep.subr.mxu0 0.0
      %1685 = vmatpush2.msra.mxu0 0.0
      %1686 = vmatprep.subr.mxu0 0.0
      %1687 = vmatpush2.msra.mxu0 0.0
      %1688 = vmatprep.subr.mxu0 0.0
      %1689 = vmatpush2.msra.mxu0 0.0
      %1690 = vmatprep.subr.mxu0 0.0
      %1691 = vmatpush2.msra.mxu0 0.0
      %1692 = vmatprep.subr.mxu0 0.0
      %1693 = vmatpush2.msra.mxu0 0.0
      %1694 = vmatprep.subr.mxu0 0.0
      %1695 = vmatpush2.msra.mxu0 0.0
      %1696 = vmatprep.subr.mxu0 0.0
      %1697 = vmatpush2.msra.mxu0 0.0
      %1698 = vmatprep.subr.mxu0 0.0
      %1699 = vmatpush2.msra.mxu0 0.0
      %1700 = vmatprep.subr.mxu0 0.0
      %1701 = vmatpush2.msra.mxu0 0.0
      %1702 = vmatprep.subr.mxu0 0.0
      %1703 = vmatpush2.msra.mxu0 0.0
      %1704 = vmatprep.subr.mxu0 0.0
      %1705 = vmatpush2.msra.mxu0 0.0
      %1706 = vmatprep.mubr.f32.mxu0 0.0
      %1707 = vmatmul.mubr.f32.gmra.mxu0 %v1631
      %v1708 = vpop.f32.mrf.mxu0
      %v1709 = vadd.f32 0.0, %v1708
      %v1710 = vpop.f32.mrf.mxu0
      %1711 = vmatprep.mubr.f32.mxu0 0.0
      %1712 = vmatmul.mubr.f32.gmra.mxu0 %v1634
      %v1713 = vpop.f32.mrf.mxu0
      %v1714 = vadd.f32 0.0, %v1713
      %v1715 = vpop.f32.mrf.mxu0
      %1716 = vmatprep.mubr.f32.mxu0 0.0
      %1717 = vmatmul.mubr.f32.gmra.mxu0 %v1637
      %v1718 = vpop.f32.mrf.mxu0
      %v1719 = vadd.f32 0.0, %v1718
      %v1720 = vpop.f32.mrf.mxu0
      %1721 = vmatprep.mubr.f32.mxu0 0.0
      %1722 = vmatmul.mubr.f32.gmra.mxu0 %v1640
      %v1723 = vpop.f32.mrf.mxu0
      %v1724 = vadd.f32 0.0, %v1723
      %v1725 = vpop.f32.mrf.mxu0
      %1726 = vdwg.mxu0
      %v1727 = vadd.f32 %v1513, %v1709
      %v1728 = vadd.f32 %v1514, %v1714
      %v1729 = vadd.f32 %v1515, %v1719
      %v1730 = vadd.f32 %v1516, %v1724
      %s1731 = scalar_lea.vmem %s3, 1536
      %v1732 = vld [vmem:[%s1731] sm:$0xff]
      %v1733 = vld [vmem:[%s1731 + $0x8] sm:$0xff]
      %v1734 = vld [vmem:[%s1731 + $0x10] sm:$0xff]
      %v1735 = vld [vmem:[%s1731 + $0x18] sm:$0xff]
      %v1736 = vld [vmem:[%s1731 + $0x20] sm:$0xff]
      %v1737 = vld [vmem:[%s1731 + $0x28] sm:$0xff]
      %v1738 = vld [vmem:[%s1731 + $0x30] sm:$0xff]
      %v1739 = vld [vmem:[%s1731 + $0x38] sm:$0xff]
      %v1740 = vld [vmem:[%s1731 + $0x40] sm:$0xff]
      %v1741 = vld [vmem:[%s1731 + $0x48] sm:$0xff]
      %v1742 = vld [vmem:[%s1731 + $0x50] sm:$0xff]
      %v1743 = vld [vmem:[%s1731 + $0x58] sm:$0xff]
      %v1744 = vld [vmem:[%s1731 + $0x60] sm:$0xff]
      %v1745 = vld [vmem:[%s1731 + $0x68] sm:$0xff]
      %v1746 = vld [vmem:[%s1731 + $0x70] sm:$0xff]
      %v1747 = vld [vmem:[%s1731 + $0x78] sm:$0xff]
      %v1748 = vld [vmem:[%s1731 + $0x80] sm:$0xff]
      %v1749 = vld [vmem:[%s1731 + $0x88] sm:$0xff]
      %v1750 = vld [vmem:[%s1731 + $0x90] sm:$0xff]
      %v1751 = vld [vmem:[%s1731 + $0x98] sm:$0xff]
      %v1752 = vld [vmem:[%s1731 + $0xa0] sm:$0xff]
      %v1753 = vld [vmem:[%s1731 + $0xa8] sm:$0xff]
      %v1754 = vld [vmem:[%s1731 + $0xb0] sm:$0xff]
      %v1755 = vld [vmem:[%s1731 + $0xb8] sm:$0xff]
      %v1756 = vld [vmem:[%s1731 + $0xc0] sm:$0xff]
      %v1757 = vld [vmem:[%s1731 + $0xc8] sm:$0xff]
      %v1758 = vld [vmem:[%s1731 + $0xd0] sm:$0xff]
      %v1759 = vld [vmem:[%s1731 + $0xd8] sm:$0xff]
      %v1760 = vld [vmem:[%s1731 + $0xe0] sm:$0xff]
      %v1761 = vld [vmem:[%s1731 + $0xe8] sm:$0xff]
      %v1762 = vld [vmem:[%s1731 + $0xf0] sm:$0xff]
      %v1763 = vld [vmem:[%s1731 + $0xf8] sm:$0xff]
      %1764 = vmatprep.subr.mxu0 0.0
      %1765 = vmatpush1.msra.mxu0 %v1747
      %1766 = vmatprep.subr.mxu0 0.0
      %1767 = vmatpush1.msra.mxu0 %v1746
      %1768 = vmatprep.subr.mxu0 0.0
      %1769 = vmatpush1.msra.mxu0 %v1745
      %1770 = vmatprep.subr.mxu0 0.0
      %1771 = vmatpush1.msra.mxu0 %v1744
      %1772 = vmatprep.subr.mxu0 0.0
      %1773 = vmatpush1.msra.mxu0 %v1743
      %1774 = vmatprep.subr.mxu0 0.0
      %1775 = vmatpush1.msra.mxu0 %v1742
      %1776 = vmatprep.subr.mxu0 0.0
      %1777 = vmatpush1.msra.mxu0 %v1741
      %1778 = vmatprep.subr.mxu0 0.0
      %1779 = vmatpush1.msra.mxu0 %v1740
      %1780 = vmatprep.subr.mxu0 0.0
      %1781 = vmatpush1.msra.mxu0 %v1739
      %1782 = vmatprep.subr.mxu0 0.0
      %1783 = vmatpush1.msra.mxu0 %v1738
      %1784 = vmatprep.subr.mxu0 0.0
      %1785 = vmatpush1.msra.mxu0 %v1737
      %1786 = vmatprep.subr.mxu0 0.0
      %1787 = vmatpush1.msra.mxu0 %v1736
      %1788 = vmatprep.subr.mxu0 0.0
      %1789 = vmatpush1.msra.mxu0 %v1735
      %1790 = vmatprep.subr.mxu0 0.0
      %1791 = vmatpush1.msra.mxu0 %v1734
      %1792 = vmatprep.subr.mxu0 0.0
      %1793 = vmatpush1.msra.mxu0 %v1733
      %1794 = vmatprep.subr.mxu0 0.0
      %1795 = vmatpush1.msra.mxu0 %v1732
      %1796 = vmatprep.subr.mxu0 0.0
      %1797 = vmatpush2.msra.mxu0 %v1763
      %1798 = vmatprep.subr.mxu0 0.0
      %1799 = vmatpush2.msra.mxu0 %v1762
      %1800 = vmatprep.subr.mxu0 0.0
      %1801 = vmatpush2.msra.mxu0 %v1761
      %1802 = vmatprep.subr.mxu0 0.0
      %1803 = vmatpush2.msra.mxu0 %v1760
      %1804 = vmatprep.subr.mxu0 0.0
      %1805 = vmatpush2.msra.mxu0 %v1759
      %1806 = vmatprep.subr.mxu0 0.0
      %1807 = vmatpush2.msra.mxu0 %v1758
      %1808 = vmatprep.subr.mxu0 0.0
      %1809 = vmatpush2.msra.mxu0 %v1757
      %1810 = vmatprep.subr.mxu0 0.0
      %1811 = vmatpush2.msra.mxu0 %v1756
      %1812 = vmatprep.subr.mxu0 0.0
      %1813 = vmatpush2.msra.mxu0 %v1755
      %1814 = vmatprep.subr.mxu0 0.0
      %1815 = vmatpush2.msra.mxu0 %v1754
      %1816 = vmatprep.subr.mxu0 0.0
      %1817 = vmatpush2.msra.mxu0 %v1753
      %1818 = vmatprep.subr.mxu0 0.0
      %1819 = vmatpush2.msra.mxu0 %v1752
      %1820 = vmatprep.subr.mxu0 0.0
      %1821 = vmatpush2.msra.mxu0 %v1751
      %1822 = vmatprep.subr.mxu0 0.0
      %1823 = vmatpush2.msra.mxu0 %v1750
      %1824 = vmatprep.subr.mxu0 0.0
      %1825 = vmatpush2.msra.mxu0 %v1749
      %1826 = vmatprep.subr.mxu0 0.0
      %1827 = vmatpush2.msra.mxu0 %v1748
      %1828 = vmatprep.mubr.f32.mxu0 %v453
      %1829 = vmatmul.mubr.f32.gmra.mxu0 %v452
      %v1830 = vpop.f32.mrf.mxu0
      %v1831 = vadd.f32 0.0, %v1830
      %v1832 = vpop.f32.mrf.mxu0
      %1833 = vmatprep.mubr.f32.mxu0 %v455
      %1834 = vmatmul.mubr.f32.gmra.mxu0 %v454
      %v1835 = vpop.f32.mrf.mxu0
      %v1836 = vadd.f32 0.0, %v1835
      %v1837 = vpop.f32.mrf.mxu0
      %1838 = vdwg.mxu0
      %s1839 = scalar_lea.vmem %s4, 192
      %v1840 = vld [vmem:[%s1839] sm:$0xff]
      %v1841 = vld [vmem:[%s1839 + $0x8] sm:$0xff]
      %v1842 = vld [vmem:[%s1839 + $0x10] sm:$0xff]
      %v1843 = vld [vmem:[%s1839 + $0x18] sm:$0xff]
      %v1845 = vsel %vm680, %v1840, 0
      %v1848 = vsel %vm680, %v1841, 0
      %v1851 = vsel %vm680, %v1842, 0
      %v1854 = vsel %vm680, %v1843, 0
      %1856 = vmatprep.subr.mxu0 0.0
      %1857 = vmatpush1.msra.mxu0 0.0
      %1858 = vmatprep.subr.mxu0 0.0
      %1859 = vmatpush1.msra.mxu0 0.0
      %1860 = vmatprep.subr.mxu0 0.0
      %1861 = vmatpush1.msra.mxu0 0.0
      %1862 = vmatprep.subr.mxu0 0.0
      %1863 = vmatpush1.msra.mxu0 0.0
      %1864 = vmatprep.subr.mxu0 0.0
      %1865 = vmatpush1.msra.mxu0 0.0
      %1866 = vmatprep.subr.mxu0 0.0
      %1867 = vmatpush1.msra.mxu0 0.0
      %1868 = vmatprep.subr.mxu0 0.0
      %1869 = vmatpush1.msra.mxu0 0.0
      %1870 = vmatprep.subr.mxu0 0.0
      %1871 = vmatpush1.msra.mxu0 0.0
      %1872 = vmatprep.subr.mxu0 0.0
      %1873 = vmatpush1.msra.mxu0 0.0
      %1874 = vmatprep.subr.mxu0 0.0
      %1875 = vmatpush1.msra.mxu0 0.0
      %1876 = vmatprep.subr.mxu0 0.0
      %1877 = vmatpush1.msra.mxu0 0.0
      %1878 = vmatprep.subr.mxu0 0.0
      %1879 = vmatpush1.msra.mxu0 0.0
      %1880 = vmatprep.subr.mxu0 0.0
      %1881 = vmatpush1.msra.mxu0 0.0
      %1882 = vmatprep.subr.mxu0 0.0
      %1883 = vmatpush1.msra.mxu0 0.0
      %1884 = vmatprep.subr.mxu0 0.0
      %1885 = vmatpush1.msra.mxu0 %v1836
      %1886 = vmatprep.subr.mxu0 0.0
      %1887 = vmatpush1.msra.mxu0 %v1831
      %1888 = vmatprep.subr.mxu0 0.0
      %1889 = vmatpush2.msra.mxu0 0.0
      %1890 = vmatprep.subr.mxu0 0.0
      %1891 = vmatpush2.msra.mxu0 0.0
      %1892 = vmatprep.subr.mxu0 0.0
      %1893 = vmatpush2.msra.mxu0 0.0
      %1894 = vmatprep.subr.mxu0 0.0
      %1895 = vmatpush2.msra.mxu0 0.0
      %1896 = vmatprep.subr.mxu0 0.0
      %1897 = vmatpush2.msra.mxu0 0.0
      %1898 = vmatprep.subr.mxu0 0.0
      %1899 = vmatpush2.msra.mxu0 0.0
      %1900 = vmatprep.subr.mxu0 0.0
      %1901 = vmatpush2.msra.mxu0 0.0
      %1902 = vmatprep.subr.mxu0 0.0
      %1903 = vmatpush2.msra.mxu0 0.0
      %1904 = vmatprep.subr.mxu0 0.0
      %1905 = vmatpush2.msra.mxu0 0.0
      %1906 = vmatprep.subr.mxu0 0.0
      %1907 = vmatpush2.msra.mxu0 0.0
      %1908 = vmatprep.subr.mxu0 0.0
      %1909 = vmatpush2.msra.mxu0 0.0
      %1910 = vmatprep.subr.mxu0 0.0
      %1911 = vmatpush2.msra.mxu0 0.0
      %1912 = vmatprep.subr.mxu0 0.0
      %1913 = vmatpush2.msra.mxu0 0.0
      %1914 = vmatprep.subr.mxu0 0.0
      %1915 = vmatpush2.msra.mxu0 0.0
      %1916 = vmatprep.subr.mxu0 0.0
      %1917 = vmatpush2.msra.mxu0 0.0
      %1918 = vmatprep.subr.mxu0 0.0
      %1919 = vmatpush2.msra.mxu0 0.0
      %1920 = vmatprep.mubr.f32.mxu0 0.0
      %1921 = vmatmul.mubr.f32.gmra.mxu0 %v1845
      %v1922 = vpop.f32.mrf.mxu0
      %v1923 = vadd.f32 0.0, %v1922
      %v1924 = vpop.f32.mrf.mxu0
      %1925 = vmatprep.mubr.f32.mxu0 0.0
      %1926 = vmatmul.mubr.f32.gmra.mxu0 %v1848
      %v1927 = vpop.f32.mrf.mxu0
      %v1928 = vadd.f32 0.0, %v1927
      %v1929 = vpop.f32.mrf.mxu0
      %1930 = vmatprep.mubr.f32.mxu0 0.0
      %1931 = vmatmul.mubr.f32.gmra.mxu0 %v1851
      %v1932 = vpop.f32.mrf.mxu0
      %v1933 = vadd.f32 0.0, %v1932
      %v1934 = vpop.f32.mrf.mxu0
      %1935 = vmatprep.mubr.f32.mxu0 0.0
      %1936 = vmatmul.mubr.f32.gmra.mxu0 %v1854
      %v1937 = vpop.f32.mrf.mxu0
      %v1938 = vadd.f32 0.0, %v1937
      %v1939 = vpop.f32.mrf.mxu0
      %1940 = vdwg.mxu0
      %v1941 = vadd.f32 %v1727, %v1923
      %v1942 = vadd.f32 %v1728, %v1928
      %v1943 = vadd.f32 %v1729, %v1933
      %v1944 = vadd.f32 %v1730, %v1938
      %s1945 = scalar_lea.vmem %s3, 1792
      %v1946 = vld [vmem:[%s1945] sm:$0xff]
      %v1947 = vld [vmem:[%s1945 + $0x8] sm:$0xff]
      %v1948 = vld [vmem:[%s1945 + $0x10] sm:$0xff]
      %v1949 = vld [vmem:[%s1945 + $0x18] sm:$0xff]
      %v1950 = vld [vmem:[%s1945 + $0x20] sm:$0xff]
      %v1951 = vld [vmem:[%s1945 + $0x28] sm:$0xff]
      %v1952 = vld [vmem:[%s1945 + $0x30] sm:$0xff]
      %v1953 = vld [vmem:[%s1945 + $0x38] sm:$0xff]
      %v1954 = vld [vmem:[%s1945 + $0x40] sm:$0xff]
      %v1955 = vld [vmem:[%s1945 + $0x48] sm:$0xff]
      %v1956 = vld [vmem:[%s1945 + $0x50] sm:$0xff]
      %v1957 = vld [vmem:[%s1945 + $0x58] sm:$0xff]
      %v1958 = vld [vmem:[%s1945 + $0x60] sm:$0xff]
      %v1959 = vld [vmem:[%s1945 + $0x68] sm:$0xff]
      %v1960 = vld [vmem:[%s1945 + $0x70] sm:$0xff]
      %v1961 = vld [vmem:[%s1945 + $0x78] sm:$0xff]
      %v1962 = vld [vmem:[%s1945 + $0x80] sm:$0xff]
      %v1963 = vld [vmem:[%s1945 + $0x88] sm:$0xff]
      %v1964 = vld [vmem:[%s1945 + $0x90] sm:$0xff]
      %v1965 = vld [vmem:[%s1945 + $0x98] sm:$0xff]
      %v1966 = vld [vmem:[%s1945 + $0xa0] sm:$0xff]
      %v1967 = vld [vmem:[%s1945 + $0xa8] sm:$0xff]
      %v1968 = vld [vmem:[%s1945 + $0xb0] sm:$0xff]
      %v1969 = vld [vmem:[%s1945 + $0xb8] sm:$0xff]
      %v1970 = vld [vmem:[%s1945 + $0xc0] sm:$0xff]
      %v1971 = vld [vmem:[%s1945 + $0xc8] sm:$0xff]
      %v1972 = vld [vmem:[%s1945 + $0xd0] sm:$0xff]
      %v1973 = vld [vmem:[%s1945 + $0xd8] sm:$0xff]
      %v1974 = vld [vmem:[%s1945 + $0xe0] sm:$0xff]
      %v1975 = vld [vmem:[%s1945 + $0xe8] sm:$0xff]
      %v1976 = vld [vmem:[%s1945 + $0xf0] sm:$0xff]
      %v1977 = vld [vmem:[%s1945 + $0xf8] sm:$0xff]
      %1978 = vmatprep.subr.mxu0 0.0
      %1979 = vmatpush1.msra.mxu0 %v1961
      %1980 = vmatprep.subr.mxu0 0.0
      %1981 = vmatpush1.msra.mxu0 %v1960
      %1982 = vmatprep.subr.mxu0 0.0
      %1983 = vmatpush1.msra.mxu0 %v1959
      %1984 = vmatprep.subr.mxu0 0.0
      %1985 = vmatpush1.msra.mxu0 %v1958
      %1986 = vmatprep.subr.mxu0 0.0
      %1987 = vmatpush1.msra.mxu0 %v1957
      %1988 = vmatprep.subr.mxu0 0.0
      %1989 = vmatpush1.msra.mxu0 %v1956
      %1990 = vmatprep.subr.mxu0 0.0
      %1991 = vmatpush1.msra.mxu0 %v1955
      %1992 = vmatprep.subr.mxu0 0.0
      %1993 = vmatpush1.msra.mxu0 %v1954
      %1994 = vmatprep.subr.mxu0 0.0
      %1995 = vmatpush1.msra.mxu0 %v1953
      %1996 = vmatprep.subr.mxu0 0.0
      %1997 = vmatpush1.msra.mxu0 %v1952
      %1998 = vmatprep.subr.mxu0 0.0
      %1999 = vmatpush1.msra.mxu0 %v1951
      %2000 = vmatprep.subr.mxu0 0.0
      %2001 = vmatpush1.msra.mxu0 %v1950
      %2002 = vmatprep.subr.mxu0 0.0
      %2003 = vmatpush1.msra.mxu0 %v1949
      %2004 = vmatprep.subr.mxu0 0.0
      %2005 = vmatpush1.msra.mxu0 %v1948
      %2006 = vmatprep.subr.mxu0 0.0
      %2007 = vmatpush1.msra.mxu0 %v1947
      %2008 = vmatprep.subr.mxu0 0.0
      %2009 = vmatpush1.msra.mxu0 %v1946
      %2010 = vmatprep.subr.mxu0 0.0
      %2011 = vmatpush2.msra.mxu0 %v1977
      %2012 = vmatprep.subr.mxu0 0.0
      %2013 = vmatpush2.msra.mxu0 %v1976
      %2014 = vmatprep.subr.mxu0 0.0
      %2015 = vmatpush2.msra.mxu0 %v1975
      %2016 = vmatprep.subr.mxu0 0.0
      %2017 = vmatpush2.msra.mxu0 %v1974
      %2018 = vmatprep.subr.mxu0 0.0
      %2019 = vmatpush2.msra.mxu0 %v1973
      %2020 = vmatprep.subr.mxu0 0.0
      %2021 = vmatpush2.msra.mxu0 %v1972
      %2022 = vmatprep.subr.mxu0 0.0
      %2023 = vmatpush2.msra.mxu0 %v1971
      %2024 = vmatprep.subr.mxu0 0.0
      %2025 = vmatpush2.msra.mxu0 %v1970
      %2026 = vmatprep.subr.mxu0 0.0
      %2027 = vmatpush2.msra.mxu0 %v1969
      %2028 = vmatprep.subr.mxu0 0.0
      %2029 = vmatpush2.msra.mxu0 %v1968
      %2030 = vmatprep.subr.mxu0 0.0
      %2031 = vmatpush2.msra.mxu0 %v1967
      %2032 = vmatprep.subr.mxu0 0.0
      %2033 = vmatpush2.msra.mxu0 %v1966
      %2034 = vmatprep.subr.mxu0 0.0
      %2035 = vmatpush2.msra.mxu0 %v1965
      %2036 = vmatprep.subr.mxu0 0.0
      %2037 = vmatpush2.msra.mxu0 %v1964
      %2038 = vmatprep.subr.mxu0 0.0
      %2039 = vmatpush2.msra.mxu0 %v1963
      %2040 = vmatprep.subr.mxu0 0.0
      %2041 = vmatpush2.msra.mxu0 %v1962
      %2042 = vmatprep.mubr.f32.mxu0 %v453
      %2043 = vmatmul.mubr.f32.gmra.mxu0 %v452
      %v2044 = vpop.f32.mrf.mxu0
      %v2045 = vadd.f32 0.0, %v2044
      %v2046 = vpop.f32.mrf.mxu0
      %2047 = vmatprep.mubr.f32.mxu0 %v455
      %2048 = vmatmul.mubr.f32.gmra.mxu0 %v454
      %v2049 = vpop.f32.mrf.mxu0
      %v2050 = vadd.f32 0.0, %v2049
      %v2051 = vpop.f32.mrf.mxu0
      %2052 = vdwg.mxu0
      %s2053 = scalar_lea.vmem %s4, 224
      %v2054 = vld [vmem:[%s2053] sm:$0xff]
      %v2055 = vld [vmem:[%s2053 + $0x8] sm:$0xff]
      %v2056 = vld [vmem:[%s2053 + $0x10] sm:$0xff]
      %v2057 = vld [vmem:[%s2053 + $0x18] sm:$0xff]
      %v2059 = vsel %vm680, %v2054, 0
      %v2062 = vsel %vm680, %v2055, 0
      %v2065 = vsel %vm680, %v2056, 0
      %v2068 = vsel %vm680, %v2057, 0
      %2070 = vmatprep.subr.mxu0 0.0
      %2071 = vmatpush1.msra.mxu0 0.0
      %2072 = vmatprep.subr.mxu0 0.0
      %2073 = vmatpush1.msra.mxu0 0.0
      %2074 = vmatprep.subr.mxu0 0.0
      %2075 = vmatpush1.msra.mxu0 0.0
      %2076 = vmatprep.subr.mxu0 0.0
      %2077 = vmatpush1.msra.mxu0 0.0
      %2078 = vmatprep.subr.mxu0 0.0
      %2079 = vmatpush1.msra.mxu0 0.0
      %2080 = vmatprep.subr.mxu0 0.0
      %2081 = vmatpush1.msra.mxu0 0.0
      %2082 = vmatprep.subr.mxu0 0.0
      %2083 = vmatpush1.msra.mxu0 0.0
      %2084 = vmatprep.subr.mxu0 0.0
      %2085 = vmatpush1.msra.mxu0 0.0
      %2086 = vmatprep.subr.mxu0 0.0
      %2087 = vmatpush1.msra.mxu0 0.0
      %2088 = vmatprep.subr.mxu0 0.0
      %2089 = vmatpush1.msra.mxu0 0.0
      %2090 = vmatprep.subr.mxu0 0.0
      %2091 = vmatpush1.msra.mxu0 0.0
      %2092 = vmatprep.subr.mxu0 0.0
      %2093 = vmatpush1.msra.mxu0 0.0
      %2094 = vmatprep.subr.mxu0 0.0
      %2095 = vmatpush1.msra.mxu0 0.0
      %2096 = vmatprep.subr.mxu0 0.0
      %2097 = vmatpush1.msra.mxu0 0.0
      %2098 = vmatprep.subr.mxu0 0.0
      %2099 = vmatpush1.msra.mxu0 %v2050
      %2100 = vmatprep.subr.mxu0 0.0
      %2101 = vmatpush1.msra.mxu0 %v2045
      %2102 = vmatprep.subr.mxu0 0.0
      %2103 = vmatpush2.msra.mxu0 0.0
      %2104 = vmatprep.subr.mxu0 0.0
      %2105 = vmatpush2.msra.mxu0 0.0
      %2106 = vmatprep.subr.mxu0 0.0
      %2107 = vmatpush2.msra.mxu0 0.0
      %2108 = vmatprep.subr.mxu0 0.0
      %2109 = vmatpush2.msra.mxu0 0.0
      %2110 = vmatprep.subr.mxu0 0.0
      %2111 = vmatpush2.msra.mxu0 0.0
      %2112 = vmatprep.subr.mxu0 0.0
      %2113 = vmatpush2.msra.mxu0 0.0
      %2114 = vmatprep.subr.mxu0 0.0
      %2115 = vmatpush2.msra.mxu0 0.0
      %2116 = vmatprep.subr.mxu0 0.0
      %2117 = vmatpush2.msra.mxu0 0.0
      %2118 = vmatprep.subr.mxu0 0.0
      %2119 = vmatpush2.msra.mxu0 0.0
      %2120 = vmatprep.subr.mxu0 0.0
      %2121 = vmatpush2.msra.mxu0 0.0
      %2122 = vmatprep.subr.mxu0 0.0
      %2123 = vmatpush2.msra.mxu0 0.0
      %2124 = vmatprep.subr.mxu0 0.0
      %2125 = vmatpush2.msra.mxu0 0.0
      %2126 = vmatprep.subr.mxu0 0.0
      %2127 = vmatpush2.msra.mxu0 0.0
      %2128 = vmatprep.subr.mxu0 0.0
      %2129 = vmatpush2.msra.mxu0 0.0
      %2130 = vmatprep.subr.mxu0 0.0
      %2131 = vmatpush2.msra.mxu0 0.0
      %2132 = vmatprep.subr.mxu0 0.0
      %2133 = vmatpush2.msra.mxu0 0.0
      %2134 = vmatprep.mubr.f32.mxu0 0.0
      %2135 = vmatmul.mubr.f32.gmra.mxu0 %v2059
      %v2136 = vpop.f32.mrf.mxu0
      %v2137 = vadd.f32 0.0, %v2136
      %v2138 = vpop.f32.mrf.mxu0
      %2139 = vmatprep.mubr.f32.mxu0 0.0
      %2140 = vmatmul.mubr.f32.gmra.mxu0 %v2062
      %v2141 = vpop.f32.mrf.mxu0
      %v2142 = vadd.f32 0.0, %v2141
      %v2143 = vpop.f32.mrf.mxu0
      %2144 = vmatprep.mubr.f32.mxu0 0.0
      %2145 = vmatmul.mubr.f32.gmra.mxu0 %v2065
      %v2146 = vpop.f32.mrf.mxu0
      %v2147 = vadd.f32 0.0, %v2146
      %v2148 = vpop.f32.mrf.mxu0
      %2149 = vmatprep.mubr.f32.mxu0 0.0
      %2150 = vmatmul.mubr.f32.gmra.mxu0 %v2068
      %v2151 = vpop.f32.mrf.mxu0
      %v2152 = vadd.f32 0.0, %v2151
      %v2153 = vpop.f32.mrf.mxu0
      %2154 = vdwg.mxu0
      %v2155 = vadd.f32 %v1941, %v2137
      %v2156 = vadd.f32 %v1942, %v2142
      %v2157 = vadd.f32 %v1943, %v2147
      %v2158 = vadd.f32 %v1944, %v2152
      %s2159 = scalar_lea.vmem %s3, 2048
      %v2160 = vld [vmem:[%s2159] sm:$0xff]
      %v2161 = vld [vmem:[%s2159 + $0x8] sm:$0xff]
      %v2162 = vld [vmem:[%s2159 + $0x10] sm:$0xff]
      %v2163 = vld [vmem:[%s2159 + $0x18] sm:$0xff]
      %v2164 = vld [vmem:[%s2159 + $0x20] sm:$0xff]
      %v2165 = vld [vmem:[%s2159 + $0x28] sm:$0xff]
      %v2166 = vld [vmem:[%s2159 + $0x30] sm:$0xff]
      %v2167 = vld [vmem:[%s2159 + $0x38] sm:$0xff]
      %v2168 = vld [vmem:[%s2159 + $0x40] sm:$0xff]
      %v2169 = vld [vmem:[%s2159 + $0x48] sm:$0xff]
      %v2170 = vld [vmem:[%s2159 + $0x50] sm:$0xff]
      %v2171 = vld [vmem:[%s2159 + $0x58] sm:$0xff]
      %v2172 = vld [vmem:[%s2159 + $0x60] sm:$0xff]
      %v2173 = vld [vmem:[%s2159 + $0x68] sm:$0xff]
      %v2174 = vld [vmem:[%s2159 + $0x70] sm:$0xff]
      %v2175 = vld [vmem:[%s2159 + $0x78] sm:$0xff]
      %v2176 = vld [vmem:[%s2159 + $0x80] sm:$0xff]
      %v2177 = vld [vmem:[%s2159 + $0x88] sm:$0xff]
      %v2178 = vld [vmem:[%s2159 + $0x90] sm:$0xff]
      %v2179 = vld [vmem:[%s2159 + $0x98] sm:$0xff]
      %v2180 = vld [vmem:[%s2159 + $0xa0] sm:$0xff]
      %v2181 = vld [vmem:[%s2159 + $0xa8] sm:$0xff]
      %v2182 = vld [vmem:[%s2159 + $0xb0] sm:$0xff]
      %v2183 = vld [vmem:[%s2159 + $0xb8] sm:$0xff]
      %v2184 = vld [vmem:[%s2159 + $0xc0] sm:$0xff]
      %v2185 = vld [vmem:[%s2159 + $0xc8] sm:$0xff]
      %v2186 = vld [vmem:[%s2159 + $0xd0] sm:$0xff]
      %v2187 = vld [vmem:[%s2159 + $0xd8] sm:$0xff]
      %v2188 = vld [vmem:[%s2159 + $0xe0] sm:$0xff]
      %v2189 = vld [vmem:[%s2159 + $0xe8] sm:$0xff]
      %v2190 = vld [vmem:[%s2159 + $0xf0] sm:$0xff]
      %v2191 = vld [vmem:[%s2159 + $0xf8] sm:$0xff]
      %2192 = vmatprep.subr.mxu0 0.0
      %2193 = vmatpush1.msra.mxu0 %v2175
      %2194 = vmatprep.subr.mxu0 0.0
      %2195 = vmatpush1.msra.mxu0 %v2174
      %2196 = vmatprep.subr.mxu0 0.0
      %2197 = vmatpush1.msra.mxu0 %v2173
      %2198 = vmatprep.subr.mxu0 0.0
      %2199 = vmatpush1.msra.mxu0 %v2172
      %2200 = vmatprep.subr.mxu0 0.0
      %2201 = vmatpush1.msra.mxu0 %v2171
      %2202 = vmatprep.subr.mxu0 0.0
      %2203 = vmatpush1.msra.mxu0 %v2170
      %2204 = vmatprep.subr.mxu0 0.0
      %2205 = vmatpush1.msra.mxu0 %v2169
      %2206 = vmatprep.subr.mxu0 0.0
      %2207 = vmatpush1.msra.mxu0 %v2168
      %2208 = vmatprep.subr.mxu0 0.0
      %2209 = vmatpush1.msra.mxu0 %v2167
      %2210 = vmatprep.subr.mxu0 0.0
      %2211 = vmatpush1.msra.mxu0 %v2166
      %2212 = vmatprep.subr.mxu0 0.0
      %2213 = vmatpush1.msra.mxu0 %v2165
      %2214 = vmatprep.subr.mxu0 0.0
      %2215 = vmatpush1.msra.mxu0 %v2164
      %2216 = vmatprep.subr.mxu0 0.0
      %2217 = vmatpush1.msra.mxu0 %v2163
      %2218 = vmatprep.subr.mxu0 0.0
      %2219 = vmatpush1.msra.mxu0 %v2162
      %2220 = vmatprep.subr.mxu0 0.0
      %2221 = vmatpush1.msra.mxu0 %v2161
      %2222 = vmatprep.subr.mxu0 0.0
      %2223 = vmatpush1.msra.mxu0 %v2160
      %2224 = vmatprep.subr.mxu0 0.0
      %2225 = vmatpush2.msra.mxu0 %v2191
      %2226 = vmatprep.subr.mxu0 0.0
      %2227 = vmatpush2.msra.mxu0 %v2190
      %2228 = vmatprep.subr.mxu0 0.0
      %2229 = vmatpush2.msra.mxu0 %v2189
      %2230 = vmatprep.subr.mxu0 0.0
      %2231 = vmatpush2.msra.mxu0 %v2188
      %2232 = vmatprep.subr.mxu0 0.0
      %2233 = vmatpush2.msra.mxu0 %v2187
      %2234 = vmatprep.subr.mxu0 0.0
      %2235 = vmatpush2.msra.mxu0 %v2186
      %2236 = vmatprep.subr.mxu0 0.0
      %2237 = vmatpush2.msra.mxu0 %v2185
      %2238 = vmatprep.subr.mxu0 0.0
      %2239 = vmatpush2.msra.mxu0 %v2184
      %2240 = vmatprep.subr.mxu0 0.0
      %2241 = vmatpush2.msra.mxu0 %v2183
      %2242 = vmatprep.subr.mxu0 0.0
      %2243 = vmatpush2.msra.mxu0 %v2182
      %2244 = vmatprep.subr.mxu0 0.0
      %2245 = vmatpush2.msra.mxu0 %v2181
      %2246 = vmatprep.subr.mxu0 0.0
      %2247 = vmatpush2.msra.mxu0 %v2180
      %2248 = vmatprep.subr.mxu0 0.0
      %2249 = vmatpush2.msra.mxu0 %v2179
      %2250 = vmatprep.subr.mxu0 0.0
      %2251 = vmatpush2.msra.mxu0 %v2178
      %2252 = vmatprep.subr.mxu0 0.0
      %2253 = vmatpush2.msra.mxu0 %v2177
      %2254 = vmatprep.subr.mxu0 0.0
      %2255 = vmatpush2.msra.mxu0 %v2176
      %2256 = vmatprep.mubr.f32.mxu0 %v453
      %2257 = vmatmul.mubr.f32.gmra.mxu0 %v452
      %v2258 = vpop.f32.mrf.mxu0
      %v2259 = vadd.f32 0.0, %v2258
      %v2260 = vpop.f32.mrf.mxu0
      %2261 = vmatprep.mubr.f32.mxu0 %v455
      %2262 = vmatmul.mubr.f32.gmra.mxu0 %v454
      %v2263 = vpop.f32.mrf.mxu0
      %v2264 = vadd.f32 0.0, %v2263
      %v2265 = vpop.f32.mrf.mxu0
      %2266 = vdwg.mxu0
      %s2267 = scalar_lea.vmem %s4, 256
      %v2268 = vld [vmem:[%s2267] sm:$0xff]
      %v2269 = vld [vmem:[%s2267 + $0x8] sm:$0xff]
      %v2270 = vld [vmem:[%s2267 + $0x10] sm:$0xff]
      %v2271 = vld [vmem:[%s2267 + $0x18] sm:$0xff]
      %v2273 = vsel %vm680, %v2268, 0
      %v2276 = vsel %vm680, %v2269, 0
      %v2279 = vsel %vm680, %v2270, 0
      %v2282 = vsel %vm680, %v2271, 0
      %2284 = vmatprep.subr.mxu0 0.0
      %2285 = vmatpush1.msra.mxu0 0.0
      %2286 = vmatprep.subr.mxu0 0.0
      %2287 = vmatpush1.msra.mxu0 0.0
      %2288 = vmatprep.subr.mxu0 0.0
      %2289 = vmatpush1.msra.mxu0 0.0
      %2290 = vmatprep.subr.mxu0 0.0
      %2291 = vmatpush1.msra.mxu0 0.0
      %2292 = vmatprep.subr.mxu0 0.0
      %2293 = vmatpush1.msra.mxu0 0.0
      %2294 = vmatprep.subr.mxu0 0.0
      %2295 = vmatpush1.msra.mxu0 0.0
      %2296 = vmatprep.subr.mxu0 0.0
      %2297 = vmatpush1.msra.mxu0 0.0
      %2298 = vmatprep.subr.mxu0 0.0
      %2299 = vmatpush1.msra.mxu0 0.0
      %2300 = vmatprep.subr.mxu0 0.0
      %2301 = vmatpush1.msra.mxu0 0.0
      %2302 = vmatprep.subr.mxu0 0.0
      %2303 = vmatpush1.msra.mxu0 0.0
      %2304 = vmatprep.subr.mxu0 0.0
      %2305 = vmatpush1.msra.mxu0 0.0
      %2306 = vmatprep.subr.mxu0 0.0
      %2307 = vmatpush1.msra.mxu0 0.0
      %2308 = vmatprep.subr.mxu0 0.0
      %2309 = vmatpush1.msra.mxu0 0.0
      %2310 = vmatprep.subr.mxu0 0.0
      %2311 = vmatpush1.msra.mxu0 0.0
      %2312 = vmatprep.subr.mxu0 0.0
      %2313 = vmatpush1.msra.mxu0 %v2264
      %2314 = vmatprep.subr.mxu0 0.0
      %2315 = vmatpush1.msra.mxu0 %v2259
      %2316 = vmatprep.subr.mxu0 0.0
      %2317 = vmatpush2.msra.mxu0 0.0
      %2318 = vmatprep.subr.mxu0 0.0
      %2319 = vmatpush2.msra.mxu0 0.0
      %2320 = vmatprep.subr.mxu0 0.0
      %2321 = vmatpush2.msra.mxu0 0.0
      %2322 = vmatprep.subr.mxu0 0.0
      %2323 = vmatpush2.msra.mxu0 0.0
      %2324 = vmatprep.subr.mxu0 0.0
      %2325 = vmatpush2.msra.mxu0 0.0
      %2326 = vmatprep.subr.mxu0 0.0
      %2327 = vmatpush2.msra.mxu0 0.0
      %2328 = vmatprep.subr.mxu0 0.0
      %2329 = vmatpush2.msra.mxu0 0.0
      %2330 = vmatprep.subr.mxu0 0.0
      %2331 = vmatpush2.msra.mxu0 0.0
      %2332 = vmatprep.subr.mxu0 0.0
      %2333 = vmatpush2.msra.mxu0 0.0
      %2334 = vmatprep.subr.mxu0 0.0
      %2335 = vmatpush2.msra.mxu0 0.0
      %2336 = vmatprep.subr.mxu0 0.0
      %2337 = vmatpush2.msra.mxu0 0.0
      %2338 = vmatprep.subr.mxu0 0.0
      %2339 = vmatpush2.msra.mxu0 0.0
      %2340 = vmatprep.subr.mxu0 0.0
      %2341 = vmatpush2.msra.mxu0 0.0
      %2342 = vmatprep.subr.mxu0 0.0
      %2343 = vmatpush2.msra.mxu0 0.0
      %2344 = vmatprep.subr.mxu0 0.0
      %2345 = vmatpush2.msra.mxu0 0.0
      %2346 = vmatprep.subr.mxu0 0.0
      %2347 = vmatpush2.msra.mxu0 0.0
      %2348 = vmatprep.mubr.f32.mxu0 0.0
      %2349 = vmatmul.mubr.f32.gmra.mxu0 %v2273
      %v2350 = vpop.f32.mrf.mxu0
      %v2351 = vadd.f32 0.0, %v2350
      %v2352 = vpop.f32.mrf.mxu0
      %2353 = vmatprep.mubr.f32.mxu0 0.0
      %2354 = vmatmul.mubr.f32.gmra.mxu0 %v2276
      %v2355 = vpop.f32.mrf.mxu0
      %v2356 = vadd.f32 0.0, %v2355
      %v2357 = vpop.f32.mrf.mxu0
      %2358 = vmatprep.mubr.f32.mxu0 0.0
      %2359 = vmatmul.mubr.f32.gmra.mxu0 %v2279
      %v2360 = vpop.f32.mrf.mxu0
      %v2361 = vadd.f32 0.0, %v2360
      %v2362 = vpop.f32.mrf.mxu0
      %2363 = vmatprep.mubr.f32.mxu0 0.0
      %2364 = vmatmul.mubr.f32.gmra.mxu0 %v2282
      %v2365 = vpop.f32.mrf.mxu0
      %v2366 = vadd.f32 0.0, %v2365
      %v2367 = vpop.f32.mrf.mxu0
      %2368 = vdwg.mxu0
      %v2369 = vadd.f32 %v2155, %v2351
      %v2370 = vadd.f32 %v2156, %v2356
      %v2371 = vadd.f32 %v2157, %v2361
      %v2372 = vadd.f32 %v2158, %v2366
      %v2373 = vld [vmem:[%s5] sm:$0xff]
      %v2374 = vld [vmem:[%s5 + $0x8] sm:$0xff]
      %v2375 = vld [vmem:[%s5 + $0x10] sm:$0xff]
      %v2376 = vld [vmem:[%s5 + $0x18] sm:$0xff]
      %2378 = vset.pattern.permute.xlu0 0
      %2379 = vperm.xlu0 %2378, %v2373
      %v2380 = vpop.permute.xlu0 %2379
      %2383 = vset.pattern.permute.xlu0 0
      %2384 = vperm.xlu0 %2383, %v2374
      %v2385 = vpop.permute.xlu0 %2384
      %2388 = vset.pattern.permute.xlu0 0
      %2389 = vperm.xlu0 %2388, %v2375
      %v2390 = vpop.permute.xlu0 %2389
      %2393 = vset.pattern.permute.xlu0 0
      %2394 = vperm.xlu0 %2393, %v2376
      %v2395 = vpop.permute.xlu0 %2394
      %v2397 = vadd.f32 %v2369, %v2380
      %v2398 = vadd.f32 %v2370, %v2385
      %v2399 = vadd.f32 %v2371, %v2390
      %v2400 = vadd.f32 %v2372, %v2395
      %vm2401 = vcmp.gt.f32.partialorder %v2397, 0.0
      %vm2402 = vcmp.gt.f32.partialorder %v2398, 0.0
      %vm2403 = vcmp.gt.f32.partialorder %v2399, 0.0
      %vm2404 = vcmp.gt.f32.partialorder %v2400, 0.0
      %v2405 = vmul.f32 %v2397, 0.1
      %v2406 = vmul.f32 %v2398, 0.1
      %v2407 = vmul.f32 %v2399, 0.1
      %v2408 = vmul.f32 %v2400, 0.1
      %v2409 = vsel %vm2401, %v2397, %v2405
      %v2410 = vsel %vm2402, %v2398, %v2406
      %v2411 = vsel %vm2403, %v2399, %v2407
      %v2412 = vsel %vm2404, %v2400, %v2408
      %v2413 = vld [vmem:[%s6] sm:$0xff]
      %v2414 = vld [vmem:[%s6 + $0x8] sm:$0xff]
      %v2415 = vld [vmem:[%s6 + $0x10] sm:$0xff]
      %v2416 = vld [vmem:[%s6 + $0x18] sm:$0x7]
      %v2417 = vld [vmem:[%s7] sm:$0xff]
      %v2418 = vld [vmem:[%s7 + $0x8] sm:$0xff]
      %v2419 = vld [vmem:[%s7 + $0x10] sm:$0xff]
      %v2420 = vld [vmem:[%s7 + $0x18] sm:$0x7]
      %2422 = vset.pattern.permute.xlu0 0
      %2423 = vperm.xlu0 %2422, %v2417
      %v2424 = vpop.permute.xlu0 %2423
      %2427 = vset.pattern.permute.xlu0 0
      %2428 = vperm.xlu0 %2427, %v2418
      %v2429 = vpop.permute.xlu0 %2428
      %2432 = vset.pattern.permute.xlu0 0
      %2433 = vperm.xlu0 %2432, %v2419
      %v2434 = vpop.permute.xlu0 %2433
      %2437 = vset.pattern.permute.xlu0 0
      %2438 = vperm.xlu0 %2437, %v2420
      %v2439 = vpop.permute.xlu0 %2438
      %vm2441 = vcmask 261120
      %v2443 = vsel %vm2441, %v2413, 0
      %v2446 = vsel %vm2441, %v2414, 0
      %v2449 = vsel %vm2441, %v2415, 0
      %v2452 = vsel %vm2441, %v2416, 0
      %2454 = vmatprep.subr.mxu0 0.0
      %2455 = vmatpush1.msra.mxu0 0.0
      %2456 = vmatprep.subr.mxu0 0.0
      %2457 = vmatpush1.msra.mxu0 0.0
      %2458 = vmatprep.subr.mxu0 0.0
      %2459 = vmatpush1.msra.mxu0 0.0
      %2460 = vmatprep.subr.mxu0 0.0
      %2461 = vmatpush1.msra.mxu0 0.0
      %2462 = vmatprep.subr.mxu0 0.0
      %2463 = vmatpush1.msra.mxu0 0.0
      %2464 = vmatprep.subr.mxu0 0.0
      %2465 = vmatpush1.msra.mxu0 0.0
      %2466 = vmatprep.subr.mxu0 0.0
      %2467 = vmatpush1.msra.mxu0 0.0
      %2468 = vmatprep.subr.mxu0 0.0
      %2469 = vmatpush1.msra.mxu0 0.0
      %2470 = vmatprep.subr.mxu0 0.0
      %2471 = vmatpush1.msra.mxu0 0.0
      %2472 = vmatprep.subr.mxu0 0.0
      %2473 = vmatpush1.msra.mxu0 0.0
      %2474 = vmatprep.subr.mxu0 0.0
      %2475 = vmatpush1.msra.mxu0 0.0
      %2476 = vmatprep.subr.mxu0 0.0
      %2477 = vmatpush1.msra.mxu0 0.0
      %2478 = vmatprep.subr.mxu0 0.0
      %2479 = vmatpush1.msra.mxu0 %v2412
      %2480 = vmatprep.subr.mxu0 0.0
      %2481 = vmatpush1.msra.mxu0 %v2411
      %2482 = vmatprep.subr.mxu0 0.0
      %2483 = vmatpush1.msra.mxu0 %v2410
      %2484 = vmatprep.subr.mxu0 0.0
      %2485 = vmatpush1.msra.mxu0 %v2409
      %2486 = vmatprep.subr.mxu0 0.0
      %2487 = vmatpush2.msra.mxu0 0.0
      %2488 = vmatprep.subr.mxu0 0.0
      %2489 = vmatpush2.msra.mxu0 0.0
      %2490 = vmatprep.subr.mxu0 0.0
      %2491 = vmatpush2.msra.mxu0 0.0
      %2492 = vmatprep.subr.mxu0 0.0
      %2493 = vmatpush2.msra.mxu0 0.0
      %2494 = vmatprep.subr.mxu0 0.0
      %2495 = vmatpush2.msra.mxu0 0.0
      %2496 = vmatprep.subr.mxu0 0.0
      %2497 = vmatpush2.msra.mxu0 0.0
      %2498 = vmatprep.subr.mxu0 0.0
      %2499 = vmatpush2.msra.mxu0 0.0
      %2500 = vmatprep.subr.mxu0 0.0
      %2501 = vmatpush2.msra.mxu0 0.0
      %2502 = vmatprep.subr.mxu0 0.0
      %2503 = vmatpush2.msra.mxu0 0.0
      %2504 = vmatprep.subr.mxu0 0.0
      %2505 = vmatpush2.msra.mxu0 0.0
      %2506 = vmatprep.subr.mxu0 0.0
      %2507 = vmatpush2.msra.mxu0 0.0
      %2508 = vmatprep.subr.mxu0 0.0
      %2509 = vmatpush2.msra.mxu0 0.0
      %2510 = vmatprep.subr.mxu0 0.0
      %2511 = vmatpush2.msra.mxu0 0.0
      %2512 = vmatprep.subr.mxu0 0.0
      %2513 = vmatpush2.msra.mxu0 0.0
      %2514 = vmatprep.subr.mxu0 0.0
      %2515 = vmatpush2.msra.mxu0 0.0
      %2516 = vmatprep.subr.mxu0 0.0
      %2517 = vmatpush2.msra.mxu0 0.0
      %2518 = vmatprep.mubr.f32.mxu0 0.0
      %2519 = vmatmul.mubr.f32.gmra.mxu0 %v2443
      %v2520 = vpop.f32.mrf.mxu0
      %v2521 = vadd.f32 %v2424, %v2520
      %v2522 = vpop.f32.mrf.mxu0
      %2523 = vmatprep.mubr.f32.mxu0 0.0
      %2524 = vmatmul.mubr.f32.gmra.mxu0 %v2446
      %v2525 = vpop.f32.mrf.mxu0
      %v2526 = vadd.f32 %v2429, %v2525
      %v2527 = vpop.f32.mrf.mxu0
      %2528 = vmatprep.mubr.f32.mxu0 0.0
      %2529 = vmatmul.mubr.f32.gmra.mxu0 %v2449
      %v2530 = vpop.f32.mrf.mxu0
      %v2531 = vadd.f32 %v2434, %v2530
      %v2532 = vpop.f32.mrf.mxu0
      %2533 = vmatprep.mubr.f32.mxu0 0.0
      %2534 = vmatmul.mubr.f32.gmra.mxu0 %v2452
      %v2535 = vpop.f32.mrf.mxu0
      %v2536 = vadd.f32 %v2439, %v2535
      %v2537 = vpop.f32.mrf.mxu0
      %2538 = vdwg.mxu0
      %v2539 = vld [vmem:[%s8] sm:$0x1]
      %v2540 = vld [vmem:[%s8 + $0x1] sm:$0x1]
      %v2541 = vxor.u32 %v2521, 2147483648
      %v2542 = vmul.f32 %v2541, 1.442695
      %v2543 = vpow.pop %v2542
      %v2544 = vadd.f32 %v2543, 1.0
      %v2545 = vrcp.pop %v2544
      %v2546 = vmul.f32 1.0, %v2545
      %v2547 = vadd.f32 %v2546, %v2539
      %v2548 = vmul.f32 %v2547, 4.0
      %v2550 = vrot.slane %v2540, 7
      %v2552 = vadd.f32 %v2546, %v2550
      %v2553 = vmul.f32 %v2552, 4.0
      %v2554 = vmin.f32 %v2521, 15.0
      %v2555 = vmul.f32 %v2554, 1.442695
      %v2556 = vpow.pop %v2555
      %v2557 = vmul.f32 %v2556, 4.0
      %v2558 = vmul.f32 %v2556, 6.0
      %v2559 = vxor.u32 %v2526, 2147483648
      %v2560 = vmul.f32 %v2559, 1.442695
      %v2561 = vpow.pop %v2560
      %v2562 = vadd.f32 %v2561, 1.0
      %v2563 = vrcp.pop %v2562
      %v2564 = vmul.f32 1.0, %v2563
      %vm2565 = vcmask 523269
      %v2566 = vsel %vm2565, %v2546, -inf
      %vm2567 = vcmask 516096
      %v2568 = vsel %vm2567, %v2564, -inf
      %v2569 = vmax.f32 %v2566, %v2568
      %v2570 = vrot.slane %v2569, 4
      %v2571 = vmax.f32 %v2569, %v2570
      %v2572 = vrot.slane %v2571, 2
      %v2573 = vmax.f32 %v2571, %v2572
      %v2574 = vrot.slane %v2573, 1
      %v2575 = vmax.f32 %v2573, %v2574
      %vm2576 = vcmp.ge.f32.partialorder %v2546, %v2575
      %v2577 = vmul.f32 %v2557, 0.5
      %v2579 = vrot.slane %v2577, 2
      %v2581 = vsub.f32 %v2548, %v2579
      %v2582 = vmul.f32 %v2558, 0.5
      %v2584 = vrot.slane %v2582, 2
      %v2586 = vsub.f32 %v2553, %v2584
      %v2587 = vadd.f32 %v2548, %v2579
      %v2588 = vadd.f32 %v2553, %v2584
      %vm2589 = vcmp.ge.f32.partialorder %v2546, 0.8
      %v2590 = vsel %vm2576, 1, 0
      %v2591 = vrot.slane %v2590, 1
      %vm2592 = vcmp.ne.s32.totalorder %v2591, 0
      %vm2593 = vmand %vm2589, %vm2592
      %v2595 = vrot.slane %v2558, 1
      %v2597 = vmul.f32 %v2557, %v2595
      %v2599 = vrot.slane %v2597, 6
      %v2601 = vsel %vm2593, %v2599, -1.0
      %v2602 = vsel %vm2593, 1, 0
      %v2603 = vcvt.s32.f32 %v2602
      %v2605 = vrot.slane %v2587, 6
      %v2608 = vrot.slane %v2588, 6
      %vm2610 = vcmask 1040384
      %v2611 = vsel %vm2610, %v2581, %v2586
      %vm2612 = vcmask 1041408
      %v2613 = vsel %vm2612, %v2611, %v2605
      %v2614 = vsel %vm360, %v2613, %v2608
      %vm2615 = vcmask 1043456
      %v2616 = vsel %vm2615, %v2614, %v2546
      %vm2617 = vcmask 1044480
      %v2618 = vsel %vm2617, %v2616, %v2575
      %v2620 = vrot.slane %v2539, 7
      %v2622 = vadd.f32 %v2564, %v2620
      %v2623 = vmul.f32 %v2622, 4.0
      %v2624 = vrot.slane %v2540, 6
      %v2626 = vadd.f32 %v2564, %v2624
      %v2627 = vmul.f32 %v2626, 4.0
      %v2628 = vmin.f32 %v2526, 15.0
      %v2629 = vmul.f32 %v2628, 1.442695
      %v2630 = vpow.pop %v2629
      %v2631 = vmul.f32 %v2630, 8.0
      %v2632 = vmul.f32 %v2630, 10.0
      %v2633 = vxor.u32 %v2531, 2147483648
      %v2634 = vmul.f32 %v2633, 1.442695
      %v2635 = vpow.pop %v2634
      %v2636 = vadd.f32 %v2635, 1.0
      %v2637 = vrcp.pop %v2636
      %v2638 = vmul.f32 1.0, %v2637
      %vm2639 = vcmask 523270
      %v2640 = vsel %vm2639, %v2564, -inf
      %vm2641 = vcmask 517120
      %v2642 = vsel %vm2641, %v2638, -inf
      %v2643 = vmax.f32 %v2640, %v2642
      %v2644 = vrot.slane %v2643, 4
      %v2645 = vmax.f32 %v2643, %v2644
      %v2646 = vrot.slane %v2645, 2
      %v2647 = vmax.f32 %v2645, %v2646
      %v2648 = vrot.slane %v2647, 1
      %v2649 = vmax.f32 %v2647, %v2648
      %vm2650 = vcmp.ge.f32.partialorder %v2564, %v2649
      %v2651 = vmul.f32 %v2631, 0.5
      %v2653 = vrot.slane %v2651, 2
      %v2655 = vsub.f32 %v2623, %v2653
      %v2656 = vmul.f32 %v2632, 0.5
      %v2658 = vrot.slane %v2656, 2
      %v2660 = vsub.f32 %v2627, %v2658
      %v2661 = vadd.f32 %v2623, %v2653
      %v2662 = vadd.f32 %v2627, %v2658
      %vm2663 = vcmp.ge.f32.partialorder %v2564, 0.8
      %v2664 = vsel %vm2650, 1, 0
      %v2665 = vrot.slane %v2664, 1
      %vm2666 = vcmp.ne.s32.totalorder %v2665, 0
      %vm2667 = vmand %vm2663, %vm2666
      %v2669 = vrot.slane %v2632, 1
      %v2671 = vmul.f32 %v2631, %v2669
      %v2673 = vrot.slane %v2671, 6
      %v2675 = vsel %vm2667, %v2673, -1.0
      %v2676 = vsel %vm2667, 1, 0
      %v2677 = vcvt.s32.f32 %v2676
      %v2679 = vrot.slane %v2655, 1
      %v2682 = vrot.slane %v2660, 1
      %v2685 = vrot.slane %v2661, 7
      %v2688 = vrot.slane %v2662, 7
      %v2691 = vrot.slane %v2564, 1
      %v2693 = vsel %vm2610, %v2679, %v2682
      %v2694 = vsel %vm2612, %v2693, %v2685
      %v2695 = vsel %vm360, %v2694, %v2688
      %v2696 = vsel %vm2615, %v2695, %v2691
      %v2697 = vsel %vm2617, %v2696, %v2649
      %v2698 = vrot.slane %v2539, 6
      %v2700 = vadd.f32 %v2638, %v2698
      %v2701 = vmul.f32 %v2700, 4.0
      %v2702 = vrot.slane %v2540, 5
      %v2704 = vadd.f32 %v2638, %v2702
      %v2705 = vmul.f32 %v2704, 4.0
      %v2706 = vmin.f32 %v2531, 15.0
      %v2707 = vmul.f32 %v2706, 1.442695
      %v2708 = vpow.pop %v2707
      %v2709 = vmul.f32 %v2708, 13.0
      %v2710 = vmul.f32 %v2708, 16.0
      %v2711 = vxor.u32 %v2536, 2147483648
      %v2712 = vmul.f32 %v2711, 1.442695
      %v2713 = vpow.pop %v2712
      %v2714 = vadd.f32 %v2713, 1.0
      %v2715 = vrcp.pop %v2714
      %v2716 = vmul.f32 1.0, %v2715
      %vm2717 = vcmask 523271
      %v2718 = vsel %vm2717, %v2638, -inf
      %vm2719 = vcmask 518144
      %v2720 = vsel %vm2719, %v2716, -inf
      %v2721 = vmax.f32 %v2718, %v2720
      %v2722 = vrot.slane %v2721, 4
      %v2723 = vmax.f32 %v2721, %v2722
      %v2724 = vrot.slane %v2723, 2
      %v2725 = vmax.f32 %v2723, %v2724
      %v2726 = vrot.slane %v2725, 1
      %v2727 = vmax.f32 %v2725, %v2726
      %vm2728 = vcmp.ge.f32.partialorder %v2638, %v2727
      %v2729 = vmul.f32 %v2709, 0.5
      %v2731 = vrot.slane %v2729, 2
      %v2733 = vsub.f32 %v2701, %v2731
      %v2734 = vmul.f32 %v2710, 0.5
      %v2736 = vrot.slane %v2734, 2
      %v2738 = vsub.f32 %v2705, %v2736
      %v2739 = vadd.f32 %v2701, %v2731
      %v2740 = vadd.f32 %v2705, %v2736
      %vm2741 = vcmp.ge.f32.partialorder %v2638, 0.8
      %v2742 = vsel %vm2728, 1, 0
      %v2743 = vrot.slane %v2742, 1
      %vm2744 = vcmp.ne.s32.totalorder %v2743, 0
      %vm2745 = vmand %vm2741, %vm2744
      %v2747 = vrot.slane %v2710, 1
      %v2749 = vmul.f32 %v2709, %v2747
      %v2751 = vrot.slane %v2749, 6
      %v2753 = vsel %vm2745, %v2751, -1.0
      %v2754 = vsel %vm2745, 1, 0
      %v2755 = vcvt.s32.f32 %v2754
      %v2757 = vrot.slane %v2733, 2
      %v2760 = vrot.slane %v2738, 2
      %v2763 = vrot.slane %v2638, 2
      %v2765 = vsel %vm2610, %v2757, %v2760
      %v2766 = vsel %vm2612, %v2765, %v2739
      %v2767 = vsel %vm360, %v2766, %v2740
      %v2768 = vsel %vm2615, %v2767, %v2763
      %v2769 = vsel %vm2617, %v2768, %v2727
      %v2771 = vrot.slane %v2601, 4
      %v2774 = vrot.slane %v2675, 4
      %v2777 = vrot.slane %v2753, 4
      %v2779 = vsel %vm2610, %v2771, %v2774
      %v2780 = vsel %vm2612, %v2779, %v2777
      %v2782 = vrot.slane %v2603, 4
      %v2785 = vrot.slane %v2677, 4
      %v2788 = vrot.slane %v2755, 4
      %v2790 = vsel %vm2610, %v2782, %v2785
      %v2791 = vsel %vm2612, %v2790, %v2788
      %v2792 = vsel %vm2719, %v2780, -inf
      %2793 = vmax.xlane.f32.xlu0 %v2792
      %v2794 = vpop.xlane.xlu0 %2793
      %v2795 = vrot.slane %v2794, 4
      %v2796 = vmax.f32 %v2794, %v2795
      %v2797 = vrot.slane %v2796, 2
      %v2798 = vmax.f32 %v2796, %v2797
      %v2799 = vrot.slane %v2798, 1
      %v2800 = vmax.f32 %v2798, %v2799
      %s2801 = vtos %v2800
      %v2802 = vlaneseq
      %v2803 = vshrl.u32 %v2802, 7
      %v2804 = vlaneseq
      %v2805 = vand.u32 %v2804, 127
      %v2806 = vmul.u32 %v2803, 64
      %v2807 = vadd.s32 %v2806, %v2805
      %v2808 = vstv %s2801
      %vm2809 = vcmp.ge.f32.partialorder %v2780, %v2808
      %v2810 = vsel %vm2809, %v2807, 192
      %v2811 = vsel %vm2719, %v2810, 2147483647
      %v2812 = vand.u32 %v2811, 65535
      %v2813 = vshra.s32 %v2811, 16
      %v2814 = vcvt.s32.f32 %v2812
      %v2815 = vcvt.s32.f32 %v2813
      %2816 = vmin.xlane.f32.xlu0 %v2815
      %v2817 = vpop.xlane.xlu0 %2816
      %vm2818 = vcmp.eq.f32.partialorder %v2815, %v2817
      %v2819 = vsel %vm2818, %v2814, inf
      %2820 = vmin.xlane.f32.xlu0 %v2819
      %v2821 = vpop.xlane.xlu0 %2820
      %v2822 = vcvt.f32.s32 %v2821
      %v2823 = vcvt.f32.s32 %v2817
      %v2824 = vshll.u32 %v2823, 16
      %v2825 = vadd.s32 %v2824, %v2822
      %v2826 = vrot.slane %v2825, 4
      %vm2827 = vcmp.lt.s32.totalorder %v2825, %v2826
      %v2828 = vsel %vm2827, %v2825, %v2826
      %v2829 = vrot.slane %v2828, 2
      %vm2830 = vcmp.lt.s32.totalorder %v2828, %v2829
      %v2831 = vsel %vm2830, %v2828, %v2829
      %v2832 = vrot.slane %v2831, 1
      %vm2833 = vcmp.lt.s32.totalorder %v2831, %v2832
      %v2834 = vsel %vm2833, %v2831, %v2832
      %s2835 = vtos %v2834
      %v2836 = vstv %s2835
      %vm2837 = vcmp.eq.s32.totalorder %v2807, %v2836
      %v2838 = vsel %vm2837, 1, 0
      %v2839 = vcvt.s32.f32 %v2838
      %v2840 = vsel %vm2719, %v2791, -inf
      %2841 = vmax.xlane.f32.xlu0 %v2840
      %v2842 = vpop.xlane.xlu0 %2841
      %v2843 = vrot.slane %v2842, 4
      %v2844 = vmax.f32 %v2842, %v2843
      %v2845 = vrot.slane %v2844, 2
      %v2846 = vmax.f32 %v2844, %v2845
      %v2847 = vrot.slane %v2846, 1
      %v2848 = vmax.f32 %v2846, %v2847
      %s2849 = vtos %v2848
      %v2850 = vlaneseq
      %v2851 = vshrl.u32 %v2850, 7
      %v2852 = vsub.s32 0, %v2851
      %v2853 = vrot.slane %v2839, %v2852
      %v2854 = vmul.f32 %v2618, %v2853
      %v2855 = vlaneseq
      %v2856 = vshrl.u32 %v2855, 7
      %v2857 = vsub.s32 1, %v2856
      %v2858 = vrot.slane %v2839, %v2857
      %v2859 = vmul.f32 %v2697, %v2858
      %v2860 = vadd.f32 %v2854, %v2859
      %v2861 = vlaneseq
      %v2862 = vshrl.u32 %v2861, 7
      %v2863 = vsub.s32 2, %v2862
      %v2864 = vrot.slane %v2839, %v2863
      %v2865 = vmul.f32 %v2769, %v2864
      %v2866 = vadd.f32 %v2860, %v2865
      %vm2867 = vcmask 521216
      %v2868 = vsel %vm2867, %v2866, 0.0
      %2869 = vadd.xlane.f32.xlu0 %v2868
      %v2870 = vpop.xlane.xlu0 %2869
      %v2871 = vstv %s2849
      %vm2872 = vcmask 1045504
      %v2873 = vsel %vm2872, %v2870, 0.0
      %vm2874 = vcmask 1046528
      %v2875 = vsel %vm2874, %v2873, %v2871
      %2877 = vset.pattern.permute.xlu0 0
      %2878 = vperm.xlu0 %2877, %v2875
      %v2879 = vpop.permute.xlu0 %2878
      %2881 = vst [vmem:[%s330] sm:$0xff] %v2879
      %p2882 = scmp.lt.s32.totalorder %s20, 1
      %s2883 = scalar_select %p2882, %s20, 1
      %s2884 = smul.addr %s2883, 8
      %s2885 = scalar_lea.vmem %s9, %s2884
      // Predicated region
      $region57: #{_detector_raw.1} parent=55 // pred_check
        %p2886 = pneg %p232
      $region58: #{_detector_raw.1} parent=55 // pred_check_branch
        %2888 = sbr.rel (%p2886) target = $region60
      $region59: #{_detector_raw.1} parent=55 // pred_region
        _
      $region60: #{_detector_raw.1} parent=55 // pred_fallthru
        _
    $region56: #{_detector_raw.1} parent=5 // pred_fallthru
      _
    %p2889 = scmp.le.s32.totalorder 2, %s15
    // Predicated region
    $region61: #{_detector_raw.1} parent=5 // pred_check
      %p2890 = pneg %p2889
    $region62: #{_detector_raw.1} parent=5 // pred_check_branch
      %2892 = sbr.rel (%p2890) target = $region64
    $region63: #{_detector_raw.1} parent=5 // pred_region
      %s2893 = ssub.s32 %s15, 2
      // Predicated region
      $region65: #{_detector_raw.1} parent=63 // pred_check
        %p2894 = pneg %p238
      $region66: #{_detector_raw.1} parent=63 // pred_check_branch
        %2896 = sbr.rel (%p2894) target = $region68
      $region67: #{_detector_raw.1} parent=63 // pred_region
        %p2897 = scmp.lt.s32.totalorder %s21, 1
        %s2898 = scalar_select %p2897, %s21, 1
        %s2899 = smul.addr %s2898, 8
        %s2900 = scalar_lea.vmem %s9, %s2899
      $region68: #{_detector_raw.1} parent=63 // pred_fallthru
        _
    $region64: #{_detector_raw.1} parent=5 // pred_fallthru
      _
  $region6: #{_detector_raw.1} parent=0 // loop_footer
    %s19 = sadd.s32 1, %s15
  $region7: #{_detector_raw.1} parent=0 // loop_footer_branch
    %14 = sbr.rel target = $region3
  $region8: #{_detector_raw.1} parent=0 // loop_exit
    _

</llo_original>
